<compile_context>
chip_gen: v7x
topology: tpu7x:2x2x1
jax: 0.10.0
libtpu: 0.0.40
codegen_flags: <defaults>
</compile_context>

<pallas_src>
from functools import partial

import jax
import jax.numpy as jnp
import numpy as np
from jax.experimental import pallas as pl
from jax.experimental.pallas import tpu as pltpu

LANE = 128   # vreg lane width
SUB = 8      # vreg sublane count (f32)


def _round_up(x, m):
    return ((x + m - 1) // m) * m


def _make_kernel(seq_len, num_layers, hidden, x_width, batch_pad):
    S, L, H, Xw, Bp = seq_len, num_layers, hidden, x_width, batch_pad
    G = 4 * H                     # tight gate width (<= LANE)
    assert Xw + H <= LANE and G <= LANE

    def kernel(emb_ref, w_ref, b_ref, wfc_ref, bfc_ref,
               logp_ref, hN_ref, cN_ref, htop_scr):
        # emb_ref : (S, Bp, LANE)   embedded tokens in lanes [0:E], zeros elsewhere
        # w_ref   : (L, LANE, LANE) rows [0:in_dim]=W_ih, rows [Xw:Xw+H]=W_hh,
        #                           cols [0:4H] = i|f|g|o (tight), rest zero
        # b_ref   : (L, 1, LANE)    folded b_ih+b_hh in cols [0:4H], rest zero
        # wfc_ref : (LANE, Pp)  bfc_ref: (1, Pp)  (padded cols biased to -1e30)
        # logp_ref: (S*Bp, Pp)  hN/cN: (L, Bp, LANE)  htop_scr: (S*Bp, LANE)

        # Loop-invariant vregs hoisted off the recurrent critical path
        # (broadcast_in_dim is not CSE'd by JAX, so do it once here).
        lane = jax.lax.broadcasted_iota(jnp.int32, (Bp, LANE), 1)
        h_mask = lane < H                                   # real hidden lanes
        biases = [jnp.broadcast_to(b_ref[l], (Bp, LANE)) for l in range(L)]

        zeros_state = jnp.zeros((Bp, LANE), jnp.float32)
        init = (tuple(zeros_state for _ in range(L)),
                tuple(zeros_state for _ in range(L)))

        def cell(x_in, h_prev, c_prev, l):
            # Invariant: x_in has data only in lanes [0:Xw]; h_prev/c_prev only
            # in lanes [0:H]; all other lanes are exactly zero.
            # Lane-disjoint pack: x at [0:Xw], h at [Xw:Xw+H].
            x_cat = x_in + pltpu.roll(h_prev, Xw, axis=1)
            gates = (
                jnp.dot(x_cat, w_ref[l], preferred_element_type=jnp.float32)
                + biases[l]
            )                                               # (Bp, LANE), i|f|g|o
            sig = jax.nn.sigmoid(gates)                     # i, f, o lanes useful
            tnh = jnp.tanh(gates)                           # g lanes useful
            # Realign each gate block to lanes [0:H] (XLU rolls, ~free).
            i_a = sig
            f_a = pltpu.roll(sig, LANE - H, axis=1)
            g_a = pltpu.roll(tnh, LANE - 2 * H, axis=1)
            o_a = pltpu.roll(sig, LANE - 3 * H, axis=1)
            c_new = f_a * c_prev + i_a * g_a
            c_new = jnp.where(h_mask, c_new, 0.0)           # keep pad lanes == 0
            h_new = o_a * jnp.tanh(c_new)                   # pad lanes: o*tanh(0)=0
            return h_new, c_new

        def step(t, carry):
            hs, cs = carry
            hs, cs = list(hs), list(cs)
            x_in = emb_ref[t]                               # (Bp, LANE)
            for l in range(L):                              # static layer unroll
                h_new, c_new = cell(x_in, hs[l], cs[l], l)
                hs[l] = h_new
                cs[l] = c_new
                x_in = h_new                                # next layer input
            row = pl.multiple_of(t * Bp, Bp)
            htop_scr[pl.ds(row, Bp), :] = x_in              # collect top-layer h
            return (tuple(hs), tuple(cs))

        hs, cs = jax.lax.fori_loop(0, S, step, init, unroll=True)

        # Final recurrent state, written once after the loop.
        for l in range(L):
            hN_ref[l] = hs[l]
            cN_ref[l] = cs[l]

        # FC + log_softmax, batched over all (t, b) rows in one lane-dense
        # matmul, off the recurrent critical path.
        logits = (
            jnp.dot(htop_scr[...], wfc_ref[...],
                    preferred_element_type=jnp.float32)
            + bfc_ref[...]
        )                                                   # (S*Bp, Pp)
        m = jnp.max(logits, axis=-1, keepdims=True)
        lse = m + jnp.log(jnp.sum(jnp.exp(logits - m), axis=-1, keepdims=True))
        logp_ref[...] = logits - lse

    return kernel


def pack_params(params, num_layers, hidden_size):
    """One-time host-side packing of the weights into kernel layout (numpy)."""
    E = params["embedding"].shape[1]
    H = hidden_size
    L = num_layers
    P = params["w_fc"].shape[1]
    Xw = max(E, H)
    assert Xw + H <= LANE and 4 * H <= LANE, (
        "tight lane packing requires max(E,H)+H <= 128 and 4*H <= 128")
    Pp = _round_up(P, LANE)

    w_all = np.zeros((L, LANE, LANE), np.float32)
    b_all = np.zeros((L, 1, LANE), np.float32)
    for l in range(L):
        wih = np.asarray(params[f"w_ih_{l}"], np.float32)   # (in_dim, 4H) i|f|g|o
        whh = np.asarray(params[f"w_hh_{l}"], np.float32)   # (H, 4H)
        b = np.asarray(params[f"b_{l}"], np.float32)        # (1, 4H)
        in_dim = wih.shape[0]
        w_all[l, :in_dim, :4 * H] = wih
        w_all[l, Xw:Xw + H, :4 * H] = whh
        b_all[l, :, :4 * H] = b

    wfc = np.zeros((LANE, Pp), np.float32)
    wfc[:H, :P] = np.asarray(params["w_fc"], np.float32)
    # Padded logit columns get a huge negative bias so they vanish from the
    # log_softmax normalizer.
    bfc = np.full((1, Pp), -1e30, np.float32)
    bfc[:, :P] = np.asarray(params["b_fc"], np.float32)

    return {
        "embedding": jnp.asarray(params["embedding"], jnp.float32),
        "w_all": jnp.asarray(w_all),
        "b_all": jnp.asarray(b_all),
        "wfc": jnp.asarray(wfc),
        "bfc": jnp.asarray(bfc),
    }


@partial(jax.jit, static_argnames=("num_layers", "hidden_size", "pos_vocab_size"))
def pos_tagger_forward(x, packed, num_layers, hidden_size, pos_vocab_size):
    """x: int32 [seq_len, batch]. Returns (log_probs [S,B,P], h_n, c_n [L,B,H])."""
    emb = packed["embedding"][x]                 # glue: gather -> (S, B, E) f32
    S, B, E = emb.shape
    H, L, P = hidden_size, num_layers, pos_vocab_size
    Xw = max(E, H)
    Pp = packed["wfc"].shape[1]
    Bp = _round_up(B, SUB)
    f32 = jnp.float32

    # Zero-pad the embedded inputs to (S, Bp, LANE): x in lanes [0:E].
    emb_p = jnp.zeros((S, Bp, LANE), f32).at[:, :B, :E].set(emb.astype(f32))

    kernel = _make_kernel(S, L, H, Xw, Bp)
    out_shape = (
        jax.ShapeDtypeStruct((S * Bp, Pp), f32),
        jax.ShapeDtypeStruct((L, Bp, LANE), f32),
        jax.ShapeDtypeStruct((L, Bp, LANE), f32),
    )
    vmem = pl.BlockSpec(memory_space=pltpu.MemorySpace.VMEM)
    logp_p, hN_p, cN_p = pl.pallas_call(
        kernel,
        out_shape=out_shape,
        in_specs=[vmem] * 5,
        out_specs=(vmem, vmem, vmem),
        scratch_shapes=[pltpu.VMEM((S * Bp, LANE), f32)],   # top-layer h history
    )(emb_p, packed["w_all"], packed["b_all"], packed["wfc"], packed["bfc"])

    log_probs = logp_p.reshape(S, Bp, Pp)[:, :B, :P]
    h_n = hN_p[:, :B, :H]
    c_n = cN_p[:, :B, :H]
    return log_probs, h_n, c_n


def reference_forward(x, params, num_layers, hidden_size):
    """Pure-JAX reference (lax.scan over time) for correctness checking."""
    emb = params["embedding"][x]
    S, B, E = emb.shape
    L, H = num_layers, hidden_size

    def step(carry, x_t):
        h, c = carry
        x_in = x_t
        hs, cs = [], []
        for l in range(L):
            gates = (
                x_in @ params[f"w_ih_{l}"]
                + h[l] @ params[f"w_hh_{l}"]
                + params[f"b_{l}"]
            )
            i = jax.nn.sigmoid(gates[:, :H])
            f = jax.nn.sigmoid(gates[:, H:2 * H])
            g = jnp.tanh(gates[:, 2 * H:3 * H])
            o = jax.nn.sigmoid(gates[:, 3 * H:])
            c_new = f * c[l] + i * g
            h_new = o * jnp.tanh(c_new)
            hs.append(h_new)
            cs.append(c_new)
            x_in = h_new
        logits = x_in @ params["w_fc"] + params["b_fc"]
        return (jnp.stack(hs), jnp.stack(cs)), jax.nn.log_softmax(logits, axis=-1)

    init = (jnp.zeros((L, B, H), jnp.float32), jnp.zeros((L, B, H), jnp.float32))
    (hN, cN), out = jax.lax.scan(step, init, emb)
    return out, hN, cN


if __name__ == "__main__":
    token_vocab_size = 50
    pos_vocab_size = 16
    embedding_dim = 32
    hidden_size = 32
    num_layers = 2
    seq_len = 8
    batch = 2

    key = jax.random.PRNGKey(0)
    keys = jax.random.split(key, 3 * num_layers + 4)

    params = {}
    params["embedding"] = jax.random.normal(
        keys[0], (token_vocab_size, embedding_dim), jnp.float32
    )
    k = 1.0 / np.sqrt(hidden_size)
    ki = 1
    for l in range(num_layers):
        in_dim = embedding_dim if l == 0 else hidden_size
        params[f"w_ih_{l}"] = jax.random.uniform(
            keys[ki], (in_dim, 4 * hidden_size), jnp.float32, -k, k); ki += 1
        params[f"w_hh_{l}"] = jax.random.uniform(
            keys[ki], (hidden_size, 4 * hidden_size), jnp.float32, -k, k); ki += 1
        params[f"b_{l}"] = jax.random.uniform(
            keys[ki], (1, 4 * hidden_size), jnp.float32, -k, k); ki += 1
    kf = 1.0 / np.sqrt(hidden_size)
    params["w_fc"] = jax.random.uniform(
        keys[ki], (hidden_size, pos_vocab_size), jnp.float32, -kf, kf); ki += 1
    params["b_fc"] = jax.random.uniform(
        keys[ki], (1, pos_vocab_size), jnp.float32, -kf, kf); ki += 1

    x = jax.random.randint(
        keys[ki], (seq_len, batch), 0, token_vocab_size, dtype=jnp.int32
    )

    # One-time parameter packing (off the forward path, per perf review).
    packed = pack_params(params, num_layers, hidden_size)

    out, h_n, c_n = pos_tagger_forward(
        x, packed,
        num_layers=num_layers, hidden_size=hidden_size,
        pos_vocab_size=pos_vocab_size,
    )
    jax.block_until_ready((out, h_n, c_n))

    ref_out, ref_h, ref_c = reference_forward(x, params, num_layers, hidden_size)
    # Tolerance kept at 2e-2: the pure-JAX reference itself uses
    # default-precision TPU matmuls, so a much tighter bound would compare
    # against a reference that is not exactly f32 either.
    np.testing.assert_allclose(np.asarray(out), np.asarray(ref_out),
                               rtol=2e-2, atol=2e-2)
    np.testing.assert_allclose(np.asarray(h_n), np.asarray(ref_h),
                               rtol=2e-2, atol=2e-2)
    np.testing.assert_allclose(np.asarray(c_n), np.asarray(ref_c),
                               rtol=2e-2, atol=2e-2)
    print("KERNEL_OK")
</pallas_src>

<mosaic_0001>
module attributes {stable_mosaic.version = 11 : i64} {
  func.func @kernel(%arg0: memref<8x8x128xf32, #tpu.memory_space<vmem>>, %arg1: memref<2x128x128xf32, #tpu.memory_space<vmem>>, %arg2: memref<2x1x128xf32, #tpu.memory_space<vmem>>, %arg3: memref<128x128xf32, #tpu.memory_space<vmem>>, %arg4: memref<1x128xf32, #tpu.memory_space<vmem>>, %arg5: memref<64x128xf32, #tpu.memory_space<vmem>>, %arg6: memref<2x8x128xf32, #tpu.memory_space<vmem>>, %arg7: memref<2x8x128xf32, #tpu.memory_space<vmem>>, %arg8: memref<64x128xf32, #tpu.memory_space<vmem>>) attributes {dimension_semantics = [], scalar_prefetch = 0 : i64, scratch_operands = 1 : i64, tpu.core_type = #tpu.core_type<tc>} {
    %0 = tpu.iota {dimensions = array<i32: 1>} : vector<8x128xi32>
    %c32_i32 = arith.constant 32 : i32
    %1 = vector.broadcast %c32_i32 : i32 to vector<8x128xi32>
    %2 = arith.cmpi slt, %0, %1 : vector<8x128xi32>
    %c0 = arith.constant 0 : index
    %c0_0 = arith.constant 0 : index
    %c0_1 = arith.constant 0 : index
    %3 = vector.load %arg2[%c0, %c0_0, %c0_1] : memref<2x1x128xf32, #tpu.memory_space<vmem>>, vector<1x1x128xf32>
    %4 = vector.shape_cast %3 : vector<1x1x128xf32> to vector<1x128xf32>
    %5 = vector.shape_cast %4 : vector<1x128xf32> to vector<1x128xf32>
    %6 = vector.broadcast %5 : vector<1x128xf32> to vector<8x128xf32>
    %c1 = arith.constant 1 : index
    %c0_2 = arith.constant 0 : index
    %c0_3 = arith.constant 0 : index
    %7 = vector.load %arg2[%c1, %c0_2, %c0_3] : memref<2x1x128xf32, #tpu.memory_space<vmem>>, vector<1x1x128xf32>
    %8 = vector.shape_cast %7 : vector<1x1x128xf32> to vector<1x128xf32>
    %9 = vector.shape_cast %8 : vector<1x128xf32> to vector<1x128xf32>
    %10 = vector.broadcast %9 : vector<1x128xf32> to vector<8x128xf32>
    %cst = arith.constant 0.000000e+00 : f32
    %11 = vector.broadcast %cst : f32 to vector<8x128xf32>
    %c0_i32 = arith.constant 0 : i32
    %12 = arith.index_cast %c0_i32 : i32 to index
    %c0_4 = arith.constant 0 : index
    %c0_5 = arith.constant 0 : index
    %13 = vector.load %arg0[%12, %c0_4, %c0_5] : memref<8x8x128xf32, #tpu.memory_space<vmem>>, vector<1x8x128xf32>
    %14 = vector.shape_cast %13 : vector<1x8x128xf32> to vector<8x128xf32>
    %c32_i32_6 = arith.constant 32 : i32
    %15 = tpu.dynamic_rotate %11 by %c32_i32_6 dim 1 : vector<8x128xf32>, i32 -> vector<8x128xf32>
    %16 = arith.addf %14, %15 : vector<8x128xf32>
    %c0_7 = arith.constant 0 : index
    %c0_8 = arith.constant 0 : index
    %c0_9 = arith.constant 0 : index
    %17 = vector.load %arg1[%c0_7, %c0_8, %c0_9] : memref<2x128x128xf32, #tpu.memory_space<vmem>>, vector<1x128x128xf32>
    %18 = vector.shape_cast %17 : vector<1x128x128xf32> to vector<128x128xf32>
    %cst_10 = arith.constant dense<0.000000e+00> : vector<8x128xf32>
    %19 = tpu.matmul %16, %18, %cst_10 {dimension_numbers = #tpu.dot_dimension_numbers<[1], [0], [0], [1], [0, 0, 1, 1], [], []>} : vector<8x128xf32>, vector<128x128xf32>, vector<8x128xf32> -> vector<8x128xf32>
    %20 = arith.addf %19, %6 : vector<8x128xf32>
    %21 = arith.negf %20 : vector<8x128xf32>
    %22 = math.exp %21 : vector<8x128xf32>
    %cst_11 = arith.constant 1.000000e+00 : f32
    %23 = vector.broadcast %cst_11 : f32 to vector<8x128xf32>
    %24 = arith.addf %23, %22 : vector<8x128xf32>
    %25 = arith.divf %23, %24 : vector<8x128xf32>
    %26 = math.tanh %20 : vector<8x128xf32>
    %c96_i32 = arith.constant 96 : i32
    %27 = tpu.dynamic_rotate %25 by %c96_i32 dim 1 : vector<8x128xf32>, i32 -> vector<8x128xf32>
    %c64_i32 = arith.constant 64 : i32
    %28 = tpu.dynamic_rotate %26 by %c64_i32 dim 1 : vector<8x128xf32>, i32 -> vector<8x128xf32>
    %c32_i32_12 = arith.constant 32 : i32
    %29 = tpu.dynamic_rotate %25 by %c32_i32_12 dim 1 : vector<8x128xf32>, i32 -> vector<8x128xf32>
    %30 = arith.mulf %27, %11 : vector<8x128xf32>
    %31 = arith.mulf %25, %28 : vector<8x128xf32>
    %32 = arith.addf %30, %31 : vector<8x128xf32>
    %cst_13 = arith.constant 0.000000e+00 : f32
    %33 = vector.broadcast %cst_13 : f32 to vector<8x128xf32>
    %34 = arith.select %2, %32, %33 : vector<8x128xi1>, vector<8x128xf32>
    %35 = math.tanh %34 : vector<8x128xf32>
    %36 = arith.mulf %29, %35 : vector<8x128xf32>
    %c32_i32_14 = arith.constant 32 : i32
    %37 = tpu.dynamic_rotate %11 by %c32_i32_14 dim 1 : vector<8x128xf32>, i32 -> vector<8x128xf32>
    %38 = arith.addf %36, %37 : vector<8x128xf32>
    %c1_15 = arith.constant 1 : index
    %c0_16 = arith.constant 0 : index
    %c0_17 = arith.constant 0 : index
    %39 = vector.load %arg1[%c1_15, %c0_16, %c0_17] : memref<2x128x128xf32, #tpu.memory_space<vmem>>, vector<1x128x128xf32>
    %40 = vector.shape_cast %39 : vector<1x128x128xf32> to vector<128x128xf32>
    %cst_18 = arith.constant dense<0.000000e+00> : vector<8x128xf32>
    %41 = tpu.matmul %38, %40, %cst_18 {dimension_numbers = #tpu.dot_dimension_numbers<[1], [0], [0], [1], [0, 0, 1, 1], [], []>} : vector<8x128xf32>, vector<128x128xf32>, vector<8x128xf32> -> vector<8x128xf32>
    %42 = arith.addf %41, %10 : vector<8x128xf32>
    %43 = arith.negf %42 : vector<8x128xf32>
    %44 = math.exp %43 : vector<8x128xf32>
    %cst_19 = arith.constant 1.000000e+00 : f32
    %45 = vector.broadcast %cst_19 : f32 to vector<8x128xf32>
    %46 = arith.addf %45, %44 : vector<8x128xf32>
    %47 = arith.divf %45, %46 : vector<8x128xf32>
    %48 = math.tanh %42 : vector<8x128xf32>
    %c96_i32_20 = arith.constant 96 : i32
    %49 = tpu.dynamic_rotate %47 by %c96_i32_20 dim 1 : vector<8x128xf32>, i32 -> vector<8x128xf32>
    %c64_i32_21 = arith.constant 64 : i32
    %50 = tpu.dynamic_rotate %48 by %c64_i32_21 dim 1 : vector<8x128xf32>, i32 -> vector<8x128xf32>
    %c32_i32_22 = arith.constant 32 : i32
    %51 = tpu.dynamic_rotate %47 by %c32_i32_22 dim 1 : vector<8x128xf32>, i32 -> vector<8x128xf32>
    %52 = arith.mulf %49, %11 : vector<8x128xf32>
    %53 = arith.mulf %47, %50 : vector<8x128xf32>
    %54 = arith.addf %52, %53 : vector<8x128xf32>
    %cst_23 = arith.constant 0.000000e+00 : f32
    %55 = vector.broadcast %cst_23 : f32 to vector<8x128xf32>
    %56 = arith.select %2, %54, %55 : vector<8x128xi1>, vector<8x128xf32>
    %57 = math.tanh %56 : vector<8x128xf32>
    %58 = arith.mulf %51, %57 : vector<8x128xf32>
    %c8_i32 = arith.constant 8 : i32
    %59 = arith.muli %c0_i32, %c8_i32 : i32
    %60 = tpu.assume_multiple %59, 8 : i32
    %61 = arith.index_cast %60 : i32 to index
    %c0_24 = arith.constant 0 : index
    %62 = vector.load %arg8[%61, %c0_24] : memref<64x128xf32, #tpu.memory_space<vmem>>, vector<8x128xf32>
    tpu.vector_store %arg8[%61, %c0_24], %58 {strides = array<i32>} : memref<64x128xf32, #tpu.memory_space<vmem>>, vector<8x128xf32>,
    %c1_i32 = arith.constant 1 : i32
    %63 = arith.index_cast %c1_i32 : i32 to index
    %c0_25 = arith.constant 0 : index
    %c0_26 = arith.constant 0 : index
    %64 = vector.load %arg0[%63, %c0_25, %c0_26] : memref<8x8x128xf32, #tpu.memory_space<vmem>>, vector<1x8x128xf32>
    %65 = vector.shape_cast %64 : vector<1x8x128xf32> to vector<8x128xf32>
    %c32_i32_27 = arith.constant 32 : i32
    %66 = tpu.dynamic_rotate %36 by %c32_i32_27 dim 1 : vector<8x128xf32>, i32 -> vector<8x128xf32>
    %67 = arith.addf %65, %66 : vector<8x128xf32>
    %c0_28 = arith.constant 0 : index
    %c0_29 = arith.constant 0 : index
    %c0_30 = arith.constant 0 : index
    %68 = vector.load %arg1[%c0_28, %c0_29, %c0_30] : memref<2x128x128xf32, #tpu.memory_space<vmem>>, vector<1x128x128xf32>
    %69 = vector.shape_cast %68 : vector<1x128x128xf32> to vector<128x128xf32>
    %cst_31 = arith.constant dense<0.000000e+00> : vector<8x128xf32>
    %70 = tpu.matmul %67, %69, %cst_31 {dimension_numbers = #tpu.dot_dimension_numbers<[1], [0], [0], [1], [0, 0, 1, 1], [], []>} : vector<8x128xf32>, vector<128x128xf32>, vector<8x128xf32> -> vector<8x128xf32>
    %71 = arith.addf %70, %6 : vector<8x128xf32>
    %72 = arith.negf %71 : vector<8x128xf32>
    %73 = math.exp %72 : vector<8x128xf32>
    %cst_32 = arith.constant 1.000000e+00 : f32
    %74 = vector.broadcast %cst_32 : f32 to vector<8x128xf32>
    %75 = arith.addf %74, %73 : vector<8x128xf32>
    %76 = arith.divf %74, %75 : vector<8x128xf32>
    %77 = math.tanh %71 : vector<8x128xf32>
    %c96_i32_33 = arith.constant 96 : i32
    %78 = tpu.dynamic_rotate %76 by %c96_i32_33 dim 1 : vector<8x128xf32>, i32 -> vector<8x128xf32>
    %c64_i32_34 = arith.constant 64 : i32
    %79 = tpu.dynamic_rotate %77 by %c64_i32_34 dim 1 : vector<8x128xf32>, i32 -> vector<8x128xf32>
    %c32_i32_35 = arith.constant 32 : i32
    %80 = tpu.dynamic_rotate %76 by %c32_i32_35 dim 1 : vector<8x128xf32>, i32 -> vector<8x128xf32>
    %81 = arith.mulf %78, %34 : vector<8x128xf32>
    %82 = arith.mulf %76, %79 : vector<8x128xf32>
    %83 = arith.addf %81, %82 : vector<8x128xf32>
    %cst_36 = arith.constant 0.000000e+00 : f32
    %84 = vector.broadcast %cst_36 : f32 to vector<8x128xf32>
    %85 = arith.select %2, %83, %84 : vector<8x128xi1>, vector<8x128xf32>
    %86 = math.tanh %85 : vector<8x128xf32>
    %87 = arith.mulf %80, %86 : vector<8x128xf32>
    %c32_i32_37 = arith.constant 32 : i32
    %88 = tpu.dynamic_rotate %58 by %c32_i32_37 dim 1 : vector<8x128xf32>, i32 -> vector<8x128xf32>
    %89 = arith.addf %87, %88 : vector<8x128xf32>
    %c1_38 = arith.constant 1 : index
    %c0_39 = arith.constant 0 : index
    %c0_40 = arith.constant 0 : index
    %90 = vector.load %arg1[%c1_38, %c0_39, %c0_40] : memref<2x128x128xf32, #tpu.memory_space<vmem>>, vector<1x128x128xf32>
    %91 = vector.shape_cast %90 : vector<1x128x128xf32> to vector<128x128xf32>
    %cst_41 = arith.constant dense<0.000000e+00> : vector<8x128xf32>
    %92 = tpu.matmul %89, %91, %cst_41 {dimension_numbers = #tpu.dot_dimension_numbers<[1], [0], [0], [1], [0, 0, 1, 1], [], []>} : vector<8x128xf32>, vector<128x128xf32>, vector<8x128xf32> -> vector<8x128xf32>
    %93 = arith.addf %92, %10 : vector<8x128xf32>
    %94 = arith.negf %93 : vector<8x128xf32>
    %95 = math.exp %94 : vector<8x128xf32>
    %cst_42 = arith.constant 1.000000e+00 : f32
    %96 = vector.broadcast %cst_42 : f32 to vector<8x128xf32>
    %97 = arith.addf %96, %95 : vector<8x128xf32>
    %98 = arith.divf %96, %97 : vector<8x128xf32>
    %99 = math.tanh %93 : vector<8x128xf32>
    %c96_i32_43 = arith.constant 96 : i32
    %100 = tpu.dynamic_rotate %98 by %c96_i32_43 dim 1 : vector<8x128xf32>, i32 -> vector<8x128xf32>
    %c64_i32_44 = arith.constant 64 : i32
    %101 = tpu.dynamic_rotate %99 by %c64_i32_44 dim 1 : vector<8x128xf32>, i32 -> vector<8x128xf32>
    %c32_i32_45 = arith.constant 32 : i32
    %102 = tpu.dynamic_rotate %98 by %c32_i32_45 dim 1 : vector<8x128xf32>, i32 -> vector<8x128xf32>
    %103 = arith.mulf %100, %56 : vector<8x128xf32>
    %104 = arith.mulf %98, %101 : vector<8x128xf32>
    %105 = arith.addf %103, %104 : vector<8x128xf32>
    %cst_46 = arith.constant 0.000000e+00 : f32
    %106 = vector.broadcast %cst_46 : f32 to vector<8x128xf32>
    %107 = arith.select %2, %105, %106 : vector<8x128xi1>, vector<8x128xf32>
    %108 = math.tanh %107 : vector<8x128xf32>
    %109 = arith.mulf %102, %108 : vector<8x128xf32>
    %c8_i32_47 = arith.constant 8 : i32
    %110 = arith.muli %c1_i32, %c8_i32_47 : i32
    %111 = tpu.assume_multiple %110, 8 : i32
    %112 = arith.index_cast %111 : i32 to index
    %c0_48 = arith.constant 0 : index
    %113 = vector.load %arg8[%112, %c0_48] : memref<64x128xf32, #tpu.memory_space<vmem>>, vector<8x128xf32>
    tpu.vector_store %arg8[%112, %c0_48], %109 {strides = array<i32>} : memref<64x128xf32, #tpu.memory_space<vmem>>, vector<8x128xf32>,
    %c2_i32 = arith.constant 2 : i32
    %114 = arith.index_cast %c2_i32 : i32 to index
    %c0_49 = arith.constant 0 : index
    %c0_50 = arith.constant 0 : index
    %115 = vector.load %arg0[%114, %c0_49, %c0_50] : memref<8x8x128xf32, #tpu.memory_space<vmem>>, vector<1x8x128xf32>
    %116 = vector.shape_cast %115 : vector<1x8x128xf32> to vector<8x128xf32>
    %c32_i32_51 = arith.constant 32 : i32
    %117 = tpu.dynamic_rotate %87 by %c32_i32_51 dim 1 : vector<8x128xf32>, i32 -> vector<8x128xf32>
    %118 = arith.addf %116, %117 : vector<8x128xf32>
    %c0_52 = arith.constant 0 : index
    %c0_53 = arith.constant 0 : index
    %c0_54 = arith.constant 0 : index
    %119 = vector.load %arg1[%c0_52, %c0_53, %c0_54] : memref<2x128x128xf32, #tpu.memory_space<vmem>>, vector<1x128x128xf32>
    %120 = vector.shape_cast %119 : vector<1x128x128xf32> to vector<128x128xf32>
    %cst_55 = arith.constant dense<0.000000e+00> : vector<8x128xf32>
    %121 = tpu.matmul %118, %120, %cst_55 {dimension_numbers = #tpu.dot_dimension_numbers<[1], [0], [0], [1], [0, 0, 1, 1], [], []>} : vector<8x128xf32>, vector<128x128xf32>, vector<8x128xf32> -> vector<8x128xf32>
    %122 = arith.addf %121, %6 : vector<8x128xf32>
    %123 = arith.negf %122 : vector<8x128xf32>
    %124 = math.exp %123 : vector<8x128xf32>
    %cst_56 = arith.constant 1.000000e+00 : f32
    %125 = vector.broadcast %cst_56 : f32 to vector<8x128xf32>
    %126 = arith.addf %125, %124 : vector<8x128xf32>
    %127 = arith.divf %125, %126 : vector<8x128xf32>
    %128 = math.tanh %122 : vector<8x128xf32>
    %c96_i32_57 = arith.constant 96 : i32
    %129 = tpu.dynamic_rotate %127 by %c96_i32_57 dim 1 : vector<8x128xf32>, i32 -> vector<8x128xf32>
    %c64_i32_58 = arith.constant 64 : i32
    %130 = tpu.dynamic_rotate %128 by %c64_i32_58 dim 1 : vector<8x128xf32>, i32 -> vector<8x128xf32>
    %c32_i32_59 = arith.constant 32 : i32
    %131 = tpu.dynamic_rotate %127 by %c32_i32_59 dim 1 : vector<8x128xf32>, i32 -> vector<8x128xf32>
    %132 = arith.mulf %129, %85 : vector<8x128xf32>
    %133 = arith.mulf %127, %130 : vector<8x128xf32>
    %134 = arith.addf %132, %133 : vector<8x128xf32>
    %cst_60 = arith.constant 0.000000e+00 : f32
    %135 = vector.broadcast %cst_60 : f32 to vector<8x128xf32>
    %136 = arith.select %2, %134, %135 : vector<8x128xi1>, vector<8x128xf32>
    %137 = math.tanh %136 : vector<8x128xf32>
    %138 = arith.mulf %131, %137 : vector<8x128xf32>
    %c32_i32_61 = arith.constant 32 : i32
    %139 = tpu.dynamic_rotate %109 by %c32_i32_61 dim 1 : vector<8x128xf32>, i32 -> vector<8x128xf32>
    %140 = arith.addf %138, %139 : vector<8x128xf32>
    %c1_62 = arith.constant 1 : index
    %c0_63 = arith.constant 0 : index
    %c0_64 = arith.constant 0 : index
    %141 = vector.load %arg1[%c1_62, %c0_63, %c0_64] : memref<2x128x128xf32, #tpu.memory_space<vmem>>, vector<1x128x128xf32>
    %142 = vector.shape_cast %141 : vector<1x128x128xf32> to vector<128x128xf32>
    %cst_65 = arith.constant dense<0.000000e+00> : vector<8x128xf32>
    %143 = tpu.matmul %140, %142, %cst_65 {dimension_numbers = #tpu.dot_dimension_numbers<[1], [0], [0], [1], [0, 0, 1, 1], [], []>} : vector<8x128xf32>, vector<128x128xf32>, vector<8x128xf32> -> vector<8x128xf32>
    %144 = arith.addf %143, %10 : vector<8x128xf32>
    %145 = arith.negf %144 : vector<8x128xf32>
    %146 = math.exp %145 : vector<8x128xf32>
    %cst_66 = arith.constant 1.000000e+00 : f32
    %147 = vector.broadcast %cst_66 : f32 to vector<8x128xf32>
    %148 = arith.addf %147, %146 : vector<8x128xf32>
    %149 = arith.divf %147, %148 : vector<8x128xf32>
    %150 = math.tanh %144 : vector<8x128xf32>
    %c96_i32_67 = arith.constant 96 : i32
    %151 = tpu.dynamic_rotate %149 by %c96_i32_67 dim 1 : vector<8x128xf32>, i32 -> vector<8x128xf32>
    %c64_i32_68 = arith.constant 64 : i32
    %152 = tpu.dynamic_rotate %150 by %c64_i32_68 dim 1 : vector<8x128xf32>, i32 -> vector<8x128xf32>
    %c32_i32_69 = arith.constant 32 : i32
    %153 = tpu.dynamic_rotate %149 by %c32_i32_69 dim 1 : vector<8x128xf32>, i32 -> vector<8x128xf32>
    %154 = arith.mulf %151, %107 : vector<8x128xf32>
    %155 = arith.mulf %149, %152 : vector<8x128xf32>
    %156 = arith.addf %154, %155 : vector<8x128xf32>
    %cst_70 = arith.constant 0.000000e+00 : f32
    %157 = vector.broadcast %cst_70 : f32 to vector<8x128xf32>
    %158 = arith.select %2, %156, %157 : vector<8x128xi1>, vector<8x128xf32>
    %159 = math.tanh %158 : vector<8x128xf32>
    %160 = arith.mulf %153, %159 : vector<8x128xf32>
    %c8_i32_71 = arith.constant 8 : i32
    %161 = arith.muli %c2_i32, %c8_i32_71 : i32
    %162 = tpu.assume_multiple %161, 8 : i32
    %163 = arith.index_cast %162 : i32 to index
    %c0_72 = arith.constant 0 : index
    %164 = vector.load %arg8[%163, %c0_72] : memref<64x128xf32, #tpu.memory_space<vmem>>, vector<8x128xf32>
    tpu.vector_store %arg8[%163, %c0_72], %160 {strides = array<i32>} : memref<64x128xf32, #tpu.memory_space<vmem>>, vector<8x128xf32>,
    %c3_i32 = arith.constant 3 : i32
    %165 = arith.index_cast %c3_i32 : i32 to index
    %c0_73 = arith.constant 0 : index
    %c0_74 = arith.constant 0 : index
    %166 = vector.load %arg0[%165, %c0_73, %c0_74] : memref<8x8x128xf32, #tpu.memory_space<vmem>>, vector<1x8x128xf32>
    %167 = vector.shape_cast %166 : vector<1x8x128xf32> to vector<8x128xf32>
    %c32_i32_75 = arith.constant 32 : i32
    %168 = tpu.dynamic_rotate %138 by %c32_i32_75 dim 1 : vector<8x128xf32>, i32 -> vector<8x128xf32>
    %169 = arith.addf %167, %168 : vector<8x128xf32>
    %c0_76 = arith.constant 0 : index
    %c0_77 = arith.constant 0 : index
    %c0_78 = arith.constant 0 : index
    %170 = vector.load %arg1[%c0_76, %c0_77, %c0_78] : memref<2x128x128xf32, #tpu.memory_space<vmem>>, vector<1x128x128xf32>
    %171 = vector.shape_cast %170 : vector<1x128x128xf32> to vector<128x128xf32>
    %cst_79 = arith.constant dense<0.000000e+00> : vector<8x128xf32>
    %172 = tpu.matmul %169, %171, %cst_79 {dimension_numbers = #tpu.dot_dimension_numbers<[1], [0], [0], [1], [0, 0, 1, 1], [], []>} : vector<8x128xf32>, vector<128x128xf32>, vector<8x128xf32> -> vector<8x128xf32>
    %173 = arith.addf %172, %6 : vector<8x128xf32>
    %174 = arith.negf %173 : vector<8x128xf32>
    %175 = math.exp %174 : vector<8x128xf32>
    %cst_80 = arith.constant 1.000000e+00 : f32
    %176 = vector.broadcast %cst_80 : f32 to vector<8x128xf32>
    %177 = arith.addf %176, %175 : vector<8x128xf32>
    %178 = arith.divf %176, %177 : vector<8x128xf32>
    %179 = math.tanh %173 : vector<8x128xf32>
    %c96_i32_81 = arith.constant 96 : i32
    %180 = tpu.dynamic_rotate %178 by %c96_i32_81 dim 1 : vector<8x128xf32>, i32 -> vector<8x128xf32>
    %c64_i32_82 = arith.constant 64 : i32
    %181 = tpu.dynamic_rotate %179 by %c64_i32_82 dim 1 : vector<8x128xf32>, i32 -> vector<8x128xf32>
    %c32_i32_83 = arith.constant 32 : i32
    %182 = tpu.dynamic_rotate %178 by %c32_i32_83 dim 1 : vector<8x128xf32>, i32 -> vector<8x128xf32>
    %183 = arith.mulf %180, %136 : vector<8x128xf32>
    %184 = arith.mulf %178, %181 : vector<8x128xf32>
    %185 = arith.addf %183, %184 : vector<8x128xf32>
    %cst_84 = arith.constant 0.000000e+00 : f32
    %186 = vector.broadcast %cst_84 : f32 to vector<8x128xf32>
    %187 = arith.select %2, %185, %186 : vector<8x128xi1>, vector<8x128xf32>
    %188 = math.tanh %187 : vector<8x128xf32>
    %189 = arith.mulf %182, %188 : vector<8x128xf32>
    %c32_i32_85 = arith.constant 32 : i32
    %190 = tpu.dynamic_rotate %160 by %c32_i32_85 dim 1 : vector<8x128xf32>, i32 -> vector<8x128xf32>
    %191 = arith.addf %189, %190 : vector<8x128xf32>
    %c1_86 = arith.constant 1 : index
    %c0_87 = arith.constant 0 : index
    %c0_88 = arith.constant 0 : index
    %192 = vector.load %arg1[%c1_86, %c0_87, %c0_88] : memref<2x128x128xf32, #tpu.memory_space<vmem>>, vector<1x128x128xf32>
    %193 = vector.shape_cast %192 : vector<1x128x128xf32> to vector<128x128xf32>
    %cst_89 = arith.constant dense<0.000000e+00> : vector<8x128xf32>
    %194 = tpu.matmul %191, %193, %cst_89 {dimension_numbers = #tpu.dot_dimension_numbers<[1], [0], [0], [1], [0, 0, 1, 1], [], []>} : vector<8x128xf32>, vector<128x128xf32>, vector<8x128xf32> -> vector<8x128xf32>
    %195 = arith.addf %194, %10 : vector<8x128xf32>
    %196 = arith.negf %195 : vector<8x128xf32>
    %197 = math.exp %196 : vector<8x128xf32>
    %cst_90 = arith.constant 1.000000e+00 : f32
    %198 = vector.broadcast %cst_90 : f32 to vector<8x128xf32>
    %199 = arith.addf %198, %197 : vector<8x128xf32>
    %200 = arith.divf %198, %199 : vector<8x128xf32>
    %201 = math.tanh %195 : vector<8x128xf32>
    %c96_i32_91 = arith.constant 96 : i32
    %202 = tpu.dynamic_rotate %200 by %c96_i32_91 dim 1 : vector<8x128xf32>, i32 -> vector<8x128xf32>
    %c64_i32_92 = arith.constant 64 : i32
    %203 = tpu.dynamic_rotate %201 by %c64_i32_92 dim 1 : vector<8x128xf32>, i32 -> vector<8x128xf32>
    %c32_i32_93 = arith.constant 32 : i32
    %204 = tpu.dynamic_rotate %200 by %c32_i32_93 dim 1 : vector<8x128xf32>, i32 -> vector<8x128xf32>
    %205 = arith.mulf %202, %158 : vector<8x128xf32>
    %206 = arith.mulf %200, %203 : vector<8x128xf32>
    %207 = arith.addf %205, %206 : vector<8x128xf32>
    %cst_94 = arith.constant 0.000000e+00 : f32
    %208 = vector.broadcast %cst_94 : f32 to vector<8x128xf32>
    %209 = arith.select %2, %207, %208 : vector<8x128xi1>, vector<8x128xf32>
    %210 = math.tanh %209 : vector<8x128xf32>
    %211 = arith.mulf %204, %210 : vector<8x128xf32>
    %c8_i32_95 = arith.constant 8 : i32
    %212 = arith.muli %c3_i32, %c8_i32_95 : i32
    %213 = tpu.assume_multiple %212, 8 : i32
    %214 = arith.index_cast %213 : i32 to index
    %c0_96 = arith.constant 0 : index
    %215 = vector.load %arg8[%214, %c0_96] : memref<64x128xf32, #tpu.memory_space<vmem>>, vector<8x128xf32>
    tpu.vector_store %arg8[%214, %c0_96], %211 {strides = array<i32>} : memref<64x128xf32, #tpu.memory_space<vmem>>, vector<8x128xf32>,
    %c4_i32 = arith.constant 4 : i32
    %216 = arith.index_cast %c4_i32 : i32 to index
    %c0_97 = arith.constant 0 : index
    %c0_98 = arith.constant 0 : index
    %217 = vector.load %arg0[%216, %c0_97, %c0_98] : memref<8x8x128xf32, #tpu.memory_space<vmem>>, vector<1x8x128xf32>
    %218 = vector.shape_cast %217 : vector<1x8x128xf32> to vector<8x128xf32>
    %c32_i32_99 = arith.constant 32 : i32
    %219 = tpu.dynamic_rotate %189 by %c32_i32_99 dim 1 : vector<8x128xf32>, i32 -> vector<8x128xf32>
    %220 = arith.addf %218, %219 : vector<8x128xf32>
    %c0_100 = arith.constant 0 : index
    %c0_101 = arith.constant 0 : index
    %c0_102 = arith.constant 0 : index
    %221 = vector.load %arg1[%c0_100, %c0_101, %c0_102] : memref<2x128x128xf32, #tpu.memory_space<vmem>>, vector<1x128x128xf32>
    %222 = vector.shape_cast %221 : vector<1x128x128xf32> to vector<128x128xf32>
    %cst_103 = arith.constant dense<0.000000e+00> : vector<8x128xf32>
    %223 = tpu.matmul %220, %222, %cst_103 {dimension_numbers = #tpu.dot_dimension_numbers<[1], [0], [0], [1], [0, 0, 1, 1], [], []>} : vector<8x128xf32>, vector<128x128xf32>, vector<8x128xf32> -> vector<8x128xf32>
    %224 = arith.addf %223, %6 : vector<8x128xf32>
    %225 = arith.negf %224 : vector<8x128xf32>
    %226 = math.exp %225 : vector<8x128xf32>
    %cst_104 = arith.constant 1.000000e+00 : f32
    %227 = vector.broadcast %cst_104 : f32 to vector<8x128xf32>
    %228 = arith.addf %227, %226 : vector<8x128xf32>
    %229 = arith.divf %227, %228 : vector<8x128xf32>
    %230 = math.tanh %224 : vector<8x128xf32>
    %c96_i32_105 = arith.constant 96 : i32
    %231 = tpu.dynamic_rotate %229 by %c96_i32_105 dim 1 : vector<8x128xf32>, i32 -> vector<8x128xf32>
    %c64_i32_106 = arith.constant 64 : i32
    %232 = tpu.dynamic_rotate %230 by %c64_i32_106 dim 1 : vector<8x128xf32>, i32 -> vector<8x128xf32>
    %c32_i32_107 = arith.constant 32 : i32
    %233 = tpu.dynamic_rotate %229 by %c32_i32_107 dim 1 : vector<8x128xf32>, i32 -> vector<8x128xf32>
    %234 = arith.mulf %231, %187 : vector<8x128xf32>
    %235 = arith.mulf %229, %232 : vector<8x128xf32>
    %236 = arith.addf %234, %235 : vector<8x128xf32>
    %cst_108 = arith.constant 0.000000e+00 : f32
    %237 = vector.broadcast %cst_108 : f32 to vector<8x128xf32>
    %238 = arith.select %2, %236, %237 : vector<8x128xi1>, vector<8x128xf32>
    %239 = math.tanh %238 : vector<8x128xf32>
    %240 = arith.mulf %233, %239 : vector<8x128xf32>
    %c32_i32_109 = arith.constant 32 : i32
    %241 = tpu.dynamic_rotate %211 by %c32_i32_109 dim 1 : vector<8x128xf32>, i32 -> vector<8x128xf32>
    %242 = arith.addf %240, %241 : vector<8x128xf32>
    %c1_110 = arith.constant 1 : index
    %c0_111 = arith.constant 0 : index
    %c0_112 = arith.constant 0 : index
    %243 = vector.load %arg1[%c1_110, %c0_111, %c0_112] : memref<2x128x128xf32, #tpu.memory_space<vmem>>, vector<1x128x128xf32>
    %244 = vector.shape_cast %243 : vector<1x128x128xf32> to vector<128x128xf32>
    %cst_113 = arith.constant dense<0.000000e+00> : vector<8x128xf32>
    %245 = tpu.matmul %242, %244, %cst_113 {dimension_numbers = #tpu.dot_dimension_numbers<[1], [0], [0], [1], [0, 0, 1, 1], [], []>} : vector<8x128xf32>, vector<128x128xf32>, vector<8x128xf32> -> vector<8x128xf32>
    %246 = arith.addf %245, %10 : vector<8x128xf32>
    %247 = arith.negf %246 : vector<8x128xf32>
    %248 = math.exp %247 : vector<8x128xf32>
    %cst_114 = arith.constant 1.000000e+00 : f32
    %249 = vector.broadcast %cst_114 : f32 to vector<8x128xf32>
    %250 = arith.addf %249, %248 : vector<8x128xf32>
    %251 = arith.divf %249, %250 : vector<8x128xf32>
    %252 = math.tanh %246 : vector<8x128xf32>
    %c96_i32_115 = arith.constant 96 : i32
    %253 = tpu.dynamic_rotate %251 by %c96_i32_115 dim 1 : vector<8x128xf32>, i32 -> vector<8x128xf32>
    %c64_i32_116 = arith.constant 64 : i32
    %254 = tpu.dynamic_rotate %252 by %c64_i32_116 dim 1 : vector<8x128xf32>, i32 -> vector<8x128xf32>
    %c32_i32_117 = arith.constant 32 : i32
    %255 = tpu.dynamic_rotate %251 by %c32_i32_117 dim 1 : vector<8x128xf32>, i32 -> vector<8x128xf32>
    %256 = arith.mulf %253, %209 : vector<8x128xf32>
    %257 = arith.mulf %251, %254 : vector<8x128xf32>
    %258 = arith.addf %256, %257 : vector<8x128xf32>
    %cst_118 = arith.constant 0.000000e+00 : f32
    %259 = vector.broadcast %cst_118 : f32 to vector<8x128xf32>
    %260 = arith.select %2, %258, %259 : vector<8x128xi1>, vector<8x128xf32>
    %261 = math.tanh %260 : vector<8x128xf32>
    %262 = arith.mulf %255, %261 : vector<8x128xf32>
    %c8_i32_119 = arith.constant 8 : i32
    %263 = arith.muli %c4_i32, %c8_i32_119 : i32
    %264 = tpu.assume_multiple %263, 8 : i32
    %265 = arith.index_cast %264 : i32 to index
    %c0_120 = arith.constant 0 : index
    %266 = vector.load %arg8[%265, %c0_120] : memref<64x128xf32, #tpu.memory_space<vmem>>, vector<8x128xf32>
    tpu.vector_store %arg8[%265, %c0_120], %262 {strides = array<i32>} : memref<64x128xf32, #tpu.memory_space<vmem>>, vector<8x128xf32>,
    %c5_i32 = arith.constant 5 : i32
    %267 = arith.index_cast %c5_i32 : i32 to index
    %c0_121 = arith.constant 0 : index
    %c0_122 = arith.constant 0 : index
    %268 = vector.load %arg0[%267, %c0_121, %c0_122] : memref<8x8x128xf32, #tpu.memory_space<vmem>>, vector<1x8x128xf32>
    %269 = vector.shape_cast %268 : vector<1x8x128xf32> to vector<8x128xf32>
    %c32_i32_123 = arith.constant 32 : i32
    %270 = tpu.dynamic_rotate %240 by %c32_i32_123 dim 1 : vector<8x128xf32>, i32 -> vector<8x128xf32>
    %271 = arith.addf %269, %270 : vector<8x128xf32>
    %c0_124 = arith.constant 0 : index
    %c0_125 = arith.constant 0 : index
    %c0_126 = arith.constant 0 : index
    %272 = vector.load %arg1[%c0_124, %c0_125, %c0_126] : memref<2x128x128xf32, #tpu.memory_space<vmem>>, vector<1x128x128xf32>
    %273 = vector.shape_cast %272 : vector<1x128x128xf32> to vector<128x128xf32>
    %cst_127 = arith.constant dense<0.000000e+00> : vector<8x128xf32>
    %274 = tpu.matmul %271, %273, %cst_127 {dimension_numbers = #tpu.dot_dimension_numbers<[1], [0], [0], [1], [0, 0, 1, 1], [], []>} : vector<8x128xf32>, vector<128x128xf32>, vector<8x128xf32> -> vector<8x128xf32>
    %275 = arith.addf %274, %6 : vector<8x128xf32>
    %276 = arith.negf %275 : vector<8x128xf32>
    %277 = math.exp %276 : vector<8x128xf32>
    %cst_128 = arith.constant 1.000000e+00 : f32
    %278 = vector.broadcast %cst_128 : f32 to vector<8x128xf32>
    %279 = arith.addf %278, %277 : vector<8x128xf32>
    %280 = arith.divf %278, %279 : vector<8x128xf32>
    %281 = math.tanh %275 : vector<8x128xf32>
    %c96_i32_129 = arith.constant 96 : i32
    %282 = tpu.dynamic_rotate %280 by %c96_i32_129 dim 1 : vector<8x128xf32>, i32 -> vector<8x128xf32>
    %c64_i32_130 = arith.constant 64 : i32
    %283 = tpu.dynamic_rotate %281 by %c64_i32_130 dim 1 : vector<8x128xf32>, i32 -> vector<8x128xf32>
    %c32_i32_131 = arith.constant 32 : i32
    %284 = tpu.dynamic_rotate %280 by %c32_i32_131 dim 1 : vector<8x128xf32>, i32 -> vector<8x128xf32>
    %285 = arith.mulf %282, %238 : vector<8x128xf32>
    %286 = arith.mulf %280, %283 : vector<8x128xf32>
    %287 = arith.addf %285, %286 : vector<8x128xf32>
    %cst_132 = arith.constant 0.000000e+00 : f32
    %288 = vector.broadcast %cst_132 : f32 to vector<8x128xf32>
    %289 = arith.select %2, %287, %288 : vector<8x128xi1>, vector<8x128xf32>
    %290 = math.tanh %289 : vector<8x128xf32>
    %291 = arith.mulf %284, %290 : vector<8x128xf32>
    %c32_i32_133 = arith.constant 32 : i32
    %292 = tpu.dynamic_rotate %262 by %c32_i32_133 dim 1 : vector<8x128xf32>, i32 -> vector<8x128xf32>
    %293 = arith.addf %291, %292 : vector<8x128xf32>
    %c1_134 = arith.constant 1 : index
    %c0_135 = arith.constant 0 : index
    %c0_136 = arith.constant 0 : index
    %294 = vector.load %arg1[%c1_134, %c0_135, %c0_136] : memref<2x128x128xf32, #tpu.memory_space<vmem>>, vector<1x128x128xf32>
    %295 = vector.shape_cast %294 : vector<1x128x128xf32> to vector<128x128xf32>
    %cst_137 = arith.constant dense<0.000000e+00> : vector<8x128xf32>
    %296 = tpu.matmul %293, %295, %cst_137 {dimension_numbers = #tpu.dot_dimension_numbers<[1], [0], [0], [1], [0, 0, 1, 1], [], []>} : vector<8x128xf32>, vector<128x128xf32>, vector<8x128xf32> -> vector<8x128xf32>
    %297 = arith.addf %296, %10 : vector<8x128xf32>
    %298 = arith.negf %297 : vector<8x128xf32>
    %299 = math.exp %298 : vector<8x128xf32>
    %cst_138 = arith.constant 1.000000e+00 : f32
    %300 = vector.broadcast %cst_138 : f32 to vector<8x128xf32>
    %301 = arith.addf %300, %299 : vector<8x128xf32>
    %302 = arith.divf %300, %301 : vector<8x128xf32>
    %303 = math.tanh %297 : vector<8x128xf32>
    %c96_i32_139 = arith.constant 96 : i32
    %304 = tpu.dynamic_rotate %302 by %c96_i32_139 dim 1 : vector<8x128xf32>, i32 -> vector<8x128xf32>
    %c64_i32_140 = arith.constant 64 : i32
    %305 = tpu.dynamic_rotate %303 by %c64_i32_140 dim 1 : vector<8x128xf32>, i32 -> vector<8x128xf32>
    %c32_i32_141 = arith.constant 32 : i32
    %306 = tpu.dynamic_rotate %302 by %c32_i32_141 dim 1 : vector<8x128xf32>, i32 -> vector<8x128xf32>
    %307 = arith.mulf %304, %260 : vector<8x128xf32>
    %308 = arith.mulf %302, %305 : vector<8x128xf32>
    %309 = arith.addf %307, %308 : vector<8x128xf32>
    %cst_142 = arith.constant 0.000000e+00 : f32
    %310 = vector.broadcast %cst_142 : f32 to vector<8x128xf32>
    %311 = arith.select %2, %309, %310 : vector<8x128xi1>, vector<8x128xf32>
    %312 = math.tanh %311 : vector<8x128xf32>
    %313 = arith.mulf %306, %312 : vector<8x128xf32>
    %c8_i32_143 = arith.constant 8 : i32
    %314 = arith.muli %c5_i32, %c8_i32_143 : i32
    %315 = tpu.assume_multiple %314, 8 : i32
    %316 = arith.index_cast %315 : i32 to index
    %c0_144 = arith.constant 0 : index
    %317 = vector.load %arg8[%316, %c0_144] : memref<64x128xf32, #tpu.memory_space<vmem>>, vector<8x128xf32>
    tpu.vector_store %arg8[%316, %c0_144], %313 {strides = array<i32>} : memref<64x128xf32, #tpu.memory_space<vmem>>, vector<8x128xf32>,
    %c6_i32 = arith.constant 6 : i32
    %318 = arith.index_cast %c6_i32 : i32 to index
    %c0_145 = arith.constant 0 : index
    %c0_146 = arith.constant 0 : index
    %319 = vector.load %arg0[%318, %c0_145, %c0_146] : memref<8x8x128xf32, #tpu.memory_space<vmem>>, vector<1x8x128xf32>
    %320 = vector.shape_cast %319 : vector<1x8x128xf32> to vector<8x128xf32>
    %c32_i32_147 = arith.constant 32 : i32
    %321 = tpu.dynamic_rotate %291 by %c32_i32_147 dim 1 : vector<8x128xf32>, i32 -> vector<8x128xf32>
    %322 = arith.addf %320, %321 : vector<8x128xf32>
    %c0_148 = arith.constant 0 : index
    %c0_149 = arith.constant 0 : index
    %c0_150 = arith.constant 0 : index
    %323 = vector.load %arg1[%c0_148, %c0_149, %c0_150] : memref<2x128x128xf32, #tpu.memory_space<vmem>>, vector<1x128x128xf32>
    %324 = vector.shape_cast %323 : vector<1x128x128xf32> to vector<128x128xf32>
    %cst_151 = arith.constant dense<0.000000e+00> : vector<8x128xf32>
    %325 = tpu.matmul %322, %324, %cst_151 {dimension_numbers = #tpu.dot_dimension_numbers<[1], [0], [0], [1], [0, 0, 1, 1], [], []>} : vector<8x128xf32>, vector<128x128xf32>, vector<8x128xf32> -> vector<8x128xf32>
    %326 = arith.addf %325, %6 : vector<8x128xf32>
    %327 = arith.negf %326 : vector<8x128xf32>
    %328 = math.exp %327 : vector<8x128xf32>
    %cst_152 = arith.constant 1.000000e+00 : f32
    %329 = vector.broadcast %cst_152 : f32 to vector<8x128xf32>
    %330 = arith.addf %329, %328 : vector<8x128xf32>
    %331 = arith.divf %329, %330 : vector<8x128xf32>
    %332 = math.tanh %326 : vector<8x128xf32>
    %c96_i32_153 = arith.constant 96 : i32
    %333 = tpu.dynamic_rotate %331 by %c96_i32_153 dim 1 : vector<8x128xf32>, i32 -> vector<8x128xf32>
    %c64_i32_154 = arith.constant 64 : i32
    %334 = tpu.dynamic_rotate %332 by %c64_i32_154 dim 1 : vector<8x128xf32>, i32 -> vector<8x128xf32>
    %c32_i32_155 = arith.constant 32 : i32
    %335 = tpu.dynamic_rotate %331 by %c32_i32_155 dim 1 : vector<8x128xf32>, i32 -> vector<8x128xf32>
    %336 = arith.mulf %333, %289 : vector<8x128xf32>
    %337 = arith.mulf %331, %334 : vector<8x128xf32>
    %338 = arith.addf %336, %337 : vector<8x128xf32>
    %cst_156 = arith.constant 0.000000e+00 : f32
    %339 = vector.broadcast %cst_156 : f32 to vector<8x128xf32>
    %340 = arith.select %2, %338, %339 : vector<8x128xi1>, vector<8x128xf32>
    %341 = math.tanh %340 : vector<8x128xf32>
    %342 = arith.mulf %335, %341 : vector<8x128xf32>
    %c32_i32_157 = arith.constant 32 : i32
    %343 = tpu.dynamic_rotate %313 by %c32_i32_157 dim 1 : vector<8x128xf32>, i32 -> vector<8x128xf32>
    %344 = arith.addf %342, %343 : vector<8x128xf32>
    %c1_158 = arith.constant 1 : index
    %c0_159 = arith.constant 0 : index
    %c0_160 = arith.constant 0 : index
    %345 = vector.load %arg1[%c1_158, %c0_159, %c0_160] : memref<2x128x128xf32, #tpu.memory_space<vmem>>, vector<1x128x128xf32>
    %346 = vector.shape_cast %345 : vector<1x128x128xf32> to vector<128x128xf32>
    %cst_161 = arith.constant dense<0.000000e+00> : vector<8x128xf32>
    %347 = tpu.matmul %344, %346, %cst_161 {dimension_numbers = #tpu.dot_dimension_numbers<[1], [0], [0], [1], [0, 0, 1, 1], [], []>} : vector<8x128xf32>, vector<128x128xf32>, vector<8x128xf32> -> vector<8x128xf32>
    %348 = arith.addf %347, %10 : vector<8x128xf32>
    %349 = arith.negf %348 : vector<8x128xf32>
    %350 = math.exp %349 : vector<8x128xf32>
    %cst_162 = arith.constant 1.000000e+00 : f32
    %351 = vector.broadcast %cst_162 : f32 to vector<8x128xf32>
    %352 = arith.addf %351, %350 : vector<8x128xf32>
    %353 = arith.divf %351, %352 : vector<8x128xf32>
    %354 = math.tanh %348 : vector<8x128xf32>
    %c96_i32_163 = arith.constant 96 : i32
    %355 = tpu.dynamic_rotate %353 by %c96_i32_163 dim 1 : vector<8x128xf32>, i32 -> vector<8x128xf32>
    %c64_i32_164 = arith.constant 64 : i32
    %356 = tpu.dynamic_rotate %354 by %c64_i32_164 dim 1 : vector<8x128xf32>, i32 -> vector<8x128xf32>
    %c32_i32_165 = arith.constant 32 : i32
    %357 = tpu.dynamic_rotate %353 by %c32_i32_165 dim 1 : vector<8x128xf32>, i32 -> vector<8x128xf32>
    %358 = arith.mulf %355, %311 : vector<8x128xf32>
    %359 = arith.mulf %353, %356 : vector<8x128xf32>
    %360 = arith.addf %358, %359 : vector<8x128xf32>
    %cst_166 = arith.constant 0.000000e+00 : f32
    %361 = vector.broadcast %cst_166 : f32 to vector<8x128xf32>
    %362 = arith.select %2, %360, %361 : vector<8x128xi1>, vector<8x128xf32>
    %363 = math.tanh %362 : vector<8x128xf32>
    %364 = arith.mulf %357, %363 : vector<8x128xf32>
    %c8_i32_167 = arith.constant 8 : i32
    %365 = arith.muli %c6_i32, %c8_i32_167 : i32
    %366 = tpu.assume_multiple %365, 8 : i32
    %367 = arith.index_cast %366 : i32 to index
    %c0_168 = arith.constant 0 : index
    %368 = vector.load %arg8[%367, %c0_168] : memref<64x128xf32, #tpu.memory_space<vmem>>, vector<8x128xf32>
    tpu.vector_store %arg8[%367, %c0_168], %364 {strides = array<i32>} : memref<64x128xf32, #tpu.memory_space<vmem>>, vector<8x128xf32>,
    %c7_i32 = arith.constant 7 : i32
    %369 = arith.index_cast %c7_i32 : i32 to index
    %c0_169 = arith.constant 0 : index
    %c0_170 = arith.constant 0 : index
    %370 = vector.load %arg0[%369, %c0_169, %c0_170] : memref<8x8x128xf32, #tpu.memory_space<vmem>>, vector<1x8x128xf32>
    %371 = vector.shape_cast %370 : vector<1x8x128xf32> to vector<8x128xf32>
    %c32_i32_171 = arith.constant 32 : i32
    %372 = tpu.dynamic_rotate %342 by %c32_i32_171 dim 1 : vector<8x128xf32>, i32 -> vector<8x128xf32>
    %373 = arith.addf %371, %372 : vector<8x128xf32>
    %c0_172 = arith.constant 0 : index
    %c0_173 = arith.constant 0 : index
    %c0_174 = arith.constant 0 : index
    %374 = vector.load %arg1[%c0_172, %c0_173, %c0_174] : memref<2x128x128xf32, #tpu.memory_space<vmem>>, vector<1x128x128xf32>
    %375 = vector.shape_cast %374 : vector<1x128x128xf32> to vector<128x128xf32>
    %cst_175 = arith.constant dense<0.000000e+00> : vector<8x128xf32>
    %376 = tpu.matmul %373, %375, %cst_175 {dimension_numbers = #tpu.dot_dimension_numbers<[1], [0], [0], [1], [0, 0, 1, 1], [], []>} : vector<8x128xf32>, vector<128x128xf32>, vector<8x128xf32> -> vector<8x128xf32>
    %377 = arith.addf %376, %6 : vector<8x128xf32>
    %378 = arith.negf %377 : vector<8x128xf32>
    %379 = math.exp %378 : vector<8x128xf32>
    %cst_176 = arith.constant 1.000000e+00 : f32
    %380 = vector.broadcast %cst_176 : f32 to vector<8x128xf32>
    %381 = arith.addf %380, %379 : vector<8x128xf32>
    %382 = arith.divf %380, %381 : vector<8x128xf32>
    %383 = math.tanh %377 : vector<8x128xf32>
    %c96_i32_177 = arith.constant 96 : i32
    %384 = tpu.dynamic_rotate %382 by %c96_i32_177 dim 1 : vector<8x128xf32>, i32 -> vector<8x128xf32>
    %c64_i32_178 = arith.constant 64 : i32
    %385 = tpu.dynamic_rotate %383 by %c64_i32_178 dim 1 : vector<8x128xf32>, i32 -> vector<8x128xf32>
    %c32_i32_179 = arith.constant 32 : i32
    %386 = tpu.dynamic_rotate %382 by %c32_i32_179 dim 1 : vector<8x128xf32>, i32 -> vector<8x128xf32>
    %387 = arith.mulf %384, %340 : vector<8x128xf32>
    %388 = arith.mulf %382, %385 : vector<8x128xf32>
    %389 = arith.addf %387, %388 : vector<8x128xf32>
    %cst_180 = arith.constant 0.000000e+00 : f32
    %390 = vector.broadcast %cst_180 : f32 to vector<8x128xf32>
    %391 = arith.select %2, %389, %390 : vector<8x128xi1>, vector<8x128xf32>
    %392 = math.tanh %391 : vector<8x128xf32>
    %393 = arith.mulf %386, %392 : vector<8x128xf32>
    %c32_i32_181 = arith.constant 32 : i32
    %394 = tpu.dynamic_rotate %364 by %c32_i32_181 dim 1 : vector<8x128xf32>, i32 -> vector<8x128xf32>
    %395 = arith.addf %393, %394 : vector<8x128xf32>
    %c1_182 = arith.constant 1 : index
    %c0_183 = arith.constant 0 : index
    %c0_184 = arith.constant 0 : index
    %396 = vector.load %arg1[%c1_182, %c0_183, %c0_184] : memref<2x128x128xf32, #tpu.memory_space<vmem>>, vector<1x128x128xf32>
    %397 = vector.shape_cast %396 : vector<1x128x128xf32> to vector<128x128xf32>
    %cst_185 = arith.constant dense<0.000000e+00> : vector<8x128xf32>
    %398 = tpu.matmul %395, %397, %cst_185 {dimension_numbers = #tpu.dot_dimension_numbers<[1], [0], [0], [1], [0, 0, 1, 1], [], []>} : vector<8x128xf32>, vector<128x128xf32>, vector<8x128xf32> -> vector<8x128xf32>
    %399 = arith.addf %398, %10 : vector<8x128xf32>
    %400 = arith.negf %399 : vector<8x128xf32>
    %401 = math.exp %400 : vector<8x128xf32>
    %cst_186 = arith.constant 1.000000e+00 : f32
    %402 = vector.broadcast %cst_186 : f32 to vector<8x128xf32>
    %403 = arith.addf %402, %401 : vector<8x128xf32>
    %404 = arith.divf %402, %403 : vector<8x128xf32>
    %405 = math.tanh %399 : vector<8x128xf32>
    %c96_i32_187 = arith.constant 96 : i32
    %406 = tpu.dynamic_rotate %404 by %c96_i32_187 dim 1 : vector<8x128xf32>, i32 -> vector<8x128xf32>
    %c64_i32_188 = arith.constant 64 : i32
    %407 = tpu.dynamic_rotate %405 by %c64_i32_188 dim 1 : vector<8x128xf32>, i32 -> vector<8x128xf32>
    %c32_i32_189 = arith.constant 32 : i32
    %408 = tpu.dynamic_rotate %404 by %c32_i32_189 dim 1 : vector<8x128xf32>, i32 -> vector<8x128xf32>
    %409 = arith.mulf %406, %362 : vector<8x128xf32>
    %410 = arith.mulf %404, %407 : vector<8x128xf32>
    %411 = arith.addf %409, %410 : vector<8x128xf32>
    %cst_190 = arith.constant 0.000000e+00 : f32
    %412 = vector.broadcast %cst_190 : f32 to vector<8x128xf32>
    %413 = arith.select %2, %411, %412 : vector<8x128xi1>, vector<8x128xf32>
    %414 = math.tanh %413 : vector<8x128xf32>
    %415 = arith.mulf %408, %414 : vector<8x128xf32>
    %c8_i32_191 = arith.constant 8 : i32
    %416 = arith.muli %c7_i32, %c8_i32_191 : i32
    %417 = tpu.assume_multiple %416, 8 : i32
    %418 = arith.index_cast %417 : i32 to index
    %c0_192 = arith.constant 0 : index
    %419 = vector.load %arg8[%418, %c0_192] : memref<64x128xf32, #tpu.memory_space<vmem>>, vector<8x128xf32>
    tpu.vector_store %arg8[%418, %c0_192], %415 {strides = array<i32>} : memref<64x128xf32, #tpu.memory_space<vmem>>, vector<8x128xf32>,
    %c8_i32_193 = arith.constant 8 : i32
    %c0_194 = arith.constant 0 : index
    %c0_195 = arith.constant 0 : index
    %c0_196 = arith.constant 0 : index
    %420 = vector.load %arg6[%c0_194, %c0_195, %c0_196] : memref<2x8x128xf32, #tpu.memory_space<vmem>>, vector<1x8x128xf32>
    %421 = vector.shape_cast %420 : vector<1x8x128xf32> to vector<8x128xf32>
    %422 = vector.shape_cast %393 : vector<8x128xf32> to vector<1x8x128xf32>
    tpu.vector_store %arg6[%c0_194, %c0_195, %c0_196], %422 {strides = array<i32>} : memref<2x8x128xf32, #tpu.memory_space<vmem>>, vector<1x8x128xf32>,
    %c0_197 = arith.constant 0 : index
    %c0_198 = arith.constant 0 : index
    %c0_199 = arith.constant 0 : index
    %423 = vector.load %arg7[%c0_197, %c0_198, %c0_199] : memref<2x8x128xf32, #tpu.memory_space<vmem>>, vector<1x8x128xf32>
    %424 = vector.shape_cast %423 : vector<1x8x128xf32> to vector<8x128xf32>
    %425 = vector.shape_cast %391 : vector<8x128xf32> to vector<1x8x128xf32>
    tpu.vector_store %arg7[%c0_197, %c0_198, %c0_199], %425 {strides = array<i32>} : memref<2x8x128xf32, #tpu.memory_space<vmem>>, vector<1x8x128xf32>,
    %c1_200 = arith.constant 1 : index
    %c0_201 = arith.constant 0 : index
    %c0_202 = arith.constant 0 : index
    %426 = vector.load %arg6[%c1_200, %c0_201, %c0_202] : memref<2x8x128xf32, #tpu.memory_space<vmem>>, vector<1x8x128xf32>
    %427 = vector.shape_cast %426 : vector<1x8x128xf32> to vector<8x128xf32>
    %428 = vector.shape_cast %415 : vector<8x128xf32> to vector<1x8x128xf32>
    tpu.vector_store %arg6[%c1_200, %c0_201, %c0_202], %428 {strides = array<i32>} : memref<2x8x128xf32, #tpu.memory_space<vmem>>, vector<1x8x128xf32>,
    %c1_203 = arith.constant 1 : index
    %c0_204 = arith.constant 0 : index
    %c0_205 = arith.constant 0 : index
    %429 = vector.load %arg7[%c1_203, %c0_204, %c0_205] : memref<2x8x128xf32, #tpu.memory_space<vmem>>, vector<1x8x128xf32>
    %430 = vector.shape_cast %429 : vector<1x8x128xf32> to vector<8x128xf32>
    %431 = vector.shape_cast %413 : vector<8x128xf32> to vector<1x8x128xf32>
    tpu.vector_store %arg7[%c1_203, %c0_204, %c0_205], %431 {strides = array<i32>} : memref<2x8x128xf32, #tpu.memory_space<vmem>>, vector<1x8x128xf32>,
    %c0_206 = arith.constant 0 : index
    %c0_207 = arith.constant 0 : index
    %432 = vector.load %arg8[%c0_206, %c0_207] : memref<64x128xf32, #tpu.memory_space<vmem>>, vector<64x128xf32>
    %c0_208 = arith.constant 0 : index
    %c0_209 = arith.constant 0 : index
    %433 = vector.load %arg3[%c0_208, %c0_209] : memref<128x128xf32, #tpu.memory_space<vmem>>, vector<128x128xf32>
    %cst_210 = arith.constant dense<0.000000e+00> : vector<64x128xf32>
    %434 = tpu.matmul %432, %433, %cst_210 {dimension_numbers = #tpu.dot_dimension_numbers<[1], [0], [0], [1], [0, 0, 1, 1], [], []>} : vector<64x128xf32>, vector<128x128xf32>, vector<64x128xf32> -> vector<64x128xf32>
    %c0_211 = arith.constant 0 : index
    %c0_212 = arith.constant 0 : index
    %435 = vector.load %arg4[%c0_211, %c0_212] : memref<1x128xf32, #tpu.memory_space<vmem>>, vector<1x128xf32>
    %436 = vector.broadcast %435 : vector<1x128xf32> to vector<64x128xf32>
    %437 = arith.addf %434, %436 : vector<64x128xf32>
    %cst_213 = arith.constant dense<0xFF800000> : vector<64xf32>
    %438 = vector.multi_reduction <maximumf>, %437, %cst_213 [1] : vector<64x128xf32> to vector<64xf32>
    %439 = vector.shape_cast %438 : vector<64xf32> to vector<64x1xf32>
    %440 = vector.broadcast %439 : vector<64x1xf32> to vector<64x128xf32>
    %441 = arith.subf %437, %440 : vector<64x128xf32>
    %442 = math.exp %441 : vector<64x128xf32>
    %cst_214 = arith.constant dense<0.000000e+00> : vector<64xf32>
    %443 = vector.multi_reduction <add>, %442, %cst_214 [1] : vector<64x128xf32> to vector<64xf32>
    %444 = vector.shape_cast %443 : vector<64xf32> to vector<64x1xf32>
    %445 = math.log %444 : vector<64x1xf32>
    %446 = arith.addf %439, %445 : vector<64x1xf32>
    %447 = vector.broadcast %446 : vector<64x1xf32> to vector<64x128xf32>
    %448 = arith.subf %437, %447 : vector<64x128xf32>
    %c0_215 = arith.constant 0 : index
    %c0_216 = arith.constant 0 : index
    %449 = vector.load %arg5[%c0_215, %c0_216] : memref<64x128xf32, #tpu.memory_space<vmem>>, vector<64x128xf32>
    tpu.vector_store %arg5[%c0_215, %c0_216], %448 {strides = array<i32>} : memref<64x128xf32, #tpu.memory_space<vmem>>, vector<64x128xf32>,
    return
  }
}

</mosaic_0001>

<llo_original>
// kernel: pos_tagger_forward.1
$region0: #{pos_tagger_forward.1}
  #allocation0 [shape = 'u32[]', space=smem, size = 0x4, offset = 0x4, fixed_abs, tag = 'smem constant byte address 0x4 - core index']
  #allocation1 [shape = 'u32[144,128]{1,0:T(1,128)}', space=vmem, size = 0x12000, scoped, tag = 'internal scratch']
  #allocation2 [shape = 'f32[64,128]{1,0:T(8,128)}', space=vmem, size = 0x8000, scoped, tag = 'scratch operand']
  %s0 = inlined_call_operand.vmem [shape: f32[8,8,128], index: 0, kind: input, shape index: {}]
  %s1 = inlined_call_operand.vmem [shape: f32[2,128,128], index: 1, kind: input, shape index: {}]
  %s2 = inlined_call_operand.vmem [shape: f32[2,1,128], index: 2, kind: input, shape index: {}]
  %s3 = inlined_call_operand.hbm [shape: f32[128,128], index: 3, kind: input, shape index: {}]
  %s4 = inlined_call_operand.vmem [shape: f32[1,128], index: 4, kind: input, shape index: {}]
  %s5 = inlined_call_operand.vmem [shape: f32[64,128], index: 5, kind: output, shape index: {0}]
  %s6 = inlined_call_operand.vmem [shape: f32[2,8,128], index: 6, kind: output, shape index: {1}]
  %s7 = inlined_call_operand.vmem [shape: f32[2,8,128], index: 7, kind: output, shape index: {2}]
  %8 = xla_tuple %s5, %s6, %s7
  %s9 = sld [smem:[#allocation0]]
  $region50: #{pos_tagger_forward.1} parent=0
    _
  %s11 = ssub.s32 1, %s9
  %s12 = scalar_select 0, %s11, %s9
  $region1: #{pos_tagger_forward.1} parent=0
    #allocation3 [shape = 'u8[65536]{0}', space=vmem, size = 0x10000, scoped, tag = 'input window, operand 3, single buffered']
    #allocation4 [shape = 's32[1]{0}', space=sflag, size = 0x4, scoped, tag = 'scoped memory for pos_tagger_forward.1']
    %13 = vsyncpa [#allocation4], 0
    // Predicated region
    $region2: #{pos_tagger_forward.1} parent=1 // pred_check
      _
    $region3: #{pos_tagger_forward.1} parent=1 // pred_check_branch
      %15 = sbr.rel (0) target = $region5
    $region4: #{pos_tagger_forward.1} parent=1 // pred_region
      _
    $region5: #{pos_tagger_forward.1} parent=1 // pred_fallthru
      _
    // Predicated region
    $region6: #{pos_tagger_forward.1} parent=1 // pred_check
      _
    $region7: #{pos_tagger_forward.1} parent=1 // pred_check_branch
      %17 = sbr.rel (0) target = $region9
    $region8: #{pos_tagger_forward.1} parent=1 // pred_region
      _
    $region9: #{pos_tagger_forward.1} parent=1 // pred_fallthru
      _
    // Predicated region
    $region10: #{pos_tagger_forward.1} parent=1 // pred_check
      _
    $region11: #{pos_tagger_forward.1} parent=1 // pred_check_branch
      %19 = sbr.rel (0) target = $region13
    $region12: #{pos_tagger_forward.1} parent=1 // pred_region
      _
    $region13: #{pos_tagger_forward.1} parent=1 // pred_fallthru
      _
    // Predicated region
    $region14: #{pos_tagger_forward.1} parent=1 // pred_check
      _
    $region15: #{pos_tagger_forward.1} parent=1 // pred_check_branch
      %21 = sbr.rel (0) target = $region17
    $region16: #{pos_tagger_forward.1} parent=1 // pred_region
      %s23 = ssub.s32 2048, 2048
      %24 = vsyncadd [#allocation4], %s23
      %s25 = sshll.u32 [#allocation3], 4
      %s26 = int_to_ptr.vmem [resolvable:$true] %s25
      %31 = dma.hbm_to_vmem [thread:$0]  %s3, 2048, %s26, [#allocation4], 128, 128, 8
    $region17: #{pos_tagger_forward.1} parent=1 // pred_fallthru
      _
    // Predicated region
    $region18: #{pos_tagger_forward.1} parent=1 // pred_check
      _
    $region19: #{pos_tagger_forward.1} parent=1 // pred_check_branch
      %33 = sbr.rel (0) target = $region21
    $region20: #{pos_tagger_forward.1} parent=1 // pred_region
      _
    $region21: #{pos_tagger_forward.1} parent=1 // pred_fallthru
      _
    // Predicated region
    $region22: #{pos_tagger_forward.1} parent=1 // pred_check
      _
    $region23: #{pos_tagger_forward.1} parent=1 // pred_check_branch
      %35 = sbr.rel (0) target = $region25
    $region24: #{pos_tagger_forward.1} parent=1 // pred_region
      %36 = dma.done [#allocation4], 2048
    $region25: #{pos_tagger_forward.1} parent=1 // pred_fallthru
      _
    %v37 = vlaneseq
    %v38 = vand.u32 %v37, 127
    %vm39 = vcmp.lt.s32.totalorder %v38, 32
    %v40 = vld [vmem:[%s2] sm:$0x1]
    %v42 = vlaneseq
    %v43 = vshrl.u32 %v42, 7
    %v44 = vsub.s32 0, %v43
    %v45 = vrot.slane %v40, %v44
    %s47 = scalar_lea.vmem %s2, 1
    %v48 = vld [vmem:[%s47] sm:$0x1]
    %v50 = vlaneseq
    %v51 = vshrl.u32 %v50, 7
    %v52 = vsub.s32 0, %v51
    %v53 = vrot.slane %v48, %v52
    %v55 = vld [vmem:[%s0] sm:$0xff]
    %56 = vrot.lane.b32.xlu0 0.0, 32
    %v57 = vpop.permute.xlu0 %56
    %v58 = vadd.f32 %v55, %v57
    %v59 = vld [vmem:[%s1] sm:$0xff]
    %v60 = vld [vmem:[%s1 + $0x8] sm:$0xff]
    %v61 = vld [vmem:[%s1 + $0x10] sm:$0xff]
    %v62 = vld [vmem:[%s1 + $0x18] sm:$0xff]
    %v63 = vld [vmem:[%s1 + $0x20] sm:$0xff]
    %v64 = vld [vmem:[%s1 + $0x28] sm:$0xff]
    %v65 = vld [vmem:[%s1 + $0x30] sm:$0xff]
    %v66 = vld [vmem:[%s1 + $0x38] sm:$0xff]
    %v67 = vld [vmem:[%s1 + $0x40] sm:$0xff]
    %v68 = vld [vmem:[%s1 + $0x48] sm:$0xff]
    %v69 = vld [vmem:[%s1 + $0x50] sm:$0xff]
    %v70 = vld [vmem:[%s1 + $0x58] sm:$0xff]
    %v71 = vld [vmem:[%s1 + $0x60] sm:$0xff]
    %v72 = vld [vmem:[%s1 + $0x68] sm:$0xff]
    %v73 = vld [vmem:[%s1 + $0x70] sm:$0xff]
    %v74 = vld [vmem:[%s1 + $0x78] sm:$0xff]
    %75 = vmatprep.subr.mxu0 0.0
    %76 = vmatpush1.msra.mxu0 %v59
    %77 = vmatprep.subr.mxu0 0.0
    %78 = vmatpush1.msra.mxu0 %v60
    %79 = vmatprep.subr.mxu0 0.0
    %80 = vmatpush1.msra.mxu0 %v61
    %81 = vmatprep.subr.mxu0 0.0
    %82 = vmatpush1.msra.mxu0 %v62
    %83 = vmatprep.subr.mxu0 0.0
    %84 = vmatpush1.msra.mxu0 %v63
    %85 = vmatprep.subr.mxu0 0.0
    %86 = vmatpush1.msra.mxu0 %v64
    %87 = vmatprep.subr.mxu0 0.0
    %88 = vmatpush1.msra.mxu0 %v65
    %89 = vmatprep.subr.mxu0 0.0
    %90 = vmatpush1.msra.mxu0 %v66
    %91 = vmatprep.subr.mxu0 0.0
    %92 = vmatpush1.msra.mxu0 %v67
    %93 = vmatprep.subr.mxu0 0.0
    %94 = vmatpush1.msra.mxu0 %v68
    %95 = vmatprep.subr.mxu0 0.0
    %96 = vmatpush1.msra.mxu0 %v69
    %97 = vmatprep.subr.mxu0 0.0
    %98 = vmatpush1.msra.mxu0 %v70
    %99 = vmatprep.subr.mxu0 0.0
    %100 = vmatpush1.msra.mxu0 %v71
    %101 = vmatprep.subr.mxu0 0.0
    %102 = vmatpush1.msra.mxu0 %v72
    %103 = vmatprep.subr.mxu0 0.0
    %104 = vmatpush1.msra.mxu0 %v73
    %105 = vmatprep.subr.mxu0 0.0
    %106 = vmatpush1.msra.mxu0 %v74
    %107 = vmatprep.subr.mxu0 0.0
    %108 = vmatpush1.msra.mxu0 0.0
    %109 = vmatprep.subr.mxu0 0.0
    %110 = vmatpush1.msra.mxu0 0.0
    %111 = vmatprep.subr.mxu0 0.0
    %112 = vmatpush1.msra.mxu0 0.0
    %113 = vmatprep.subr.mxu0 0.0
    %114 = vmatpush1.msra.mxu0 0.0
    %115 = vmatprep.subr.mxu0 0.0
    %116 = vmatpush1.msra.mxu0 0.0
    %117 = vmatprep.subr.mxu0 0.0
    %118 = vmatpush1.msra.mxu0 0.0
    %119 = vmatprep.subr.mxu0 0.0
    %120 = vmatpush1.msra.mxu0 0.0
    %121 = vmatprep.subr.mxu0 0.0
    %122 = vmatpush1.msra.mxu0 0.0
    %123 = vmatprep.subr.mxu0 0.0
    %124 = vmatpush1.msra.mxu0 0.0
    %125 = vmatprep.subr.mxu0 0.0
    %126 = vmatpush1.msra.mxu0 0.0
    %127 = vmatprep.subr.mxu0 0.0
    %128 = vmatpush1.msra.mxu0 0.0
    %129 = vmatprep.subr.mxu0 0.0
    %130 = vmatpush1.msra.mxu0 0.0
    %131 = vmatprep.subr.mxu0 0.0
    %132 = vmatpush1.msra.mxu0 0.0
    %133 = vmatprep.subr.mxu0 0.0
    %134 = vmatpush1.msra.mxu0 0.0
    %135 = vmatprep.subr.mxu0 0.0
    %136 = vmatpush1.msra.mxu0 0.0
    %137 = vmatprep.subr.mxu0 0.0
    %138 = vmatpush1.msra.mxu0 0.0
    %139 = vmatprep.mubr.f32.mxu0 0.0
    %140 = vmatmul.mubr.f32.gmra.mrb[0].mxu0 %v58
    %v141 = vpop.f32.mrb[0].mxu0
    %v142 = vadd.f32 %v45, %v141
    %v143 = vpop.f32.mrb[0].mxu0
    %144 = vdwg.mxu0
    %v145 = vxor.u32 %v142, 2147483648
    %v146 = vmul.f32 %v145, 1.442695
    %v147 = vpow.pop %v146
    %v148 = vadd.f32 %v147, 1.0
    %v149 = vrcp.pop %v148
    %v150 = vmul.f32 1.0, %v149
    %v151 = vtanh.pop %v142
    %152 = vrot.lane.b32.xlu0 %v150, 96
    %v153 = vpop.permute.xlu0 %152
    %154 = vrot.lane.b32.xlu0 %v151, 64
    %v155 = vpop.permute.xlu0 %154
    %156 = vrot.lane.b32.xlu0 %v150, 32
    %v157 = vpop.permute.xlu0 %156
    %v158 = vmul.f32 %v153, 0.0
    %v159 = vmul.f32 %v150, %v155
    %v160 = vadd.f32 %v158, %v159
    %v161 = vsel %vm39, %v160, 0.0
    %v162 = vtanh.pop %v161
    %v163 = vmul.f32 %v157, %v162
    %v164 = vadd.f32 %v163, %v57
    %s165 = scalar_lea.vmem %s1, 128
    %v166 = vld [vmem:[%s165] sm:$0xff]
    %v167 = vld [vmem:[%s165 + $0x8] sm:$0xff]
    %v168 = vld [vmem:[%s165 + $0x10] sm:$0xff]
    %v169 = vld [vmem:[%s165 + $0x18] sm:$0xff]
    %v170 = vld [vmem:[%s165 + $0x20] sm:$0xff]
    %v171 = vld [vmem:[%s165 + $0x28] sm:$0xff]
    %v172 = vld [vmem:[%s165 + $0x30] sm:$0xff]
    %v173 = vld [vmem:[%s165 + $0x38] sm:$0xff]
    %v174 = vld [vmem:[%s165 + $0x40] sm:$0xff]
    %v175 = vld [vmem:[%s165 + $0x48] sm:$0xff]
    %v176 = vld [vmem:[%s165 + $0x50] sm:$0xff]
    %v177 = vld [vmem:[%s165 + $0x58] sm:$0xff]
    %v178 = vld [vmem:[%s165 + $0x60] sm:$0xff]
    %v179 = vld [vmem:[%s165 + $0x68] sm:$0xff]
    %v180 = vld [vmem:[%s165 + $0x70] sm:$0xff]
    %v181 = vld [vmem:[%s165 + $0x78] sm:$0xff]
    %182 = vmatprep.subr.mxu0 0.0
    %183 = vmatpush1.msra.mxu0 %v166
    %184 = vmatprep.subr.mxu0 0.0
    %185 = vmatpush1.msra.mxu0 %v167
    %186 = vmatprep.subr.mxu0 0.0
    %187 = vmatpush1.msra.mxu0 %v168
    %188 = vmatprep.subr.mxu0 0.0
    %189 = vmatpush1.msra.mxu0 %v169
    %190 = vmatprep.subr.mxu0 0.0
    %191 = vmatpush1.msra.mxu0 %v170
    %192 = vmatprep.subr.mxu0 0.0
    %193 = vmatpush1.msra.mxu0 %v171
    %194 = vmatprep.subr.mxu0 0.0
    %195 = vmatpush1.msra.mxu0 %v172
    %196 = vmatprep.subr.mxu0 0.0
    %197 = vmatpush1.msra.mxu0 %v173
    %198 = vmatprep.subr.mxu0 0.0
    %199 = vmatpush1.msra.mxu0 %v174
    %200 = vmatprep.subr.mxu0 0.0
    %201 = vmatpush1.msra.mxu0 %v175
    %202 = vmatprep.subr.mxu0 0.0
    %203 = vmatpush1.msra.mxu0 %v176
    %204 = vmatprep.subr.mxu0 0.0
    %205 = vmatpush1.msra.mxu0 %v177
    %206 = vmatprep.subr.mxu0 0.0
    %207 = vmatpush1.msra.mxu0 %v178
    %208 = vmatprep.subr.mxu0 0.0
    %209 = vmatpush1.msra.mxu0 %v179
    %210 = vmatprep.subr.mxu0 0.0
    %211 = vmatpush1.msra.mxu0 %v180
    %212 = vmatprep.subr.mxu0 0.0
    %213 = vmatpush1.msra.mxu0 %v181
    %214 = vmatprep.subr.mxu0 0.0
    %215 = vmatpush1.msra.mxu0 0.0
    %216 = vmatprep.subr.mxu0 0.0
    %217 = vmatpush1.msra.mxu0 0.0
    %218 = vmatprep.subr.mxu0 0.0
    %219 = vmatpush1.msra.mxu0 0.0
    %220 = vmatprep.subr.mxu0 0.0
    %221 = vmatpush1.msra.mxu0 0.0
    %222 = vmatprep.subr.mxu0 0.0
    %223 = vmatpush1.msra.mxu0 0.0
    %224 = vmatprep.subr.mxu0 0.0
    %225 = vmatpush1.msra.mxu0 0.0
    %226 = vmatprep.subr.mxu0 0.0
    %227 = vmatpush1.msra.mxu0 0.0
    %228 = vmatprep.subr.mxu0 0.0
    %229 = vmatpush1.msra.mxu0 0.0
    %230 = vmatprep.subr.mxu0 0.0
    %231 = vmatpush1.msra.mxu0 0.0
    %232 = vmatprep.subr.mxu0 0.0
    %233 = vmatpush1.msra.mxu0 0.0
    %234 = vmatprep.subr.mxu0 0.0
    %235 = vmatpush1.msra.mxu0 0.0
    %236 = vmatprep.subr.mxu0 0.0
    %237 = vmatpush1.msra.mxu0 0.0
    %238 = vmatprep.subr.mxu0 0.0
    %239 = vmatpush1.msra.mxu0 0.0
    %240 = vmatprep.subr.mxu0 0.0
    %241 = vmatpush1.msra.mxu0 0.0
    %242 = vmatprep.subr.mxu0 0.0
    %243 = vmatpush1.msra.mxu0 0.0
    %244 = vmatprep.subr.mxu0 0.0
    %245 = vmatpush1.msra.mxu0 0.0
    %246 = vmatprep.mubr.f32.mxu0 0.0
    %247 = vmatmul.mubr.f32.gmra.mrb[0].mxu0 %v164
    %v248 = vpop.f32.mrb[0].mxu0
    %v249 = vadd.f32 %v53, %v248
    %v250 = vpop.f32.mrb[0].mxu0
    %251 = vdwg.mxu0
    %v252 = vxor.u32 %v249, 2147483648
    %v253 = vmul.f32 %v252, 1.442695
    %v254 = vpow.pop %v253
    %v255 = vadd.f32 %v254, 1.0
    %v256 = vrcp.pop %v255
    %v257 = vmul.f32 1.0, %v256
    %v258 = vtanh.pop %v249
    %259 = vrot.lane.b32.xlu0 %v257, 96
    %v260 = vpop.permute.xlu0 %259
    %261 = vrot.lane.b32.xlu0 %v258, 64
    %v262 = vpop.permute.xlu0 %261
    %263 = vrot.lane.b32.xlu0 %v257, 32
    %v264 = vpop.permute.xlu0 %263
    %v265 = vmul.f32 %v260, 0.0
    %v266 = vmul.f32 %v257, %v262
    %v267 = vadd.f32 %v265, %v266
    %v268 = vsel %vm39, %v267, 0.0
    %v269 = vtanh.pop %v268
    %v270 = vmul.f32 %v264, %v269
    %271 = vst [vmem:[#allocation2] sm:$0xff] %v270
    %s272 = scalar_lea.vmem %s0, 8
    %v273 = vld [vmem:[%s272] sm:$0xff]
    %274 = vrot.lane.b32.xlu0 %v163, 32
    %v275 = vpop.permute.xlu0 %274
    %v276 = vadd.f32 %v273, %v275
    %v277 = vld [vmem:[%s1] sm:$0xff]
    %v278 = vld [vmem:[%s1 + $0x8] sm:$0xff]
    %v279 = vld [vmem:[%s1 + $0x10] sm:$0xff]
    %v280 = vld [vmem:[%s1 + $0x18] sm:$0xff]
    %v281 = vld [vmem:[%s1 + $0x20] sm:$0xff]
    %v282 = vld [vmem:[%s1 + $0x28] sm:$0xff]
    %v283 = vld [vmem:[%s1 + $0x30] sm:$0xff]
    %v284 = vld [vmem:[%s1 + $0x38] sm:$0xff]
    %v285 = vld [vmem:[%s1 + $0x40] sm:$0xff]
    %v286 = vld [vmem:[%s1 + $0x48] sm:$0xff]
    %v287 = vld [vmem:[%s1 + $0x50] sm:$0xff]
    %v288 = vld [vmem:[%s1 + $0x58] sm:$0xff]
    %v289 = vld [vmem:[%s1 + $0x60] sm:$0xff]
    %v290 = vld [vmem:[%s1 + $0x68] sm:$0xff]
    %v291 = vld [vmem:[%s1 + $0x70] sm:$0xff]
    %v292 = vld [vmem:[%s1 + $0x78] sm:$0xff]
    %293 = vmatprep.subr.mxu0 0.0
    %294 = vmatpush1.msra.mxu0 %v277
    %295 = vmatprep.subr.mxu0 0.0
    %296 = vmatpush1.msra.mxu0 %v278
    %297 = vmatprep.subr.mxu0 0.0
    %298 = vmatpush1.msra.mxu0 %v279
    %299 = vmatprep.subr.mxu0 0.0
    %300 = vmatpush1.msra.mxu0 %v280
    %301 = vmatprep.subr.mxu0 0.0
    %302 = vmatpush1.msra.mxu0 %v281
    %303 = vmatprep.subr.mxu0 0.0
    %304 = vmatpush1.msra.mxu0 %v282
    %305 = vmatprep.subr.mxu0 0.0
    %306 = vmatpush1.msra.mxu0 %v283
    %307 = vmatprep.subr.mxu0 0.0
    %308 = vmatpush1.msra.mxu0 %v284
    %309 = vmatprep.subr.mxu0 0.0
    %310 = vmatpush1.msra.mxu0 %v285
    %311 = vmatprep.subr.mxu0 0.0
    %312 = vmatpush1.msra.mxu0 %v286
    %313 = vmatprep.subr.mxu0 0.0
    %314 = vmatpush1.msra.mxu0 %v287
    %315 = vmatprep.subr.mxu0 0.0
    %316 = vmatpush1.msra.mxu0 %v288
    %317 = vmatprep.subr.mxu0 0.0
    %318 = vmatpush1.msra.mxu0 %v289
    %319 = vmatprep.subr.mxu0 0.0
    %320 = vmatpush1.msra.mxu0 %v290
    %321 = vmatprep.subr.mxu0 0.0
    %322 = vmatpush1.msra.mxu0 %v291
    %323 = vmatprep.subr.mxu0 0.0
    %324 = vmatpush1.msra.mxu0 %v292
    %325 = vmatprep.subr.mxu0 0.0
    %326 = vmatpush1.msra.mxu0 0.0
    %327 = vmatprep.subr.mxu0 0.0
    %328 = vmatpush1.msra.mxu0 0.0
    %329 = vmatprep.subr.mxu0 0.0
    %330 = vmatpush1.msra.mxu0 0.0
    %331 = vmatprep.subr.mxu0 0.0
    %332 = vmatpush1.msra.mxu0 0.0
    %333 = vmatprep.subr.mxu0 0.0
    %334 = vmatpush1.msra.mxu0 0.0
    %335 = vmatprep.subr.mxu0 0.0
    %336 = vmatpush1.msra.mxu0 0.0
    %337 = vmatprep.subr.mxu0 0.0
    %338 = vmatpush1.msra.mxu0 0.0
    %339 = vmatprep.subr.mxu0 0.0
    %340 = vmatpush1.msra.mxu0 0.0
    %341 = vmatprep.subr.mxu0 0.0
    %342 = vmatpush1.msra.mxu0 0.0
    %343 = vmatprep.subr.mxu0 0.0
    %344 = vmatpush1.msra.mxu0 0.0
    %345 = vmatprep.subr.mxu0 0.0
    %346 = vmatpush1.msra.mxu0 0.0
    %347 = vmatprep.subr.mxu0 0.0
    %348 = vmatpush1.msra.mxu0 0.0
    %349 = vmatprep.subr.mxu0 0.0
    %350 = vmatpush1.msra.mxu0 0.0
    %351 = vmatprep.subr.mxu0 0.0
    %352 = vmatpush1.msra.mxu0 0.0
    %353 = vmatprep.subr.mxu0 0.0
    %354 = vmatpush1.msra.mxu0 0.0
    %355 = vmatprep.subr.mxu0 0.0
    %356 = vmatpush1.msra.mxu0 0.0
    %357 = vmatprep.mubr.f32.mxu0 0.0
    %358 = vmatmul.mubr.f32.gmra.mrb[0].mxu0 %v276
    %v359 = vpop.f32.mrb[0].mxu0
    %v360 = vadd.f32 %v45, %v359
    %v361 = vpop.f32.mrb[0].mxu0
    %362 = vdwg.mxu0
    %v363 = vxor.u32 %v360, 2147483648
    %v364 = vmul.f32 %v363, 1.442695
    %v365 = vpow.pop %v364
    %v366 = vadd.f32 %v365, 1.0
    %v367 = vrcp.pop %v366
    %v368 = vmul.f32 1.0, %v367
    %v369 = vtanh.pop %v360
    %370 = vrot.lane.b32.xlu0 %v368, 96
    %v371 = vpop.permute.xlu0 %370
    %372 = vrot.lane.b32.xlu0 %v369, 64
    %v373 = vpop.permute.xlu0 %372
    %374 = vrot.lane.b32.xlu0 %v368, 32
    %v375 = vpop.permute.xlu0 %374
    %v376 = vmul.f32 %v371, %v161
    %v377 = vmul.f32 %v368, %v373
    %v378 = vadd.f32 %v376, %v377
    %v379 = vsel %vm39, %v378, 0.0
    %v380 = vtanh.pop %v379
    %v381 = vmul.f32 %v375, %v380
    %382 = vrot.lane.b32.xlu0 %v270, 32
    %v383 = vpop.permute.xlu0 %382
    %v384 = vadd.f32 %v381, %v383
    %v385 = vld [vmem:[%s165] sm:$0xff]
    %v386 = vld [vmem:[%s165 + $0x8] sm:$0xff]
    %v387 = vld [vmem:[%s165 + $0x10] sm:$0xff]
    %v388 = vld [vmem:[%s165 + $0x18] sm:$0xff]
    %v389 = vld [vmem:[%s165 + $0x20] sm:$0xff]
    %v390 = vld [vmem:[%s165 + $0x28] sm:$0xff]
    %v391 = vld [vmem:[%s165 + $0x30] sm:$0xff]
    %v392 = vld [vmem:[%s165 + $0x38] sm:$0xff]
    %v393 = vld [vmem:[%s165 + $0x40] sm:$0xff]
    %v394 = vld [vmem:[%s165 + $0x48] sm:$0xff]
    %v395 = vld [vmem:[%s165 + $0x50] sm:$0xff]
    %v396 = vld [vmem:[%s165 + $0x58] sm:$0xff]
    %v397 = vld [vmem:[%s165 + $0x60] sm:$0xff]
    %v398 = vld [vmem:[%s165 + $0x68] sm:$0xff]
    %v399 = vld [vmem:[%s165 + $0x70] sm:$0xff]
    %v400 = vld [vmem:[%s165 + $0x78] sm:$0xff]
    %401 = vmatprep.subr.mxu0 0.0
    %402 = vmatpush1.msra.mxu0 %v385
    %403 = vmatprep.subr.mxu0 0.0
    %404 = vmatpush1.msra.mxu0 %v386
    %405 = vmatprep.subr.mxu0 0.0
    %406 = vmatpush1.msra.mxu0 %v387
    %407 = vmatprep.subr.mxu0 0.0
    %408 = vmatpush1.msra.mxu0 %v388
    %409 = vmatprep.subr.mxu0 0.0
    %410 = vmatpush1.msra.mxu0 %v389
    %411 = vmatprep.subr.mxu0 0.0
    %412 = vmatpush1.msra.mxu0 %v390
    %413 = vmatprep.subr.mxu0 0.0
    %414 = vmatpush1.msra.mxu0 %v391
    %415 = vmatprep.subr.mxu0 0.0
    %416 = vmatpush1.msra.mxu0 %v392
    %417 = vmatprep.subr.mxu0 0.0
    %418 = vmatpush1.msra.mxu0 %v393
    %419 = vmatprep.subr.mxu0 0.0
    %420 = vmatpush1.msra.mxu0 %v394
    %421 = vmatprep.subr.mxu0 0.0
    %422 = vmatpush1.msra.mxu0 %v395
    %423 = vmatprep.subr.mxu0 0.0
    %424 = vmatpush1.msra.mxu0 %v396
    %425 = vmatprep.subr.mxu0 0.0
    %426 = vmatpush1.msra.mxu0 %v397
    %427 = vmatprep.subr.mxu0 0.0
    %428 = vmatpush1.msra.mxu0 %v398
    %429 = vmatprep.subr.mxu0 0.0
    %430 = vmatpush1.msra.mxu0 %v399
    %431 = vmatprep.subr.mxu0 0.0
    %432 = vmatpush1.msra.mxu0 %v400
    %433 = vmatprep.subr.mxu0 0.0
    %434 = vmatpush1.msra.mxu0 0.0
    %435 = vmatprep.subr.mxu0 0.0
    %436 = vmatpush1.msra.mxu0 0.0
    %437 = vmatprep.subr.mxu0 0.0
    %438 = vmatpush1.msra.mxu0 0.0
    %439 = vmatprep.subr.mxu0 0.0
    %440 = vmatpush1.msra.mxu0 0.0
    %441 = vmatprep.subr.mxu0 0.0
    %442 = vmatpush1.msra.mxu0 0.0
    %443 = vmatprep.subr.mxu0 0.0
    %444 = vmatpush1.msra.mxu0 0.0
    %445 = vmatprep.subr.mxu0 0.0
    %446 = vmatpush1.msra.mxu0 0.0
    %447 = vmatprep.subr.mxu0 0.0
    %448 = vmatpush1.msra.mxu0 0.0
    %449 = vmatprep.subr.mxu0 0.0
    %450 = vmatpush1.msra.mxu0 0.0
    %451 = vmatprep.subr.mxu0 0.0
    %452 = vmatpush1.msra.mxu0 0.0
    %453 = vmatprep.subr.mxu0 0.0
    %454 = vmatpush1.msra.mxu0 0.0
    %455 = vmatprep.subr.mxu0 0.0
    %456 = vmatpush1.msra.mxu0 0.0
    %457 = vmatprep.subr.mxu0 0.0
    %458 = vmatpush1.msra.mxu0 0.0
    %459 = vmatprep.subr.mxu0 0.0
    %460 = vmatpush1.msra.mxu0 0.0
    %461 = vmatprep.subr.mxu0 0.0
    %462 = vmatpush1.msra.mxu0 0.0
    %463 = vmatprep.subr.mxu0 0.0
    %464 = vmatpush1.msra.mxu0 0.0
    %465 = vmatprep.mubr.f32.mxu0 0.0
    %466 = vmatmul.mubr.f32.gmra.mrb[0].mxu0 %v384
    %v467 = vpop.f32.mrb[0].mxu0
    %v468 = vadd.f32 %v53, %v467
    %v469 = vpop.f32.mrb[0].mxu0
    %470 = vdwg.mxu0
    %v471 = vxor.u32 %v468, 2147483648
    %v472 = vmul.f32 %v471, 1.442695
    %v473 = vpow.pop %v472
    %v474 = vadd.f32 %v473, 1.0
    %v475 = vrcp.pop %v474
    %v476 = vmul.f32 1.0, %v475
    %v477 = vtanh.pop %v468
    %478 = vrot.lane.b32.xlu0 %v476, 96
    %v479 = vpop.permute.xlu0 %478
    %480 = vrot.lane.b32.xlu0 %v477, 64
    %v481 = vpop.permute.xlu0 %480
    %482 = vrot.lane.b32.xlu0 %v476, 32
    %v483 = vpop.permute.xlu0 %482
    %v484 = vmul.f32 %v479, %v268
    %v485 = vmul.f32 %v476, %v481
    %v486 = vadd.f32 %v484, %v485
    %v487 = vsel %vm39, %v486, 0.0
    %v488 = vtanh.pop %v487
    %v489 = vmul.f32 %v483, %v488
    %s490 = scalar_lea.vmem [#allocation2], 8
    %491 = vst [vmem:[%s490] sm:$0xff] %v489
    %s492 = scalar_lea.vmem %s0, 16
    %v493 = vld [vmem:[%s492] sm:$0xff]
    %494 = vrot.lane.b32.xlu0 %v381, 32
    %v495 = vpop.permute.xlu0 %494
    %v496 = vadd.f32 %v493, %v495
    %v497 = vld [vmem:[%s1] sm:$0xff]
    %v498 = vld [vmem:[%s1 + $0x8] sm:$0xff]
    %v499 = vld [vmem:[%s1 + $0x10] sm:$0xff]
    %v500 = vld [vmem:[%s1 + $0x18] sm:$0xff]
    %v501 = vld [vmem:[%s1 + $0x20] sm:$0xff]
    %v502 = vld [vmem:[%s1 + $0x28] sm:$0xff]
    %v503 = vld [vmem:[%s1 + $0x30] sm:$0xff]
    %v504 = vld [vmem:[%s1 + $0x38] sm:$0xff]
    %v505 = vld [vmem:[%s1 + $0x40] sm:$0xff]
    %v506 = vld [vmem:[%s1 + $0x48] sm:$0xff]
    %v507 = vld [vmem:[%s1 + $0x50] sm:$0xff]
    %v508 = vld [vmem:[%s1 + $0x58] sm:$0xff]
    %v509 = vld [vmem:[%s1 + $0x60] sm:$0xff]
    %v510 = vld [vmem:[%s1 + $0x68] sm:$0xff]
    %v511 = vld [vmem:[%s1 + $0x70] sm:$0xff]
    %v512 = vld [vmem:[%s1 + $0x78] sm:$0xff]
    %513 = vmatprep.subr.mxu0 0.0
    %514 = vmatpush1.msra.mxu0 %v497
    %515 = vmatprep.subr.mxu0 0.0
    %516 = vmatpush1.msra.mxu0 %v498
    %517 = vmatprep.subr.mxu0 0.0
    %518 = vmatpush1.msra.mxu0 %v499
    %519 = vmatprep.subr.mxu0 0.0
    %520 = vmatpush1.msra.mxu0 %v500
    %521 = vmatprep.subr.mxu0 0.0
    %522 = vmatpush1.msra.mxu0 %v501
    %523 = vmatprep.subr.mxu0 0.0
    %524 = vmatpush1.msra.mxu0 %v502
    %525 = vmatprep.subr.mxu0 0.0
    %526 = vmatpush1.msra.mxu0 %v503
    %527 = vmatprep.subr.mxu0 0.0
    %528 = vmatpush1.msra.mxu0 %v504
    %529 = vmatprep.subr.mxu0 0.0
    %530 = vmatpush1.msra.mxu0 %v505
    %531 = vmatprep.subr.mxu0 0.0
    %532 = vmatpush1.msra.mxu0 %v506
    %533 = vmatprep.subr.mxu0 0.0
    %534 = vmatpush1.msra.mxu0 %v507
    %535 = vmatprep.subr.mxu0 0.0
    %536 = vmatpush1.msra.mxu0 %v508
    %537 = vmatprep.subr.mxu0 0.0
    %538 = vmatpush1.msra.mxu0 %v509
    %539 = vmatprep.subr.mxu0 0.0
    %540 = vmatpush1.msra.mxu0 %v510
    %541 = vmatprep.subr.mxu0 0.0
    %542 = vmatpush1.msra.mxu0 %v511
    %543 = vmatprep.subr.mxu0 0.0
    %544 = vmatpush1.msra.mxu0 %v512
    %545 = vmatprep.subr.mxu0 0.0
    %546 = vmatpush1.msra.mxu0 0.0
    %547 = vmatprep.subr.mxu0 0.0
    %548 = vmatpush1.msra.mxu0 0.0
    %549 = vmatprep.subr.mxu0 0.0
    %550 = vmatpush1.msra.mxu0 0.0
    %551 = vmatprep.subr.mxu0 0.0
    %552 = vmatpush1.msra.mxu0 0.0
    %553 = vmatprep.subr.mxu0 0.0
    %554 = vmatpush1.msra.mxu0 0.0
    %555 = vmatprep.subr.mxu0 0.0
    %556 = vmatpush1.msra.mxu0 0.0
    %557 = vmatprep.subr.mxu0 0.0
    %558 = vmatpush1.msra.mxu0 0.0
    %559 = vmatprep.subr.mxu0 0.0
    %560 = vmatpush1.msra.mxu0 0.0
    %561 = vmatprep.subr.mxu0 0.0
    %562 = vmatpush1.msra.mxu0 0.0
    %563 = vmatprep.subr.mxu0 0.0
    %564 = vmatpush1.msra.mxu0 0.0
    %565 = vmatprep.subr.mxu0 0.0
    %566 = vmatpush1.msra.mxu0 0.0
    %567 = vmatprep.subr.mxu0 0.0
    %568 = vmatpush1.msra.mxu0 0.0
    %569 = vmatprep.subr.mxu0 0.0
    %570 = vmatpush1.msra.mxu0 0.0
    %571 = vmatprep.subr.mxu0 0.0
    %572 = vmatpush1.msra.mxu0 0.0
    %573 = vmatprep.subr.mxu0 0.0
    %574 = vmatpush1.msra.mxu0 0.0
    %575 = vmatprep.subr.mxu0 0.0
    %576 = vmatpush1.msra.mxu0 0.0
    %577 = vmatprep.mubr.f32.mxu0 0.0
    %578 = vmatmul.mubr.f32.gmra.mrb[0].mxu0 %v496
    %v579 = vpop.f32.mrb[0].mxu0
    %v580 = vadd.f32 %v45, %v579
    %v581 = vpop.f32.mrb[0].mxu0
    %582 = vdwg.mxu0
    %v583 = vxor.u32 %v580, 2147483648
    %v584 = vmul.f32 %v583, 1.442695
    %v585 = vpow.pop %v584
    %v586 = vadd.f32 %v585, 1.0
    %v587 = vrcp.pop %v586
    %v588 = vmul.f32 1.0, %v587
    %v589 = vtanh.pop %v580
    %590 = vrot.lane.b32.xlu0 %v588, 96
    %v591 = vpop.permute.xlu0 %590
    %592 = vrot.lane.b32.xlu0 %v589, 64
    %v593 = vpop.permute.xlu0 %592
    %594 = vrot.lane.b32.xlu0 %v588, 32
    %v595 = vpop.permute.xlu0 %594
    %v596 = vmul.f32 %v591, %v379
    %v597 = vmul.f32 %v588, %v593
    %v598 = vadd.f32 %v596, %v597
    %v599 = vsel %vm39, %v598, 0.0
    %v600 = vtanh.pop %v599
    %v601 = vmul.f32 %v595, %v600
    %602 = vrot.lane.b32.xlu0 %v489, 32
    %v603 = vpop.permute.xlu0 %602
    %v604 = vadd.f32 %v601, %v603
    %v605 = vld [vmem:[%s165] sm:$0xff]
    %v606 = vld [vmem:[%s165 + $0x8] sm:$0xff]
    %v607 = vld [vmem:[%s165 + $0x10] sm:$0xff]
    %v608 = vld [vmem:[%s165 + $0x18] sm:$0xff]
    %v609 = vld [vmem:[%s165 + $0x20] sm:$0xff]
    %v610 = vld [vmem:[%s165 + $0x28] sm:$0xff]
    %v611 = vld [vmem:[%s165 + $0x30] sm:$0xff]
    %v612 = vld [vmem:[%s165 + $0x38] sm:$0xff]
    %v613 = vld [vmem:[%s165 + $0x40] sm:$0xff]
    %v614 = vld [vmem:[%s165 + $0x48] sm:$0xff]
    %v615 = vld [vmem:[%s165 + $0x50] sm:$0xff]
    %v616 = vld [vmem:[%s165 + $0x58] sm:$0xff]
    %v617 = vld [vmem:[%s165 + $0x60] sm:$0xff]
    %v618 = vld [vmem:[%s165 + $0x68] sm:$0xff]
    %v619 = vld [vmem:[%s165 + $0x70] sm:$0xff]
    %v620 = vld [vmem:[%s165 + $0x78] sm:$0xff]
    %621 = vmatprep.subr.mxu0 0.0
    %622 = vmatpush1.msra.mxu0 %v605
    %623 = vmatprep.subr.mxu0 0.0
    %624 = vmatpush1.msra.mxu0 %v606
    %625 = vmatprep.subr.mxu0 0.0
    %626 = vmatpush1.msra.mxu0 %v607
    %627 = vmatprep.subr.mxu0 0.0
    %628 = vmatpush1.msra.mxu0 %v608
    %629 = vmatprep.subr.mxu0 0.0
    %630 = vmatpush1.msra.mxu0 %v609
    %631 = vmatprep.subr.mxu0 0.0
    %632 = vmatpush1.msra.mxu0 %v610
    %633 = vmatprep.subr.mxu0 0.0
    %634 = vmatpush1.msra.mxu0 %v611
    %635 = vmatprep.subr.mxu0 0.0
    %636 = vmatpush1.msra.mxu0 %v612
    %637 = vmatprep.subr.mxu0 0.0
    %638 = vmatpush1.msra.mxu0 %v613
    %639 = vmatprep.subr.mxu0 0.0
    %640 = vmatpush1.msra.mxu0 %v614
    %641 = vmatprep.subr.mxu0 0.0
    %642 = vmatpush1.msra.mxu0 %v615
    %643 = vmatprep.subr.mxu0 0.0
    %644 = vmatpush1.msra.mxu0 %v616
    %645 = vmatprep.subr.mxu0 0.0
    %646 = vmatpush1.msra.mxu0 %v617
    %647 = vmatprep.subr.mxu0 0.0
    %648 = vmatpush1.msra.mxu0 %v618
    %649 = vmatprep.subr.mxu0 0.0
    %650 = vmatpush1.msra.mxu0 %v619
    %651 = vmatprep.subr.mxu0 0.0
    %652 = vmatpush1.msra.mxu0 %v620
    %653 = vmatprep.subr.mxu0 0.0
    %654 = vmatpush1.msra.mxu0 0.0
    %655 = vmatprep.subr.mxu0 0.0
    %656 = vmatpush1.msra.mxu0 0.0
    %657 = vmatprep.subr.mxu0 0.0
    %658 = vmatpush1.msra.mxu0 0.0
    %659 = vmatprep.subr.mxu0 0.0
    %660 = vmatpush1.msra.mxu0 0.0
    %661 = vmatprep.subr.mxu0 0.0
    %662 = vmatpush1.msra.mxu0 0.0
    %663 = vmatprep.subr.mxu0 0.0
    %664 = vmatpush1.msra.mxu0 0.0
    %665 = vmatprep.subr.mxu0 0.0
    %666 = vmatpush1.msra.mxu0 0.0
    %667 = vmatprep.subr.mxu0 0.0
    %668 = vmatpush1.msra.mxu0 0.0
    %669 = vmatprep.subr.mxu0 0.0
    %670 = vmatpush1.msra.mxu0 0.0
    %671 = vmatprep.subr.mxu0 0.0
    %672 = vmatpush1.msra.mxu0 0.0
    %673 = vmatprep.subr.mxu0 0.0
    %674 = vmatpush1.msra.mxu0 0.0
    %675 = vmatprep.subr.mxu0 0.0
    %676 = vmatpush1.msra.mxu0 0.0
    %677 = vmatprep.subr.mxu0 0.0
    %678 = vmatpush1.msra.mxu0 0.0
    %679 = vmatprep.subr.mxu0 0.0
    %680 = vmatpush1.msra.mxu0 0.0
    %681 = vmatprep.subr.mxu0 0.0
    %682 = vmatpush1.msra.mxu0 0.0
    %683 = vmatprep.subr.mxu0 0.0
    %684 = vmatpush1.msra.mxu0 0.0
    %685 = vmatprep.mubr.f32.mxu0 0.0
    %686 = vmatmul.mubr.f32.gmra.mrb[0].mxu0 %v604
    %v687 = vpop.f32.mrb[0].mxu0
    %v688 = vadd.f32 %v53, %v687
    %v689 = vpop.f32.mrb[0].mxu0
    %690 = vdwg.mxu0
    %v691 = vxor.u32 %v688, 2147483648
    %v692 = vmul.f32 %v691, 1.442695
    %v693 = vpow.pop %v692
    %v694 = vadd.f32 %v693, 1.0
    %v695 = vrcp.pop %v694
    %v696 = vmul.f32 1.0, %v695
    %v697 = vtanh.pop %v688
    %698 = vrot.lane.b32.xlu0 %v696, 96
    %v699 = vpop.permute.xlu0 %698
    %700 = vrot.lane.b32.xlu0 %v697, 64
    %v701 = vpop.permute.xlu0 %700
    %702 = vrot.lane.b32.xlu0 %v696, 32
    %v703 = vpop.permute.xlu0 %702
    %v704 = vmul.f32 %v699, %v487
    %v705 = vmul.f32 %v696, %v701
    %v706 = vadd.f32 %v704, %v705
    %v707 = vsel %vm39, %v706, 0.0
    %v708 = vtanh.pop %v707
    %v709 = vmul.f32 %v703, %v708
    %s710 = scalar_lea.vmem [#allocation2], 16
    %711 = vst [vmem:[%s710] sm:$0xff] %v709
    %s712 = scalar_lea.vmem %s0, 24
    %v713 = vld [vmem:[%s712] sm:$0xff]
    %714 = vrot.lane.b32.xlu0 %v601, 32
    %v715 = vpop.permute.xlu0 %714
    %v716 = vadd.f32 %v713, %v715
    %v717 = vld [vmem:[%s1] sm:$0xff]
    %v718 = vld [vmem:[%s1 + $0x8] sm:$0xff]
    %v719 = vld [vmem:[%s1 + $0x10] sm:$0xff]
    %v720 = vld [vmem:[%s1 + $0x18] sm:$0xff]
    %v721 = vld [vmem:[%s1 + $0x20] sm:$0xff]
    %v722 = vld [vmem:[%s1 + $0x28] sm:$0xff]
    %v723 = vld [vmem:[%s1 + $0x30] sm:$0xff]
    %v724 = vld [vmem:[%s1 + $0x38] sm:$0xff]
    %v725 = vld [vmem:[%s1 + $0x40] sm:$0xff]
    %v726 = vld [vmem:[%s1 + $0x48] sm:$0xff]
    %v727 = vld [vmem:[%s1 + $0x50] sm:$0xff]
    %v728 = vld [vmem:[%s1 + $0x58] sm:$0xff]
    %v729 = vld [vmem:[%s1 + $0x60] sm:$0xff]
    %v730 = vld [vmem:[%s1 + $0x68] sm:$0xff]
    %v731 = vld [vmem:[%s1 + $0x70] sm:$0xff]
    %v732 = vld [vmem:[%s1 + $0x78] sm:$0xff]
    %733 = vmatprep.subr.mxu0 0.0
    %734 = vmatpush1.msra.mxu0 %v717
    %735 = vmatprep.subr.mxu0 0.0
    %736 = vmatpush1.msra.mxu0 %v718
    %737 = vmatprep.subr.mxu0 0.0
    %738 = vmatpush1.msra.mxu0 %v719
    %739 = vmatprep.subr.mxu0 0.0
    %740 = vmatpush1.msra.mxu0 %v720
    %741 = vmatprep.subr.mxu0 0.0
    %742 = vmatpush1.msra.mxu0 %v721
    %743 = vmatprep.subr.mxu0 0.0
    %744 = vmatpush1.msra.mxu0 %v722
    %745 = vmatprep.subr.mxu0 0.0
    %746 = vmatpush1.msra.mxu0 %v723
    %747 = vmatprep.subr.mxu0 0.0
    %748 = vmatpush1.msra.mxu0 %v724
    %749 = vmatprep.subr.mxu0 0.0
    %750 = vmatpush1.msra.mxu0 %v725
    %751 = vmatprep.subr.mxu0 0.0
    %752 = vmatpush1.msra.mxu0 %v726
    %753 = vmatprep.subr.mxu0 0.0
    %754 = vmatpush1.msra.mxu0 %v727
    %755 = vmatprep.subr.mxu0 0.0
    %756 = vmatpush1.msra.mxu0 %v728
    %757 = vmatprep.subr.mxu0 0.0
    %758 = vmatpush1.msra.mxu0 %v729
    %759 = vmatprep.subr.mxu0 0.0
    %760 = vmatpush1.msra.mxu0 %v730
    %761 = vmatprep.subr.mxu0 0.0
    %762 = vmatpush1.msra.mxu0 %v731
    %763 = vmatprep.subr.mxu0 0.0
    %764 = vmatpush1.msra.mxu0 %v732
    %765 = vmatprep.subr.mxu0 0.0
    %766 = vmatpush1.msra.mxu0 0.0
    %767 = vmatprep.subr.mxu0 0.0
    %768 = vmatpush1.msra.mxu0 0.0
    %769 = vmatprep.subr.mxu0 0.0
    %770 = vmatpush1.msra.mxu0 0.0
    %771 = vmatprep.subr.mxu0 0.0
    %772 = vmatpush1.msra.mxu0 0.0
    %773 = vmatprep.subr.mxu0 0.0
    %774 = vmatpush1.msra.mxu0 0.0
    %775 = vmatprep.subr.mxu0 0.0
    %776 = vmatpush1.msra.mxu0 0.0
    %777 = vmatprep.subr.mxu0 0.0
    %778 = vmatpush1.msra.mxu0 0.0
    %779 = vmatprep.subr.mxu0 0.0
    %780 = vmatpush1.msra.mxu0 0.0
    %781 = vmatprep.subr.mxu0 0.0
    %782 = vmatpush1.msra.mxu0 0.0
    %783 = vmatprep.subr.mxu0 0.0
    %784 = vmatpush1.msra.mxu0 0.0
    %785 = vmatprep.subr.mxu0 0.0
    %786 = vmatpush1.msra.mxu0 0.0
    %787 = vmatprep.subr.mxu0 0.0
    %788 = vmatpush1.msra.mxu0 0.0
    %789 = vmatprep.subr.mxu0 0.0
    %790 = vmatpush1.msra.mxu0 0.0
    %791 = vmatprep.subr.mxu0 0.0
    %792 = vmatpush1.msra.mxu0 0.0
    %793 = vmatprep.subr.mxu0 0.0
    %794 = vmatpush1.msra.mxu0 0.0
    %795 = vmatprep.subr.mxu0 0.0
    %796 = vmatpush1.msra.mxu0 0.0
    %797 = vmatprep.mubr.f32.mxu0 0.0
    %798 = vmatmul.mubr.f32.gmra.mrb[0].mxu0 %v716
    %v799 = vpop.f32.mrb[0].mxu0
    %v800 = vadd.f32 %v45, %v799
    %v801 = vpop.f32.mrb[0].mxu0
    %802 = vdwg.mxu0
    %v803 = vxor.u32 %v800, 2147483648
    %v804 = vmul.f32 %v803, 1.442695
    %v805 = vpow.pop %v804
    %v806 = vadd.f32 %v805, 1.0
    %v807 = vrcp.pop %v806
    %v808 = vmul.f32 1.0, %v807
    %v809 = vtanh.pop %v800
    %810 = vrot.lane.b32.xlu0 %v808, 96
    %v811 = vpop.permute.xlu0 %810
    %812 = vrot.lane.b32.xlu0 %v809, 64
    %v813 = vpop.permute.xlu0 %812
    %814 = vrot.lane.b32.xlu0 %v808, 32
    %v815 = vpop.permute.xlu0 %814
    %v816 = vmul.f32 %v811, %v599
    %v817 = vmul.f32 %v808, %v813
    %v818 = vadd.f32 %v816, %v817
    %v819 = vsel %vm39, %v818, 0.0
    %v820 = vtanh.pop %v819
    %v821 = vmul.f32 %v815, %v820
    %822 = vrot.lane.b32.xlu0 %v709, 32
    %v823 = vpop.permute.xlu0 %822
    %v824 = vadd.f32 %v821, %v823
    %v825 = vld [vmem:[%s165] sm:$0xff]
    %v826 = vld [vmem:[%s165 + $0x8] sm:$0xff]
    %v827 = vld [vmem:[%s165 + $0x10] sm:$0xff]
    %v828 = vld [vmem:[%s165 + $0x18] sm:$0xff]
    %v829 = vld [vmem:[%s165 + $0x20] sm:$0xff]
    %v830 = vld [vmem:[%s165 + $0x28] sm:$0xff]
    %v831 = vld [vmem:[%s165 + $0x30] sm:$0xff]
    %v832 = vld [vmem:[%s165 + $0x38] sm:$0xff]
    %v833 = vld [vmem:[%s165 + $0x40] sm:$0xff]
    %v834 = vld [vmem:[%s165 + $0x48] sm:$0xff]
    %v835 = vld [vmem:[%s165 + $0x50] sm:$0xff]
    %v836 = vld [vmem:[%s165 + $0x58] sm:$0xff]
    %v837 = vld [vmem:[%s165 + $0x60] sm:$0xff]
    %v838 = vld [vmem:[%s165 + $0x68] sm:$0xff]
    %v839 = vld [vmem:[%s165 + $0x70] sm:$0xff]
    %v840 = vld [vmem:[%s165 + $0x78] sm:$0xff]
    %841 = vmatprep.subr.mxu0 0.0
    %842 = vmatpush1.msra.mxu0 %v825
    %843 = vmatprep.subr.mxu0 0.0
    %844 = vmatpush1.msra.mxu0 %v826
    %845 = vmatprep.subr.mxu0 0.0
    %846 = vmatpush1.msra.mxu0 %v827
    %847 = vmatprep.subr.mxu0 0.0
    %848 = vmatpush1.msra.mxu0 %v828
    %849 = vmatprep.subr.mxu0 0.0
    %850 = vmatpush1.msra.mxu0 %v829
    %851 = vmatprep.subr.mxu0 0.0
    %852 = vmatpush1.msra.mxu0 %v830
    %853 = vmatprep.subr.mxu0 0.0
    %854 = vmatpush1.msra.mxu0 %v831
    %855 = vmatprep.subr.mxu0 0.0
    %856 = vmatpush1.msra.mxu0 %v832
    %857 = vmatprep.subr.mxu0 0.0
    %858 = vmatpush1.msra.mxu0 %v833
    %859 = vmatprep.subr.mxu0 0.0
    %860 = vmatpush1.msra.mxu0 %v834
    %861 = vmatprep.subr.mxu0 0.0
    %862 = vmatpush1.msra.mxu0 %v835
    %863 = vmatprep.subr.mxu0 0.0
    %864 = vmatpush1.msra.mxu0 %v836
    %865 = vmatprep.subr.mxu0 0.0
    %866 = vmatpush1.msra.mxu0 %v837
    %867 = vmatprep.subr.mxu0 0.0
    %868 = vmatpush1.msra.mxu0 %v838
    %869 = vmatprep.subr.mxu0 0.0
    %870 = vmatpush1.msra.mxu0 %v839
    %871 = vmatprep.subr.mxu0 0.0
    %872 = vmatpush1.msra.mxu0 %v840
    %873 = vmatprep.subr.mxu0 0.0
    %874 = vmatpush1.msra.mxu0 0.0
    %875 = vmatprep.subr.mxu0 0.0
    %876 = vmatpush1.msra.mxu0 0.0
    %877 = vmatprep.subr.mxu0 0.0
    %878 = vmatpush1.msra.mxu0 0.0
    %879 = vmatprep.subr.mxu0 0.0
    %880 = vmatpush1.msra.mxu0 0.0
    %881 = vmatprep.subr.mxu0 0.0
    %882 = vmatpush1.msra.mxu0 0.0
    %883 = vmatprep.subr.mxu0 0.0
    %884 = vmatpush1.msra.mxu0 0.0
    %885 = vmatprep.subr.mxu0 0.0
    %886 = vmatpush1.msra.mxu0 0.0
    %887 = vmatprep.subr.mxu0 0.0
    %888 = vmatpush1.msra.mxu0 0.0
    %889 = vmatprep.subr.mxu0 0.0
    %890 = vmatpush1.msra.mxu0 0.0
    %891 = vmatprep.subr.mxu0 0.0
    %892 = vmatpush1.msra.mxu0 0.0
    %893 = vmatprep.subr.mxu0 0.0
    %894 = vmatpush1.msra.mxu0 0.0
    %895 = vmatprep.subr.mxu0 0.0
    %896 = vmatpush1.msra.mxu0 0.0
    %897 = vmatprep.subr.mxu0 0.0
    %898 = vmatpush1.msra.mxu0 0.0
    %899 = vmatprep.subr.mxu0 0.0
    %900 = vmatpush1.msra.mxu0 0.0
    %901 = vmatprep.subr.mxu0 0.0
    %902 = vmatpush1.msra.mxu0 0.0
    %903 = vmatprep.subr.mxu0 0.0
    %904 = vmatpush1.msra.mxu0 0.0
    %905 = vmatprep.mubr.f32.mxu0 0.0
    %906 = vmatmul.mubr.f32.gmra.mrb[0].mxu0 %v824
    %v907 = vpop.f32.mrb[0].mxu0
    %v908 = vadd.f32 %v53, %v907
    %v909 = vpop.f32.mrb[0].mxu0
    %910 = vdwg.mxu0
    %v911 = vxor.u32 %v908, 2147483648
    %v912 = vmul.f32 %v911, 1.442695
    %v913 = vpow.pop %v912
    %v914 = vadd.f32 %v913, 1.0
    %v915 = vrcp.pop %v914
    %v916 = vmul.f32 1.0, %v915
    %v917 = vtanh.pop %v908
    %918 = vrot.lane.b32.xlu0 %v916, 96
    %v919 = vpop.permute.xlu0 %918
    %920 = vrot.lane.b32.xlu0 %v917, 64
    %v921 = vpop.permute.xlu0 %920
    %922 = vrot.lane.b32.xlu0 %v916, 32
    %v923 = vpop.permute.xlu0 %922
    %v924 = vmul.f32 %v919, %v707
    %v925 = vmul.f32 %v916, %v921
    %v926 = vadd.f32 %v924, %v925
    %v927 = vsel %vm39, %v926, 0.0
    %v928 = vtanh.pop %v927
    %v929 = vmul.f32 %v923, %v928
    %s930 = scalar_lea.vmem [#allocation2], 24
    %931 = vst [vmem:[%s930] sm:$0xff] %v929
    %s932 = scalar_lea.vmem %s0, 32
    %v933 = vld [vmem:[%s932] sm:$0xff]
    %934 = vrot.lane.b32.xlu0 %v821, 32
    %v935 = vpop.permute.xlu0 %934
    %v936 = vadd.f32 %v933, %v935
    %v937 = vld [vmem:[%s1] sm:$0xff]
    %v938 = vld [vmem:[%s1 + $0x8] sm:$0xff]
    %v939 = vld [vmem:[%s1 + $0x10] sm:$0xff]
    %v940 = vld [vmem:[%s1 + $0x18] sm:$0xff]
    %v941 = vld [vmem:[%s1 + $0x20] sm:$0xff]
    %v942 = vld [vmem:[%s1 + $0x28] sm:$0xff]
    %v943 = vld [vmem:[%s1 + $0x30] sm:$0xff]
    %v944 = vld [vmem:[%s1 + $0x38] sm:$0xff]
    %v945 = vld [vmem:[%s1 + $0x40] sm:$0xff]
    %v946 = vld [vmem:[%s1 + $0x48] sm:$0xff]
    %v947 = vld [vmem:[%s1 + $0x50] sm:$0xff]
    %v948 = vld [vmem:[%s1 + $0x58] sm:$0xff]
    %v949 = vld [vmem:[%s1 + $0x60] sm:$0xff]
    %v950 = vld [vmem:[%s1 + $0x68] sm:$0xff]
    %v951 = vld [vmem:[%s1 + $0x70] sm:$0xff]
    %v952 = vld [vmem:[%s1 + $0x78] sm:$0xff]
    %953 = vmatprep.subr.mxu0 0.0
    %954 = vmatpush1.msra.mxu0 %v937
    %955 = vmatprep.subr.mxu0 0.0
    %956 = vmatpush1.msra.mxu0 %v938
    %957 = vmatprep.subr.mxu0 0.0
    %958 = vmatpush1.msra.mxu0 %v939
    %959 = vmatprep.subr.mxu0 0.0
    %960 = vmatpush1.msra.mxu0 %v940
    %961 = vmatprep.subr.mxu0 0.0
    %962 = vmatpush1.msra.mxu0 %v941
    %963 = vmatprep.subr.mxu0 0.0
    %964 = vmatpush1.msra.mxu0 %v942
    %965 = vmatprep.subr.mxu0 0.0
    %966 = vmatpush1.msra.mxu0 %v943
    %967 = vmatprep.subr.mxu0 0.0
    %968 = vmatpush1.msra.mxu0 %v944
    %969 = vmatprep.subr.mxu0 0.0
    %970 = vmatpush1.msra.mxu0 %v945
    %971 = vmatprep.subr.mxu0 0.0
    %972 = vmatpush1.msra.mxu0 %v946
    %973 = vmatprep.subr.mxu0 0.0
    %974 = vmatpush1.msra.mxu0 %v947
    %975 = vmatprep.subr.mxu0 0.0
    %976 = vmatpush1.msra.mxu0 %v948
    %977 = vmatprep.subr.mxu0 0.0
    %978 = vmatpush1.msra.mxu0 %v949
    %979 = vmatprep.subr.mxu0 0.0
    %980 = vmatpush1.msra.mxu0 %v950
    %981 = vmatprep.subr.mxu0 0.0
    %982 = vmatpush1.msra.mxu0 %v951
    %983 = vmatprep.subr.mxu0 0.0
    %984 = vmatpush1.msra.mxu0 %v952
    %985 = vmatprep.subr.mxu0 0.0
    %986 = vmatpush1.msra.mxu0 0.0
    %987 = vmatprep.subr.mxu0 0.0
    %988 = vmatpush1.msra.mxu0 0.0
    %989 = vmatprep.subr.mxu0 0.0
    %990 = vmatpush1.msra.mxu0 0.0
    %991 = vmatprep.subr.mxu0 0.0
    %992 = vmatpush1.msra.mxu0 0.0
    %993 = vmatprep.subr.mxu0 0.0
    %994 = vmatpush1.msra.mxu0 0.0
    %995 = vmatprep.subr.mxu0 0.0
    %996 = vmatpush1.msra.mxu0 0.0
    %997 = vmatprep.subr.mxu0 0.0
    %998 = vmatpush1.msra.mxu0 0.0
    %999 = vmatprep.subr.mxu0 0.0
    %1000 = vmatpush1.msra.mxu0 0.0
    %1001 = vmatprep.subr.mxu0 0.0
    %1002 = vmatpush1.msra.mxu0 0.0
    %1003 = vmatprep.subr.mxu0 0.0
    %1004 = vmatpush1.msra.mxu0 0.0
    %1005 = vmatprep.subr.mxu0 0.0
    %1006 = vmatpush1.msra.mxu0 0.0
    %1007 = vmatprep.subr.mxu0 0.0
    %1008 = vmatpush1.msra.mxu0 0.0
    %1009 = vmatprep.subr.mxu0 0.0
    %1010 = vmatpush1.msra.mxu0 0.0
    %1011 = vmatprep.subr.mxu0 0.0
    %1012 = vmatpush1.msra.mxu0 0.0
    %1013 = vmatprep.subr.mxu0 0.0
    %1014 = vmatpush1.msra.mxu0 0.0
    %1015 = vmatprep.subr.mxu0 0.0
    %1016 = vmatpush1.msra.mxu0 0.0
    %1017 = vmatprep.mubr.f32.mxu0 0.0
    %1018 = vmatmul.mubr.f32.gmra.mrb[0].mxu0 %v936
    %v1019 = vpop.f32.mrb[0].mxu0
    %v1020 = vadd.f32 %v45, %v1019
    %v1021 = vpop.f32.mrb[0].mxu0
    %1022 = vdwg.mxu0
    %v1023 = vxor.u32 %v1020, 2147483648
    %v1024 = vmul.f32 %v1023, 1.442695
    %v1025 = vpow.pop %v1024
    %v1026 = vadd.f32 %v1025, 1.0
    %v1027 = vrcp.pop %v1026
    %v1028 = vmul.f32 1.0, %v1027
    %v1029 = vtanh.pop %v1020
    %1030 = vrot.lane.b32.xlu0 %v1028, 96
    %v1031 = vpop.permute.xlu0 %1030
    %1032 = vrot.lane.b32.xlu0 %v1029, 64
    %v1033 = vpop.permute.xlu0 %1032
    %1034 = vrot.lane.b32.xlu0 %v1028, 32
    %v1035 = vpop.permute.xlu0 %1034
    %v1036 = vmul.f32 %v1031, %v819
    %v1037 = vmul.f32 %v1028, %v1033
    %v1038 = vadd.f32 %v1036, %v1037
    %v1039 = vsel %vm39, %v1038, 0.0
    %v1040 = vtanh.pop %v1039
    %v1041 = vmul.f32 %v1035, %v1040
    %1042 = vrot.lane.b32.xlu0 %v929, 32
    %v1043 = vpop.permute.xlu0 %1042
    %v1044 = vadd.f32 %v1041, %v1043
    %v1045 = vld [vmem:[%s165] sm:$0xff]
    %v1046 = vld [vmem:[%s165 + $0x8] sm:$0xff]
    %v1047 = vld [vmem:[%s165 + $0x10] sm:$0xff]
    %v1048 = vld [vmem:[%s165 + $0x18] sm:$0xff]
    %v1049 = vld [vmem:[%s165 + $0x20] sm:$0xff]
    %v1050 = vld [vmem:[%s165 + $0x28] sm:$0xff]
    %v1051 = vld [vmem:[%s165 + $0x30] sm:$0xff]
    %v1052 = vld [vmem:[%s165 + $0x38] sm:$0xff]
    %v1053 = vld [vmem:[%s165 + $0x40] sm:$0xff]
    %v1054 = vld [vmem:[%s165 + $0x48] sm:$0xff]
    %v1055 = vld [vmem:[%s165 + $0x50] sm:$0xff]
    %v1056 = vld [vmem:[%s165 + $0x58] sm:$0xff]
    %v1057 = vld [vmem:[%s165 + $0x60] sm:$0xff]
    %v1058 = vld [vmem:[%s165 + $0x68] sm:$0xff]
    %v1059 = vld [vmem:[%s165 + $0x70] sm:$0xff]
    %v1060 = vld [vmem:[%s165 + $0x78] sm:$0xff]
    %1061 = vmatprep.subr.mxu0 0.0
    %1062 = vmatpush1.msra.mxu0 %v1045
    %1063 = vmatprep.subr.mxu0 0.0
    %1064 = vmatpush1.msra.mxu0 %v1046
    %1065 = vmatprep.subr.mxu0 0.0
    %1066 = vmatpush1.msra.mxu0 %v1047
    %1067 = vmatprep.subr.mxu0 0.0
    %1068 = vmatpush1.msra.mxu0 %v1048
    %1069 = vmatprep.subr.mxu0 0.0
    %1070 = vmatpush1.msra.mxu0 %v1049
    %1071 = vmatprep.subr.mxu0 0.0
    %1072 = vmatpush1.msra.mxu0 %v1050
    %1073 = vmatprep.subr.mxu0 0.0
    %1074 = vmatpush1.msra.mxu0 %v1051
    %1075 = vmatprep.subr.mxu0 0.0
    %1076 = vmatpush1.msra.mxu0 %v1052
    %1077 = vmatprep.subr.mxu0 0.0
    %1078 = vmatpush1.msra.mxu0 %v1053
    %1079 = vmatprep.subr.mxu0 0.0
    %1080 = vmatpush1.msra.mxu0 %v1054
    %1081 = vmatprep.subr.mxu0 0.0
    %1082 = vmatpush1.msra.mxu0 %v1055
    %1083 = vmatprep.subr.mxu0 0.0
    %1084 = vmatpush1.msra.mxu0 %v1056
    %1085 = vmatprep.subr.mxu0 0.0
    %1086 = vmatpush1.msra.mxu0 %v1057
    %1087 = vmatprep.subr.mxu0 0.0
    %1088 = vmatpush1.msra.mxu0 %v1058
    %1089 = vmatprep.subr.mxu0 0.0
    %1090 = vmatpush1.msra.mxu0 %v1059
    %1091 = vmatprep.subr.mxu0 0.0
    %1092 = vmatpush1.msra.mxu0 %v1060
    %1093 = vmatprep.subr.mxu0 0.0
    %1094 = vmatpush1.msra.mxu0 0.0
    %1095 = vmatprep.subr.mxu0 0.0
    %1096 = vmatpush1.msra.mxu0 0.0
    %1097 = vmatprep.subr.mxu0 0.0
    %1098 = vmatpush1.msra.mxu0 0.0
    %1099 = vmatprep.subr.mxu0 0.0
    %1100 = vmatpush1.msra.mxu0 0.0
    %1101 = vmatprep.subr.mxu0 0.0
    %1102 = vmatpush1.msra.mxu0 0.0
    %1103 = vmatprep.subr.mxu0 0.0
    %1104 = vmatpush1.msra.mxu0 0.0
    %1105 = vmatprep.subr.mxu0 0.0
    %1106 = vmatpush1.msra.mxu0 0.0
    %1107 = vmatprep.subr.mxu0 0.0
    %1108 = vmatpush1.msra.mxu0 0.0
    %1109 = vmatprep.subr.mxu0 0.0
    %1110 = vmatpush1.msra.mxu0 0.0
    %1111 = vmatprep.subr.mxu0 0.0
    %1112 = vmatpush1.msra.mxu0 0.0
    %1113 = vmatprep.subr.mxu0 0.0
    %1114 = vmatpush1.msra.mxu0 0.0
    %1115 = vmatprep.subr.mxu0 0.0
    %1116 = vmatpush1.msra.mxu0 0.0
    %1117 = vmatprep.subr.mxu0 0.0
    %1118 = vmatpush1.msra.mxu0 0.0
    %1119 = vmatprep.subr.mxu0 0.0
    %1120 = vmatpush1.msra.mxu0 0.0
    %1121 = vmatprep.subr.mxu0 0.0
    %1122 = vmatpush1.msra.mxu0 0.0
    %1123 = vmatprep.subr.mxu0 0.0
    %1124 = vmatpush1.msra.mxu0 0.0
    %1125 = vmatprep.mubr.f32.mxu0 0.0
    %1126 = vmatmul.mubr.f32.gmra.mrb[0].mxu0 %v1044
    %v1127 = vpop.f32.mrb[0].mxu0
    %v1128 = vadd.f32 %v53, %v1127
    %v1129 = vpop.f32.mrb[0].mxu0
    %1130 = vdwg.mxu0
    %v1131 = vxor.u32 %v1128, 2147483648
    %v1132 = vmul.f32 %v1131, 1.442695
    %v1133 = vpow.pop %v1132
    %v1134 = vadd.f32 %v1133, 1.0
    %v1135 = vrcp.pop %v1134
    %v1136 = vmul.f32 1.0, %v1135
    %v1137 = vtanh.pop %v1128
    %1138 = vrot.lane.b32.xlu0 %v1136, 96
    %v1139 = vpop.permute.xlu0 %1138
    %1140 = vrot.lane.b32.xlu0 %v1137, 64
    %v1141 = vpop.permute.xlu0 %1140
    %1142 = vrot.lane.b32.xlu0 %v1136, 32
    %v1143 = vpop.permute.xlu0 %1142
    %v1144 = vmul.f32 %v1139, %v927
    %v1145 = vmul.f32 %v1136, %v1141
    %v1146 = vadd.f32 %v1144, %v1145
    %v1147 = vsel %vm39, %v1146, 0.0
    %v1148 = vtanh.pop %v1147
    %v1149 = vmul.f32 %v1143, %v1148
    %s1150 = scalar_lea.vmem [#allocation2], 32
    %1151 = vst [vmem:[%s1150] sm:$0xff] %v1149
    %s1152 = scalar_lea.vmem %s0, 40
    %v1153 = vld [vmem:[%s1152] sm:$0xff]
    %1154 = vrot.lane.b32.xlu0 %v1041, 32
    %v1155 = vpop.permute.xlu0 %1154
    %v1156 = vadd.f32 %v1153, %v1155
    %v1157 = vld [vmem:[%s1] sm:$0xff]
    %v1158 = vld [vmem:[%s1 + $0x8] sm:$0xff]
    %v1159 = vld [vmem:[%s1 + $0x10] sm:$0xff]
    %v1160 = vld [vmem:[%s1 + $0x18] sm:$0xff]
    %v1161 = vld [vmem:[%s1 + $0x20] sm:$0xff]
    %v1162 = vld [vmem:[%s1 + $0x28] sm:$0xff]
    %v1163 = vld [vmem:[%s1 + $0x30] sm:$0xff]
    %v1164 = vld [vmem:[%s1 + $0x38] sm:$0xff]
    %v1165 = vld [vmem:[%s1 + $0x40] sm:$0xff]
    %v1166 = vld [vmem:[%s1 + $0x48] sm:$0xff]
    %v1167 = vld [vmem:[%s1 + $0x50] sm:$0xff]
    %v1168 = vld [vmem:[%s1 + $0x58] sm:$0xff]
    %v1169 = vld [vmem:[%s1 + $0x60] sm:$0xff]
    %v1170 = vld [vmem:[%s1 + $0x68] sm:$0xff]
    %v1171 = vld [vmem:[%s1 + $0x70] sm:$0xff]
    %v1172 = vld [vmem:[%s1 + $0x78] sm:$0xff]
    %1173 = vmatprep.subr.mxu0 0.0
    %1174 = vmatpush1.msra.mxu0 %v1157
    %1175 = vmatprep.subr.mxu0 0.0
    %1176 = vmatpush1.msra.mxu0 %v1158
    %1177 = vmatprep.subr.mxu0 0.0
    %1178 = vmatpush1.msra.mxu0 %v1159
    %1179 = vmatprep.subr.mxu0 0.0
    %1180 = vmatpush1.msra.mxu0 %v1160
    %1181 = vmatprep.subr.mxu0 0.0
    %1182 = vmatpush1.msra.mxu0 %v1161
    %1183 = vmatprep.subr.mxu0 0.0
    %1184 = vmatpush1.msra.mxu0 %v1162
    %1185 = vmatprep.subr.mxu0 0.0
    %1186 = vmatpush1.msra.mxu0 %v1163
    %1187 = vmatprep.subr.mxu0 0.0
    %1188 = vmatpush1.msra.mxu0 %v1164
    %1189 = vmatprep.subr.mxu0 0.0
    %1190 = vmatpush1.msra.mxu0 %v1165
    %1191 = vmatprep.subr.mxu0 0.0
    %1192 = vmatpush1.msra.mxu0 %v1166
    %1193 = vmatprep.subr.mxu0 0.0
    %1194 = vmatpush1.msra.mxu0 %v1167
    %1195 = vmatprep.subr.mxu0 0.0
    %1196 = vmatpush1.msra.mxu0 %v1168
    %1197 = vmatprep.subr.mxu0 0.0
    %1198 = vmatpush1.msra.mxu0 %v1169
    %1199 = vmatprep.subr.mxu0 0.0
    %1200 = vmatpush1.msra.mxu0 %v1170
    %1201 = vmatprep.subr.mxu0 0.0
    %1202 = vmatpush1.msra.mxu0 %v1171
    %1203 = vmatprep.subr.mxu0 0.0
    %1204 = vmatpush1.msra.mxu0 %v1172
    %1205 = vmatprep.subr.mxu0 0.0
    %1206 = vmatpush1.msra.mxu0 0.0
    %1207 = vmatprep.subr.mxu0 0.0
    %1208 = vmatpush1.msra.mxu0 0.0
    %1209 = vmatprep.subr.mxu0 0.0
    %1210 = vmatpush1.msra.mxu0 0.0
    %1211 = vmatprep.subr.mxu0 0.0
    %1212 = vmatpush1.msra.mxu0 0.0
    %1213 = vmatprep.subr.mxu0 0.0
    %1214 = vmatpush1.msra.mxu0 0.0
    %1215 = vmatprep.subr.mxu0 0.0
    %1216 = vmatpush1.msra.mxu0 0.0
    %1217 = vmatprep.subr.mxu0 0.0
    %1218 = vmatpush1.msra.mxu0 0.0
    %1219 = vmatprep.subr.mxu0 0.0
    %1220 = vmatpush1.msra.mxu0 0.0
    %1221 = vmatprep.subr.mxu0 0.0
    %1222 = vmatpush1.msra.mxu0 0.0
    %1223 = vmatprep.subr.mxu0 0.0
    %1224 = vmatpush1.msra.mxu0 0.0
    %1225 = vmatprep.subr.mxu0 0.0
    %1226 = vmatpush1.msra.mxu0 0.0
    %1227 = vmatprep.subr.mxu0 0.0
    %1228 = vmatpush1.msra.mxu0 0.0
    %1229 = vmatprep.subr.mxu0 0.0
    %1230 = vmatpush1.msra.mxu0 0.0
    %1231 = vmatprep.subr.mxu0 0.0
    %1232 = vmatpush1.msra.mxu0 0.0
    %1233 = vmatprep.subr.mxu0 0.0
    %1234 = vmatpush1.msra.mxu0 0.0
    %1235 = vmatprep.subr.mxu0 0.0
    %1236 = vmatpush1.msra.mxu0 0.0
    %1237 = vmatprep.mubr.f32.mxu0 0.0
    %1238 = vmatmul.mubr.f32.gmra.mrb[0].mxu0 %v1156
    %v1239 = vpop.f32.mrb[0].mxu0
    %v1240 = vadd.f32 %v45, %v1239
    %v1241 = vpop.f32.mrb[0].mxu0
    %1242 = vdwg.mxu0
    %v1243 = vxor.u32 %v1240, 2147483648
    %v1244 = vmul.f32 %v1243, 1.442695
    %v1245 = vpow.pop %v1244
    %v1246 = vadd.f32 %v1245, 1.0
    %v1247 = vrcp.pop %v1246
    %v1248 = vmul.f32 1.0, %v1247
    %v1249 = vtanh.pop %v1240
    %1250 = vrot.lane.b32.xlu0 %v1248, 96
    %v1251 = vpop.permute.xlu0 %1250
    %1252 = vrot.lane.b32.xlu0 %v1249, 64
    %v1253 = vpop.permute.xlu0 %1252
    %1254 = vrot.lane.b32.xlu0 %v1248, 32
    %v1255 = vpop.permute.xlu0 %1254
    %v1256 = vmul.f32 %v1251, %v1039
    %v1257 = vmul.f32 %v1248, %v1253
    %v1258 = vadd.f32 %v1256, %v1257
    %v1259 = vsel %vm39, %v1258, 0.0
    %v1260 = vtanh.pop %v1259
    %v1261 = vmul.f32 %v1255, %v1260
    %1262 = vrot.lane.b32.xlu0 %v1149, 32
    %v1263 = vpop.permute.xlu0 %1262
    %v1264 = vadd.f32 %v1261, %v1263
    %v1265 = vld [vmem:[%s165] sm:$0xff]
    %v1266 = vld [vmem:[%s165 + $0x8] sm:$0xff]
    %v1267 = vld [vmem:[%s165 + $0x10] sm:$0xff]
    %v1268 = vld [vmem:[%s165 + $0x18] sm:$0xff]
    %v1269 = vld [vmem:[%s165 + $0x20] sm:$0xff]
    %v1270 = vld [vmem:[%s165 + $0x28] sm:$0xff]
    %v1271 = vld [vmem:[%s165 + $0x30] sm:$0xff]
    %v1272 = vld [vmem:[%s165 + $0x38] sm:$0xff]
    %v1273 = vld [vmem:[%s165 + $0x40] sm:$0xff]
    %v1274 = vld [vmem:[%s165 + $0x48] sm:$0xff]
    %v1275 = vld [vmem:[%s165 + $0x50] sm:$0xff]
    %v1276 = vld [vmem:[%s165 + $0x58] sm:$0xff]
    %v1277 = vld [vmem:[%s165 + $0x60] sm:$0xff]
    %v1278 = vld [vmem:[%s165 + $0x68] sm:$0xff]
    %v1279 = vld [vmem:[%s165 + $0x70] sm:$0xff]
    %v1280 = vld [vmem:[%s165 + $0x78] sm:$0xff]
    %1281 = vmatprep.subr.mxu0 0.0
    %1282 = vmatpush1.msra.mxu0 %v1265
    %1283 = vmatprep.subr.mxu0 0.0
    %1284 = vmatpush1.msra.mxu0 %v1266
    %1285 = vmatprep.subr.mxu0 0.0
    %1286 = vmatpush1.msra.mxu0 %v1267
    %1287 = vmatprep.subr.mxu0 0.0
    %1288 = vmatpush1.msra.mxu0 %v1268
    %1289 = vmatprep.subr.mxu0 0.0
    %1290 = vmatpush1.msra.mxu0 %v1269
    %1291 = vmatprep.subr.mxu0 0.0
    %1292 = vmatpush1.msra.mxu0 %v1270
    %1293 = vmatprep.subr.mxu0 0.0
    %1294 = vmatpush1.msra.mxu0 %v1271
    %1295 = vmatprep.subr.mxu0 0.0
    %1296 = vmatpush1.msra.mxu0 %v1272
    %1297 = vmatprep.subr.mxu0 0.0
    %1298 = vmatpush1.msra.mxu0 %v1273
    %1299 = vmatprep.subr.mxu0 0.0
    %1300 = vmatpush1.msra.mxu0 %v1274
    %1301 = vmatprep.subr.mxu0 0.0
    %1302 = vmatpush1.msra.mxu0 %v1275
    %1303 = vmatprep.subr.mxu0 0.0
    %1304 = vmatpush1.msra.mxu0 %v1276
    %1305 = vmatprep.subr.mxu0 0.0
    %1306 = vmatpush1.msra.mxu0 %v1277
    %1307 = vmatprep.subr.mxu0 0.0
    %1308 = vmatpush1.msra.mxu0 %v1278
    %1309 = vmatprep.subr.mxu0 0.0
    %1310 = vmatpush1.msra.mxu0 %v1279
    %1311 = vmatprep.subr.mxu0 0.0
    %1312 = vmatpush1.msra.mxu0 %v1280
    %1313 = vmatprep.subr.mxu0 0.0
    %1314 = vmatpush1.msra.mxu0 0.0
    %1315 = vmatprep.subr.mxu0 0.0
    %1316 = vmatpush1.msra.mxu0 0.0
    %1317 = vmatprep.subr.mxu0 0.0
    %1318 = vmatpush1.msra.mxu0 0.0
    %1319 = vmatprep.subr.mxu0 0.0
    %1320 = vmatpush1.msra.mxu0 0.0
    %1321 = vmatprep.subr.mxu0 0.0
    %1322 = vmatpush1.msra.mxu0 0.0
    %1323 = vmatprep.subr.mxu0 0.0
    %1324 = vmatpush1.msra.mxu0 0.0
    %1325 = vmatprep.subr.mxu0 0.0
    %1326 = vmatpush1.msra.mxu0 0.0
    %1327 = vmatprep.subr.mxu0 0.0
    %1328 = vmatpush1.msra.mxu0 0.0
    %1329 = vmatprep.subr.mxu0 0.0
    %1330 = vmatpush1.msra.mxu0 0.0
    %1331 = vmatprep.subr.mxu0 0.0
    %1332 = vmatpush1.msra.mxu0 0.0
    %1333 = vmatprep.subr.mxu0 0.0
    %1334 = vmatpush1.msra.mxu0 0.0
    %1335 = vmatprep.subr.mxu0 0.0
    %1336 = vmatpush1.msra.mxu0 0.0
    %1337 = vmatprep.subr.mxu0 0.0
    %1338 = vmatpush1.msra.mxu0 0.0
    %1339 = vmatprep.subr.mxu0 0.0
    %1340 = vmatpush1.msra.mxu0 0.0
    %1341 = vmatprep.subr.mxu0 0.0
    %1342 = vmatpush1.msra.mxu0 0.0
    %1343 = vmatprep.subr.mxu0 0.0
    %1344 = vmatpush1.msra.mxu0 0.0
    %1345 = vmatprep.mubr.f32.mxu0 0.0
    %1346 = vmatmul.mubr.f32.gmra.mrb[0].mxu0 %v1264
    %v1347 = vpop.f32.mrb[0].mxu0
    %v1348 = vadd.f32 %v53, %v1347
    %v1349 = vpop.f32.mrb[0].mxu0
    %1350 = vdwg.mxu0
    %v1351 = vxor.u32 %v1348, 2147483648
    %v1352 = vmul.f32 %v1351, 1.442695
    %v1353 = vpow.pop %v1352
    %v1354 = vadd.f32 %v1353, 1.0
    %v1355 = vrcp.pop %v1354
    %v1356 = vmul.f32 1.0, %v1355
    %v1357 = vtanh.pop %v1348
    %1358 = vrot.lane.b32.xlu0 %v1356, 96
    %v1359 = vpop.permute.xlu0 %1358
    %1360 = vrot.lane.b32.xlu0 %v1357, 64
    %v1361 = vpop.permute.xlu0 %1360
    %1362 = vrot.lane.b32.xlu0 %v1356, 32
    %v1363 = vpop.permute.xlu0 %1362
    %v1364 = vmul.f32 %v1359, %v1147
    %v1365 = vmul.f32 %v1356, %v1361
    %v1366 = vadd.f32 %v1364, %v1365
    %v1367 = vsel %vm39, %v1366, 0.0
    %v1368 = vtanh.pop %v1367
    %v1369 = vmul.f32 %v1363, %v1368
    %s1370 = scalar_lea.vmem [#allocation2], 40
    %1371 = vst [vmem:[%s1370] sm:$0xff] %v1369
    %s1372 = scalar_lea.vmem %s0, 48
    %v1373 = vld [vmem:[%s1372] sm:$0xff]
    %1374 = vrot.lane.b32.xlu0 %v1261, 32
    %v1375 = vpop.permute.xlu0 %1374
    %v1376 = vadd.f32 %v1373, %v1375
    %v1377 = vld [vmem:[%s1] sm:$0xff]
    %v1378 = vld [vmem:[%s1 + $0x8] sm:$0xff]
    %v1379 = vld [vmem:[%s1 + $0x10] sm:$0xff]
    %v1380 = vld [vmem:[%s1 + $0x18] sm:$0xff]
    %v1381 = vld [vmem:[%s1 + $0x20] sm:$0xff]
    %v1382 = vld [vmem:[%s1 + $0x28] sm:$0xff]
    %v1383 = vld [vmem:[%s1 + $0x30] sm:$0xff]
    %v1384 = vld [vmem:[%s1 + $0x38] sm:$0xff]
    %v1385 = vld [vmem:[%s1 + $0x40] sm:$0xff]
    %v1386 = vld [vmem:[%s1 + $0x48] sm:$0xff]
    %v1387 = vld [vmem:[%s1 + $0x50] sm:$0xff]
    %v1388 = vld [vmem:[%s1 + $0x58] sm:$0xff]
    %v1389 = vld [vmem:[%s1 + $0x60] sm:$0xff]
    %v1390 = vld [vmem:[%s1 + $0x68] sm:$0xff]
    %v1391 = vld [vmem:[%s1 + $0x70] sm:$0xff]
    %v1392 = vld [vmem:[%s1 + $0x78] sm:$0xff]
    %1393 = vmatprep.subr.mxu0 0.0
    %1394 = vmatpush1.msra.mxu0 %v1377
    %1395 = vmatprep.subr.mxu0 0.0
    %1396 = vmatpush1.msra.mxu0 %v1378
    %1397 = vmatprep.subr.mxu0 0.0
    %1398 = vmatpush1.msra.mxu0 %v1379
    %1399 = vmatprep.subr.mxu0 0.0
    %1400 = vmatpush1.msra.mxu0 %v1380
    %1401 = vmatprep.subr.mxu0 0.0
    %1402 = vmatpush1.msra.mxu0 %v1381
    %1403 = vmatprep.subr.mxu0 0.0
    %1404 = vmatpush1.msra.mxu0 %v1382
    %1405 = vmatprep.subr.mxu0 0.0
    %1406 = vmatpush1.msra.mxu0 %v1383
    %1407 = vmatprep.subr.mxu0 0.0
    %1408 = vmatpush1.msra.mxu0 %v1384
    %1409 = vmatprep.subr.mxu0 0.0
    %1410 = vmatpush1.msra.mxu0 %v1385
    %1411 = vmatprep.subr.mxu0 0.0
    %1412 = vmatpush1.msra.mxu0 %v1386
    %1413 = vmatprep.subr.mxu0 0.0
    %1414 = vmatpush1.msra.mxu0 %v1387
    %1415 = vmatprep.subr.mxu0 0.0
    %1416 = vmatpush1.msra.mxu0 %v1388
    %1417 = vmatprep.subr.mxu0 0.0
    %1418 = vmatpush1.msra.mxu0 %v1389
    %1419 = vmatprep.subr.mxu0 0.0
    %1420 = vmatpush1.msra.mxu0 %v1390
    %1421 = vmatprep.subr.mxu0 0.0
    %1422 = vmatpush1.msra.mxu0 %v1391
    %1423 = vmatprep.subr.mxu0 0.0
    %1424 = vmatpush1.msra.mxu0 %v1392
    %1425 = vmatprep.subr.mxu0 0.0
    %1426 = vmatpush1.msra.mxu0 0.0
    %1427 = vmatprep.subr.mxu0 0.0
    %1428 = vmatpush1.msra.mxu0 0.0
    %1429 = vmatprep.subr.mxu0 0.0
    %1430 = vmatpush1.msra.mxu0 0.0
    %1431 = vmatprep.subr.mxu0 0.0
    %1432 = vmatpush1.msra.mxu0 0.0
    %1433 = vmatprep.subr.mxu0 0.0
    %1434 = vmatpush1.msra.mxu0 0.0
    %1435 = vmatprep.subr.mxu0 0.0
    %1436 = vmatpush1.msra.mxu0 0.0
    %1437 = vmatprep.subr.mxu0 0.0
    %1438 = vmatpush1.msra.mxu0 0.0
    %1439 = vmatprep.subr.mxu0 0.0
    %1440 = vmatpush1.msra.mxu0 0.0
    %1441 = vmatprep.subr.mxu0 0.0
    %1442 = vmatpush1.msra.mxu0 0.0
    %1443 = vmatprep.subr.mxu0 0.0
    %1444 = vmatpush1.msra.mxu0 0.0
    %1445 = vmatprep.subr.mxu0 0.0
    %1446 = vmatpush1.msra.mxu0 0.0
    %1447 = vmatprep.subr.mxu0 0.0
    %1448 = vmatpush1.msra.mxu0 0.0
    %1449 = vmatprep.subr.mxu0 0.0
    %1450 = vmatpush1.msra.mxu0 0.0
    %1451 = vmatprep.subr.mxu0 0.0
    %1452 = vmatpush1.msra.mxu0 0.0
    %1453 = vmatprep.subr.mxu0 0.0
    %1454 = vmatpush1.msra.mxu0 0.0
    %1455 = vmatprep.subr.mxu0 0.0
    %1456 = vmatpush1.msra.mxu0 0.0
    %1457 = vmatprep.mubr.f32.mxu0 0.0
    %1458 = vmatmul.mubr.f32.gmra.mrb[0].mxu0 %v1376
    %v1459 = vpop.f32.mrb[0].mxu0
    %v1460 = vadd.f32 %v45, %v1459
    %v1461 = vpop.f32.mrb[0].mxu0
    %1462 = vdwg.mxu0
    %v1463 = vxor.u32 %v1460, 2147483648
    %v1464 = vmul.f32 %v1463, 1.442695
    %v1465 = vpow.pop %v1464
    %v1466 = vadd.f32 %v1465, 1.0
    %v1467 = vrcp.pop %v1466
    %v1468 = vmul.f32 1.0, %v1467
    %v1469 = vtanh.pop %v1460
    %1470 = vrot.lane.b32.xlu0 %v1468, 96
    %v1471 = vpop.permute.xlu0 %1470
    %1472 = vrot.lane.b32.xlu0 %v1469, 64
    %v1473 = vpop.permute.xlu0 %1472
    %1474 = vrot.lane.b32.xlu0 %v1468, 32
    %v1475 = vpop.permute.xlu0 %1474
    %v1476 = vmul.f32 %v1471, %v1259
    %v1477 = vmul.f32 %v1468, %v1473
    %v1478 = vadd.f32 %v1476, %v1477
    %v1479 = vsel %vm39, %v1478, 0.0
    %v1480 = vtanh.pop %v1479
    %v1481 = vmul.f32 %v1475, %v1480
    %1482 = vrot.lane.b32.xlu0 %v1369, 32
    %v1483 = vpop.permute.xlu0 %1482
    %v1484 = vadd.f32 %v1481, %v1483
    %v1485 = vld [vmem:[%s165] sm:$0xff]
    %v1486 = vld [vmem:[%s165 + $0x8] sm:$0xff]
    %v1487 = vld [vmem:[%s165 + $0x10] sm:$0xff]
    %v1488 = vld [vmem:[%s165 + $0x18] sm:$0xff]
    %v1489 = vld [vmem:[%s165 + $0x20] sm:$0xff]
    %v1490 = vld [vmem:[%s165 + $0x28] sm:$0xff]
    %v1491 = vld [vmem:[%s165 + $0x30] sm:$0xff]
    %v1492 = vld [vmem:[%s165 + $0x38] sm:$0xff]
    %v1493 = vld [vmem:[%s165 + $0x40] sm:$0xff]
    %v1494 = vld [vmem:[%s165 + $0x48] sm:$0xff]
    %v1495 = vld [vmem:[%s165 + $0x50] sm:$0xff]
    %v1496 = vld [vmem:[%s165 + $0x58] sm:$0xff]
    %v1497 = vld [vmem:[%s165 + $0x60] sm:$0xff]
    %v1498 = vld [vmem:[%s165 + $0x68] sm:$0xff]
    %v1499 = vld [vmem:[%s165 + $0x70] sm:$0xff]
    %v1500 = vld [vmem:[%s165 + $0x78] sm:$0xff]
    %1501 = vmatprep.subr.mxu0 0.0
    %1502 = vmatpush1.msra.mxu0 %v1485
    %1503 = vmatprep.subr.mxu0 0.0
    %1504 = vmatpush1.msra.mxu0 %v1486
    %1505 = vmatprep.subr.mxu0 0.0
    %1506 = vmatpush1.msra.mxu0 %v1487
    %1507 = vmatprep.subr.mxu0 0.0
    %1508 = vmatpush1.msra.mxu0 %v1488
    %1509 = vmatprep.subr.mxu0 0.0
    %1510 = vmatpush1.msra.mxu0 %v1489
    %1511 = vmatprep.subr.mxu0 0.0
    %1512 = vmatpush1.msra.mxu0 %v1490
    %1513 = vmatprep.subr.mxu0 0.0
    %1514 = vmatpush1.msra.mxu0 %v1491
    %1515 = vmatprep.subr.mxu0 0.0
    %1516 = vmatpush1.msra.mxu0 %v1492
    %1517 = vmatprep.subr.mxu0 0.0
    %1518 = vmatpush1.msra.mxu0 %v1493
    %1519 = vmatprep.subr.mxu0 0.0
    %1520 = vmatpush1.msra.mxu0 %v1494
    %1521 = vmatprep.subr.mxu0 0.0
    %1522 = vmatpush1.msra.mxu0 %v1495
    %1523 = vmatprep.subr.mxu0 0.0
    %1524 = vmatpush1.msra.mxu0 %v1496
    %1525 = vmatprep.subr.mxu0 0.0
    %1526 = vmatpush1.msra.mxu0 %v1497
    %1527 = vmatprep.subr.mxu0 0.0
    %1528 = vmatpush1.msra.mxu0 %v1498
    %1529 = vmatprep.subr.mxu0 0.0
    %1530 = vmatpush1.msra.mxu0 %v1499
    %1531 = vmatprep.subr.mxu0 0.0
    %1532 = vmatpush1.msra.mxu0 %v1500
    %1533 = vmatprep.subr.mxu0 0.0
    %1534 = vmatpush1.msra.mxu0 0.0
    %1535 = vmatprep.subr.mxu0 0.0
    %1536 = vmatpush1.msra.mxu0 0.0
    %1537 = vmatprep.subr.mxu0 0.0
    %1538 = vmatpush1.msra.mxu0 0.0
    %1539 = vmatprep.subr.mxu0 0.0
    %1540 = vmatpush1.msra.mxu0 0.0
    %1541 = vmatprep.subr.mxu0 0.0
    %1542 = vmatpush1.msra.mxu0 0.0
    %1543 = vmatprep.subr.mxu0 0.0
    %1544 = vmatpush1.msra.mxu0 0.0
    %1545 = vmatprep.subr.mxu0 0.0
    %1546 = vmatpush1.msra.mxu0 0.0
    %1547 = vmatprep.subr.mxu0 0.0
    %1548 = vmatpush1.msra.mxu0 0.0
    %1549 = vmatprep.subr.mxu0 0.0
    %1550 = vmatpush1.msra.mxu0 0.0
    %1551 = vmatprep.subr.mxu0 0.0
    %1552 = vmatpush1.msra.mxu0 0.0
    %1553 = vmatprep.subr.mxu0 0.0
    %1554 = vmatpush1.msra.mxu0 0.0
    %1555 = vmatprep.subr.mxu0 0.0
    %1556 = vmatpush1.msra.mxu0 0.0
    %1557 = vmatprep.subr.mxu0 0.0
    %1558 = vmatpush1.msra.mxu0 0.0
    %1559 = vmatprep.subr.mxu0 0.0
    %1560 = vmatpush1.msra.mxu0 0.0
    %1561 = vmatprep.subr.mxu0 0.0
    %1562 = vmatpush1.msra.mxu0 0.0
    %1563 = vmatprep.subr.mxu0 0.0
    %1564 = vmatpush1.msra.mxu0 0.0
    %1565 = vmatprep.mubr.f32.mxu0 0.0
    %1566 = vmatmul.mubr.f32.gmra.mrb[0].mxu0 %v1484
    %v1567 = vpop.f32.mrb[0].mxu0
    %v1568 = vadd.f32 %v53, %v1567
    %v1569 = vpop.f32.mrb[0].mxu0
    %1570 = vdwg.mxu0
    %v1571 = vxor.u32 %v1568, 2147483648
    %v1572 = vmul.f32 %v1571, 1.442695
    %v1573 = vpow.pop %v1572
    %v1574 = vadd.f32 %v1573, 1.0
    %v1575 = vrcp.pop %v1574
    %v1576 = vmul.f32 1.0, %v1575
    %v1577 = vtanh.pop %v1568
    %1578 = vrot.lane.b32.xlu0 %v1576, 96
    %v1579 = vpop.permute.xlu0 %1578
    %1580 = vrot.lane.b32.xlu0 %v1577, 64
    %v1581 = vpop.permute.xlu0 %1580
    %1582 = vrot.lane.b32.xlu0 %v1576, 32
    %v1583 = vpop.permute.xlu0 %1582
    %v1584 = vmul.f32 %v1579, %v1367
    %v1585 = vmul.f32 %v1576, %v1581
    %v1586 = vadd.f32 %v1584, %v1585
    %v1587 = vsel %vm39, %v1586, 0.0
    %v1588 = vtanh.pop %v1587
    %v1589 = vmul.f32 %v1583, %v1588
    %s1590 = scalar_lea.vmem [#allocation2], 48
    %1591 = vst [vmem:[%s1590] sm:$0xff] %v1589
    %s1592 = scalar_lea.vmem %s0, 56
    %v1593 = vld [vmem:[%s1592] sm:$0xff]
    %1594 = vrot.lane.b32.xlu0 %v1481, 32
    %v1595 = vpop.permute.xlu0 %1594
    %v1596 = vadd.f32 %v1593, %v1595
    %v1597 = vld [vmem:[%s1] sm:$0xff]
    %v1598 = vld [vmem:[%s1 + $0x8] sm:$0xff]
    %v1599 = vld [vmem:[%s1 + $0x10] sm:$0xff]
    %v1600 = vld [vmem:[%s1 + $0x18] sm:$0xff]
    %v1601 = vld [vmem:[%s1 + $0x20] sm:$0xff]
    %v1602 = vld [vmem:[%s1 + $0x28] sm:$0xff]
    %v1603 = vld [vmem:[%s1 + $0x30] sm:$0xff]
    %v1604 = vld [vmem:[%s1 + $0x38] sm:$0xff]
    %v1605 = vld [vmem:[%s1 + $0x40] sm:$0xff]
    %v1606 = vld [vmem:[%s1 + $0x48] sm:$0xff]
    %v1607 = vld [vmem:[%s1 + $0x50] sm:$0xff]
    %v1608 = vld [vmem:[%s1 + $0x58] sm:$0xff]
    %v1609 = vld [vmem:[%s1 + $0x60] sm:$0xff]
    %v1610 = vld [vmem:[%s1 + $0x68] sm:$0xff]
    %v1611 = vld [vmem:[%s1 + $0x70] sm:$0xff]
    %v1612 = vld [vmem:[%s1 + $0x78] sm:$0xff]
    %1613 = vmatprep.subr.mxu0 0.0
    %1614 = vmatpush1.msra.mxu0 %v1597
    %1615 = vmatprep.subr.mxu0 0.0
    %1616 = vmatpush1.msra.mxu0 %v1598
    %1617 = vmatprep.subr.mxu0 0.0
    %1618 = vmatpush1.msra.mxu0 %v1599
    %1619 = vmatprep.subr.mxu0 0.0
    %1620 = vmatpush1.msra.mxu0 %v1600
    %1621 = vmatprep.subr.mxu0 0.0
    %1622 = vmatpush1.msra.mxu0 %v1601
    %1623 = vmatprep.subr.mxu0 0.0
    %1624 = vmatpush1.msra.mxu0 %v1602
    %1625 = vmatprep.subr.mxu0 0.0
    %1626 = vmatpush1.msra.mxu0 %v1603
    %1627 = vmatprep.subr.mxu0 0.0
    %1628 = vmatpush1.msra.mxu0 %v1604
    %1629 = vmatprep.subr.mxu0 0.0
    %1630 = vmatpush1.msra.mxu0 %v1605
    %1631 = vmatprep.subr.mxu0 0.0
    %1632 = vmatpush1.msra.mxu0 %v1606
    %1633 = vmatprep.subr.mxu0 0.0
    %1634 = vmatpush1.msra.mxu0 %v1607
    %1635 = vmatprep.subr.mxu0 0.0
    %1636 = vmatpush1.msra.mxu0 %v1608
    %1637 = vmatprep.subr.mxu0 0.0
    %1638 = vmatpush1.msra.mxu0 %v1609
    %1639 = vmatprep.subr.mxu0 0.0
    %1640 = vmatpush1.msra.mxu0 %v1610
    %1641 = vmatprep.subr.mxu0 0.0
    %1642 = vmatpush1.msra.mxu0 %v1611
    %1643 = vmatprep.subr.mxu0 0.0
    %1644 = vmatpush1.msra.mxu0 %v1612
    %1645 = vmatprep.subr.mxu0 0.0
    %1646 = vmatpush1.msra.mxu0 0.0
    %1647 = vmatprep.subr.mxu0 0.0
    %1648 = vmatpush1.msra.mxu0 0.0
    %1649 = vmatprep.subr.mxu0 0.0
    %1650 = vmatpush1.msra.mxu0 0.0
    %1651 = vmatprep.subr.mxu0 0.0
    %1652 = vmatpush1.msra.mxu0 0.0
    %1653 = vmatprep.subr.mxu0 0.0
    %1654 = vmatpush1.msra.mxu0 0.0
    %1655 = vmatprep.subr.mxu0 0.0
    %1656 = vmatpush1.msra.mxu0 0.0
    %1657 = vmatprep.subr.mxu0 0.0
    %1658 = vmatpush1.msra.mxu0 0.0
    %1659 = vmatprep.subr.mxu0 0.0
    %1660 = vmatpush1.msra.mxu0 0.0
    %1661 = vmatprep.subr.mxu0 0.0
    %1662 = vmatpush1.msra.mxu0 0.0
    %1663 = vmatprep.subr.mxu0 0.0
    %1664 = vmatpush1.msra.mxu0 0.0
    %1665 = vmatprep.subr.mxu0 0.0
    %1666 = vmatpush1.msra.mxu0 0.0
    %1667 = vmatprep.subr.mxu0 0.0
    %1668 = vmatpush1.msra.mxu0 0.0
    %1669 = vmatprep.subr.mxu0 0.0
    %1670 = vmatpush1.msra.mxu0 0.0
    %1671 = vmatprep.subr.mxu0 0.0
    %1672 = vmatpush1.msra.mxu0 0.0
    %1673 = vmatprep.subr.mxu0 0.0
    %1674 = vmatpush1.msra.mxu0 0.0
    %1675 = vmatprep.subr.mxu0 0.0
    %1676 = vmatpush1.msra.mxu0 0.0
    %1677 = vmatprep.mubr.f32.mxu0 0.0
    %1678 = vmatmul.mubr.f32.gmra.mrb[0].mxu0 %v1596
    %v1679 = vpop.f32.mrb[0].mxu0
    %v1680 = vadd.f32 %v45, %v1679
    %v1681 = vpop.f32.mrb[0].mxu0
    %1682 = vdwg.mxu0
    %v1683 = vxor.u32 %v1680, 2147483648
    %v1684 = vmul.f32 %v1683, 1.442695
    %v1685 = vpow.pop %v1684
    %v1686 = vadd.f32 %v1685, 1.0
    %v1687 = vrcp.pop %v1686
    %v1688 = vmul.f32 1.0, %v1687
    %v1689 = vtanh.pop %v1680
    %1690 = vrot.lane.b32.xlu0 %v1688, 96
    %v1691 = vpop.permute.xlu0 %1690
    %1692 = vrot.lane.b32.xlu0 %v1689, 64
    %v1693 = vpop.permute.xlu0 %1692
    %1694 = vrot.lane.b32.xlu0 %v1688, 32
    %v1695 = vpop.permute.xlu0 %1694
    %v1696 = vmul.f32 %v1691, %v1479
    %v1697 = vmul.f32 %v1688, %v1693
    %v1698 = vadd.f32 %v1696, %v1697
    %v1699 = vsel %vm39, %v1698, 0.0
    %v1700 = vtanh.pop %v1699
    %v1701 = vmul.f32 %v1695, %v1700
    %1702 = vrot.lane.b32.xlu0 %v1589, 32
    %v1703 = vpop.permute.xlu0 %1702
    %v1704 = vadd.f32 %v1701, %v1703
    %v1705 = vld [vmem:[%s165] sm:$0xff]
    %v1706 = vld [vmem:[%s165 + $0x8] sm:$0xff]
    %v1707 = vld [vmem:[%s165 + $0x10] sm:$0xff]
    %v1708 = vld [vmem:[%s165 + $0x18] sm:$0xff]
    %v1709 = vld [vmem:[%s165 + $0x20] sm:$0xff]
    %v1710 = vld [vmem:[%s165 + $0x28] sm:$0xff]
    %v1711 = vld [vmem:[%s165 + $0x30] sm:$0xff]
    %v1712 = vld [vmem:[%s165 + $0x38] sm:$0xff]
    %v1713 = vld [vmem:[%s165 + $0x40] sm:$0xff]
    %v1714 = vld [vmem:[%s165 + $0x48] sm:$0xff]
    %v1715 = vld [vmem:[%s165 + $0x50] sm:$0xff]
    %v1716 = vld [vmem:[%s165 + $0x58] sm:$0xff]
    %v1717 = vld [vmem:[%s165 + $0x60] sm:$0xff]
    %v1718 = vld [vmem:[%s165 + $0x68] sm:$0xff]
    %v1719 = vld [vmem:[%s165 + $0x70] sm:$0xff]
    %v1720 = vld [vmem:[%s165 + $0x78] sm:$0xff]
    %1721 = vmatprep.subr.mxu0 0.0
    %1722 = vmatpush1.msra.mxu0 %v1705
    %1723 = vmatprep.subr.mxu0 0.0
    %1724 = vmatpush1.msra.mxu0 %v1706
    %1725 = vmatprep.subr.mxu0 0.0
    %1726 = vmatpush1.msra.mxu0 %v1707
    %1727 = vmatprep.subr.mxu0 0.0
    %1728 = vmatpush1.msra.mxu0 %v1708
    %1729 = vmatprep.subr.mxu0 0.0
    %1730 = vmatpush1.msra.mxu0 %v1709
    %1731 = vmatprep.subr.mxu0 0.0
    %1732 = vmatpush1.msra.mxu0 %v1710
    %1733 = vmatprep.subr.mxu0 0.0
    %1734 = vmatpush1.msra.mxu0 %v1711
    %1735 = vmatprep.subr.mxu0 0.0
    %1736 = vmatpush1.msra.mxu0 %v1712
    %1737 = vmatprep.subr.mxu0 0.0
    %1738 = vmatpush1.msra.mxu0 %v1713
    %1739 = vmatprep.subr.mxu0 0.0
    %1740 = vmatpush1.msra.mxu0 %v1714
    %1741 = vmatprep.subr.mxu0 0.0
    %1742 = vmatpush1.msra.mxu0 %v1715
    %1743 = vmatprep.subr.mxu0 0.0
    %1744 = vmatpush1.msra.mxu0 %v1716
    %1745 = vmatprep.subr.mxu0 0.0
    %1746 = vmatpush1.msra.mxu0 %v1717
    %1747 = vmatprep.subr.mxu0 0.0
    %1748 = vmatpush1.msra.mxu0 %v1718
    %1749 = vmatprep.subr.mxu0 0.0
    %1750 = vmatpush1.msra.mxu0 %v1719
    %1751 = vmatprep.subr.mxu0 0.0
    %1752 = vmatpush1.msra.mxu0 %v1720
    %1753 = vmatprep.subr.mxu0 0.0
    %1754 = vmatpush1.msra.mxu0 0.0
    %1755 = vmatprep.subr.mxu0 0.0
    %1756 = vmatpush1.msra.mxu0 0.0
    %1757 = vmatprep.subr.mxu0 0.0
    %1758 = vmatpush1.msra.mxu0 0.0
    %1759 = vmatprep.subr.mxu0 0.0
    %1760 = vmatpush1.msra.mxu0 0.0
    %1761 = vmatprep.subr.mxu0 0.0
    %1762 = vmatpush1.msra.mxu0 0.0
    %1763 = vmatprep.subr.mxu0 0.0
    %1764 = vmatpush1.msra.mxu0 0.0
    %1765 = vmatprep.subr.mxu0 0.0
    %1766 = vmatpush1.msra.mxu0 0.0
    %1767 = vmatprep.subr.mxu0 0.0
    %1768 = vmatpush1.msra.mxu0 0.0
    %1769 = vmatprep.subr.mxu0 0.0
    %1770 = vmatpush1.msra.mxu0 0.0
    %1771 = vmatprep.subr.mxu0 0.0
    %1772 = vmatpush1.msra.mxu0 0.0
    %1773 = vmatprep.subr.mxu0 0.0
    %1774 = vmatpush1.msra.mxu0 0.0
    %1775 = vmatprep.subr.mxu0 0.0
    %1776 = vmatpush1.msra.mxu0 0.0
    %1777 = vmatprep.subr.mxu0 0.0
    %1778 = vmatpush1.msra.mxu0 0.0
    %1779 = vmatprep.subr.mxu0 0.0
    %1780 = vmatpush1.msra.mxu0 0.0
    %1781 = vmatprep.subr.mxu0 0.0
    %1782 = vmatpush1.msra.mxu0 0.0
    %1783 = vmatprep.subr.mxu0 0.0
    %1784 = vmatpush1.msra.mxu0 0.0
    %1785 = vmatprep.mubr.f32.mxu0 0.0
    %1786 = vmatmul.mubr.f32.gmra.mrb[0].mxu0 %v1704
    %v1787 = vpop.f32.mrb[0].mxu0
    %v1788 = vadd.f32 %v53, %v1787
    %v1789 = vpop.f32.mrb[0].mxu0
    %1790 = vdwg.mxu0
    %v1791 = vxor.u32 %v1788, 2147483648
    %v1792 = vmul.f32 %v1791, 1.442695
    %v1793 = vpow.pop %v1792
    %v1794 = vadd.f32 %v1793, 1.0
    %v1795 = vrcp.pop %v1794
    %v1796 = vmul.f32 1.0, %v1795
    %v1797 = vtanh.pop %v1788
    %1798 = vrot.lane.b32.xlu0 %v1796, 96
    %v1799 = vpop.permute.xlu0 %1798
    %1800 = vrot.lane.b32.xlu0 %v1797, 64
    %v1801 = vpop.permute.xlu0 %1800
    %1802 = vrot.lane.b32.xlu0 %v1796, 32
    %v1803 = vpop.permute.xlu0 %1802
    %v1804 = vmul.f32 %v1799, %v1587
    %v1805 = vmul.f32 %v1796, %v1801
    %v1806 = vadd.f32 %v1804, %v1805
    %v1807 = vsel %vm39, %v1806, 0.0
    %v1808 = vtanh.pop %v1807
    %v1809 = vmul.f32 %v1803, %v1808
    %s1810 = scalar_lea.vmem [#allocation2], 56
    %1811 = vst [vmem:[%s1810] sm:$0xff] %v1809
    %1812 = vst [vmem:[%s6] sm:$0xff] %v1701
    %1813 = vst [vmem:[%s7] sm:$0xff] %v1699
    %s1814 = scalar_lea.vmem %s6, 8
    %1815 = vst [vmem:[%s1814] sm:$0xff] %v1809
    %s1816 = scalar_lea.vmem %s7, 8
    %1817 = vst [vmem:[%s1816] sm:$0xff] %v1807
    %v1818 = vld [vmem:[#allocation2] sm:$0xff]
    %v1819 = vld [vmem:[#allocation2 + $0x8] sm:$0xff]
    %v1820 = vld [vmem:[#allocation2 + $0x10] sm:$0xff]
    %v1821 = vld [vmem:[#allocation2 + $0x18] sm:$0xff]
    %v1822 = vld [vmem:[#allocation2 + $0x20] sm:$0xff]
    %v1823 = vld [vmem:[#allocation2 + $0x28] sm:$0xff]
    %v1824 = vld [vmem:[#allocation2 + $0x30] sm:$0xff]
    %v1825 = vld [vmem:[#allocation2 + $0x38] sm:$0xff]
    %v1826 = vld [vmem:[#allocation3] sm:$0xff]
    %v1827 = vld [vmem:[#allocation3 + $0x8] sm:$0xff]
    %v1828 = vld [vmem:[#allocation3 + $0x10] sm:$0xff]
    %v1829 = vld [vmem:[#allocation3 + $0x18] sm:$0xff]
    %v1830 = vld [vmem:[#allocation3 + $0x20] sm:$0xff]
    %v1831 = vld [vmem:[#allocation3 + $0x28] sm:$0xff]
    %v1832 = vld [vmem:[#allocation3 + $0x30] sm:$0xff]
    %v1833 = vld [vmem:[#allocation3 + $0x38] sm:$0xff]
    %v1834 = vld [vmem:[#allocation3 + $0x40] sm:$0xff]
    %v1835 = vld [vmem:[#allocation3 + $0x48] sm:$0xff]
    %v1836 = vld [vmem:[#allocation3 + $0x50] sm:$0xff]
    %v1837 = vld [vmem:[#allocation3 + $0x58] sm:$0xff]
    %v1838 = vld [vmem:[#allocation3 + $0x60] sm:$0xff]
    %v1839 = vld [vmem:[#allocation3 + $0x68] sm:$0xff]
    %v1840 = vld [vmem:[#allocation3 + $0x70] sm:$0xff]
    %v1841 = vld [vmem:[#allocation3 + $0x78] sm:$0xff]
    %v1842 = vld [vmem:[%s4] sm:$0x1]
    %v1844 = vlaneseq
    %v1845 = vshrl.u32 %v1844, 7
    %v1846 = vsub.s32 0, %v1845
    %v1847 = vrot.slane %v1842, %v1846
    %1849 = vmatprep.subr.mxu0 0.0
    %1850 = vmatpush1.msra.mxu0 %v1826
    %1851 = vmatprep.subr.mxu0 0.0
    %1852 = vmatpush1.msra.mxu0 %v1827
    %1853 = vmatprep.subr.mxu0 0.0
    %1854 = vmatpush1.msra.mxu0 %v1828
    %1855 = vmatprep.subr.mxu0 0.0
    %1856 = vmatpush1.msra.mxu0 %v1829
    %1857 = vmatprep.subr.mxu0 0.0
    %1858 = vmatpush1.msra.mxu0 %v1830
    %1859 = vmatprep.subr.mxu0 0.0
    %1860 = vmatpush1.msra.mxu0 %v1831
    %1861 = vmatprep.subr.mxu0 0.0
    %1862 = vmatpush1.msra.mxu0 %v1832
    %1863 = vmatprep.subr.mxu0 0.0
    %1864 = vmatpush1.msra.mxu0 %v1833
    %1865 = vmatprep.subr.mxu0 0.0
    %1866 = vmatpush1.msra.mxu0 %v1834
    %1867 = vmatprep.subr.mxu0 0.0
    %1868 = vmatpush1.msra.mxu0 %v1835
    %1869 = vmatprep.subr.mxu0 0.0
    %1870 = vmatpush1.msra.mxu0 %v1836
    %1871 = vmatprep.subr.mxu0 0.0
    %1872 = vmatpush1.msra.mxu0 %v1837
    %1873 = vmatprep.subr.mxu0 0.0
    %1874 = vmatpush1.msra.mxu0 %v1838
    %1875 = vmatprep.subr.mxu0 0.0
    %1876 = vmatpush1.msra.mxu0 %v1839
    %1877 = vmatprep.subr.mxu0 0.0
    %1878 = vmatpush1.msra.mxu0 %v1840
    %1879 = vmatprep.subr.mxu0 0.0
    %1880 = vmatpush1.msra.mxu0 %v1841
    %1881 = vmatprep.subr.mxu0 0.0
    %1882 = vmatpush1.msra.mxu0 0.0
    %1883 = vmatprep.subr.mxu0 0.0
    %1884 = vmatpush1.msra.mxu0 0.0
    %1885 = vmatprep.subr.mxu0 0.0
    %1886 = vmatpush1.msra.mxu0 0.0
    %1887 = vmatprep.subr.mxu0 0.0
    %1888 = vmatpush1.msra.mxu0 0.0
    %1889 = vmatprep.subr.mxu0 0.0
    %1890 = vmatpush1.msra.mxu0 0.0
    %1891 = vmatprep.subr.mxu0 0.0
    %1892 = vmatpush1.msra.mxu0 0.0
    %1893 = vmatprep.subr.mxu0 0.0
    %1894 = vmatpush1.msra.mxu0 0.0
    %1895 = vmatprep.subr.mxu0 0.0
    %1896 = vmatpush1.msra.mxu0 0.0
    %1897 = vmatprep.subr.mxu0 0.0
    %1898 = vmatpush1.msra.mxu0 0.0
    %1899 = vmatprep.subr.mxu0 0.0
    %1900 = vmatpush1.msra.mxu0 0.0
    %1901 = vmatprep.subr.mxu0 0.0
    %1902 = vmatpush1.msra.mxu0 0.0
    %1903 = vmatprep.subr.mxu0 0.0
    %1904 = vmatpush1.msra.mxu0 0.0
    %1905 = vmatprep.subr.mxu0 0.0
    %1906 = vmatpush1.msra.mxu0 0.0
    %1907 = vmatprep.subr.mxu0 0.0
    %1908 = vmatpush1.msra.mxu0 0.0
    %1909 = vmatprep.subr.mxu0 0.0
    %1910 = vmatpush1.msra.mxu0 0.0
    %1911 = vmatprep.subr.mxu0 0.0
    %1912 = vmatpush1.msra.mxu0 0.0
    %1913 = vmatprep.mubr.f32.mxu0 0.0
    %1914 = vmatmul.mubr.f32.gmra.mrb[0].mxu0 %v1818
    %v1915 = vpop.f32.mrb[0].mxu0
    %v1916 = vadd.f32 %v1847, %v1915
    %v1917 = vpop.f32.mrb[0].mxu0
    %1918 = vmatprep.mubr.f32.mxu0 0.0
    %1919 = vmatmul.mubr.f32.gmra.mrb[0].mxu0 %v1819
    %v1920 = vpop.f32.mrb[0].mxu0
    %v1921 = vadd.f32 %v1847, %v1920
    %v1922 = vpop.f32.mrb[0].mxu0
    %1923 = vmatprep.mubr.f32.mxu0 0.0
    %1924 = vmatmul.mubr.f32.gmra.mrb[0].mxu0 %v1820
    %v1925 = vpop.f32.mrb[0].mxu0
    %v1926 = vadd.f32 %v1847, %v1925
    %v1927 = vpop.f32.mrb[0].mxu0
    %1928 = vmatprep.mubr.f32.mxu0 0.0
    %1929 = vmatmul.mubr.f32.gmra.mrb[0].mxu0 %v1821
    %v1930 = vpop.f32.mrb[0].mxu0
    %v1931 = vadd.f32 %v1847, %v1930
    %v1932 = vpop.f32.mrb[0].mxu0
    %1933 = vmatprep.mubr.f32.mxu0 0.0
    %1934 = vmatmul.mubr.f32.gmra.mrb[0].mxu0 %v1822
    %v1935 = vpop.f32.mrb[0].mxu0
    %v1936 = vadd.f32 %v1847, %v1935
    %v1937 = vpop.f32.mrb[0].mxu0
    %1938 = vmatprep.mubr.f32.mxu0 0.0
    %1939 = vmatmul.mubr.f32.gmra.mrb[0].mxu0 %v1823
    %v1940 = vpop.f32.mrb[0].mxu0
    %v1941 = vadd.f32 %v1847, %v1940
    %v1942 = vpop.f32.mrb[0].mxu0
    %1943 = vmatprep.mubr.f32.mxu0 0.0
    %1944 = vmatmul.mubr.f32.gmra.mrb[0].mxu0 %v1824
    %v1945 = vpop.f32.mrb[0].mxu0
    %v1946 = vadd.f32 %v1847, %v1945
    %v1947 = vpop.f32.mrb[0].mxu0
    %1948 = vmatprep.mubr.f32.mxu0 0.0
    %1949 = vmatmul.mubr.f32.gmra.mrb[0].mxu0 %v1825
    %v1950 = vpop.f32.mrb[0].mxu0
    %v1951 = vadd.f32 %v1847, %v1950
    %v1952 = vpop.f32.mrb[0].mxu0
    %1953 = vdwg.mxu0
    %1954 = vmax.xlane.f32.xlu0 %v1916
    %v1955 = vpop.xlane.xlu0 %1954
    %1956 = vmax.xlane.f32.xlu0 %v1921
    %v1957 = vpop.xlane.xlu0 %1956
    %1958 = vmax.xlane.f32.xlu0 %v1926
    %v1959 = vpop.xlane.xlu0 %1958
    %1960 = vmax.xlane.f32.xlu0 %v1931
    %v1961 = vpop.xlane.xlu0 %1960
    %1962 = vmax.xlane.f32.xlu0 %v1936
    %v1963 = vpop.xlane.xlu0 %1962
    %1964 = vmax.xlane.f32.xlu0 %v1941
    %v1965 = vpop.xlane.xlu0 %1964
    %1966 = vmax.xlane.f32.xlu0 %v1946
    %v1967 = vpop.xlane.xlu0 %1966
    %1968 = vmax.xlane.f32.xlu0 %v1951
    %v1969 = vpop.xlane.xlu0 %1968
    %v1970 = vsub.f32 %v1916, %v1955
    %v1971 = vsub.f32 %v1921, %v1957
    %v1972 = vsub.f32 %v1926, %v1959
    %v1973 = vsub.f32 %v1931, %v1961
    %v1974 = vsub.f32 %v1936, %v1963
    %v1975 = vsub.f32 %v1941, %v1965
    %v1976 = vsub.f32 %v1946, %v1967
    %v1977 = vsub.f32 %v1951, %v1969
    %v1978 = vmul.f32 %v1970, 1.442695
    %v1979 = vpow.pop %v1978
    %v1980 = vmul.f32 %v1971, 1.442695
    %v1981 = vpow.pop %v1980
    %v1982 = vmul.f32 %v1972, 1.442695
    %v1983 = vpow.pop %v1982
    %v1984 = vmul.f32 %v1973, 1.442695
    %v1985 = vpow.pop %v1984
    %v1986 = vmul.f32 %v1974, 1.442695
    %v1987 = vpow.pop %v1986
    %v1988 = vmul.f32 %v1975, 1.442695
    %v1989 = vpow.pop %v1988
    %v1990 = vmul.f32 %v1976, 1.442695
    %v1991 = vpow.pop %v1990
    %v1992 = vmul.f32 %v1977, 1.442695
    %v1993 = vpow.pop %v1992
    %1994 = vadd.xlane.f32.xlu0 %v1979
    %v1995 = vpop.xlane.xlu0 %1994
    %1996 = vadd.xlane.f32.xlu0 %v1981
    %v1997 = vpop.xlane.xlu0 %1996
    %1998 = vadd.xlane.f32.xlu0 %v1983
    %v1999 = vpop.xlane.xlu0 %1998
    %2000 = vadd.xlane.f32.xlu0 %v1985
    %v2001 = vpop.xlane.xlu0 %2000
    %2002 = vadd.xlane.f32.xlu0 %v1987
    %v2003 = vpop.xlane.xlu0 %2002
    %2004 = vadd.xlane.f32.xlu0 %v1989
    %v2005 = vpop.xlane.xlu0 %2004
    %2006 = vadd.xlane.f32.xlu0 %v1991
    %v2007 = vpop.xlane.xlu0 %2006
    %2008 = vadd.xlane.f32.xlu0 %v1993
    %v2009 = vpop.xlane.xlu0 %2008
    %v2010 = vlog2.pop %v1995
    %v2011 = vmul.f32 %v2010, 0.6931472
    %v2012 = vlog2.pop %v1997
    %v2013 = vmul.f32 %v2012, 0.6931472
    %v2014 = vlog2.pop %v1999
    %v2015 = vmul.f32 %v2014, 0.6931472
    %v2016 = vlog2.pop %v2001
    %v2017 = vmul.f32 %v2016, 0.6931472
    %v2018 = vlog2.pop %v2003
    %v2019 = vmul.f32 %v2018, 0.6931472
    %v2020 = vlog2.pop %v2005
    %v2021 = vmul.f32 %v2020, 0.6931472
    %v2022 = vlog2.pop %v2007
    %v2023 = vmul.f32 %v2022, 0.6931472
    %v2024 = vlog2.pop %v2009
    %v2025 = vmul.f32 %v2024, 0.6931472
    %v2026 = vadd.f32 %v1955, %v2011
    %v2027 = vadd.f32 %v1957, %v2013
    %v2028 = vadd.f32 %v1959, %v2015
    %v2029 = vadd.f32 %v1961, %v2017
    %v2030 = vadd.f32 %v1963, %v2019
    %v2031 = vadd.f32 %v1965, %v2021
    %v2032 = vadd.f32 %v1967, %v2023
    %v2033 = vadd.f32 %v1969, %v2025
    %v2034 = vsub.f32 %v1916, %v2026
    %v2035 = vsub.f32 %v1921, %v2027
    %v2036 = vsub.f32 %v1926, %v2028
    %v2037 = vsub.f32 %v1931, %v2029
    %v2038 = vsub.f32 %v1936, %v2030
    %v2039 = vsub.f32 %v1941, %v2031
    %v2040 = vsub.f32 %v1946, %v2032
    %v2041 = vsub.f32 %v1951, %v2033
    %2042 = vst [vmem:[%s5] sm:$0xff] %v2034
    %2043 = vst [vmem:[%s5 + $0x8] sm:$0xff] %v2035
    %2044 = vst [vmem:[%s5 + $0x10] sm:$0xff] %v2036
    %2045 = vst [vmem:[%s5 + $0x18] sm:$0xff] %v2037
    %2046 = vst [vmem:[%s5 + $0x20] sm:$0xff] %v2038
    %2047 = vst [vmem:[%s5 + $0x28] sm:$0xff] %v2039
    %2048 = vst [vmem:[%s5 + $0x30] sm:$0xff] %v2040
    %2049 = vst [vmem:[%s5 + $0x38] sm:$0xff] %v2041
    // Predicated region
    $region26: #{pos_tagger_forward.1} parent=1 // pred_check
      _
    $region27: #{pos_tagger_forward.1} parent=1 // pred_check_branch
      %2051 = sbr.rel (0) target = $region29
    $region28: #{pos_tagger_forward.1} parent=1 // pred_region
      _
    $region29: #{pos_tagger_forward.1} parent=1 // pred_fallthru
      _
    // Predicated region
    $region30: #{pos_tagger_forward.1} parent=1 // pred_check
      _
    $region31: #{pos_tagger_forward.1} parent=1 // pred_check_branch
      %2053 = sbr.rel (0) target = $region33
    $region32: #{pos_tagger_forward.1} parent=1 // pred_region
      _
    $region33: #{pos_tagger_forward.1} parent=1 // pred_fallthru
      _
    // Predicated region
    $region34: #{pos_tagger_forward.1} parent=1 // pred_check
      _
    $region35: #{pos_tagger_forward.1} parent=1 // pred_check_branch
      %2055 = sbr.rel (0) target = $region37
    $region36: #{pos_tagger_forward.1} parent=1 // pred_region
      _
    $region37: #{pos_tagger_forward.1} parent=1 // pred_fallthru
      _
    // Predicated region
    $region38: #{pos_tagger_forward.1} parent=1 // pred_check
      _
    $region39: #{pos_tagger_forward.1} parent=1 // pred_check_branch
      %2057 = sbr.rel (0) target = $region41
    $region40: #{pos_tagger_forward.1} parent=1 // pred_region
      _
    $region41: #{pos_tagger_forward.1} parent=1 // pred_fallthru
      _
    // Predicated region
    $region42: #{pos_tagger_forward.1} parent=1 // pred_check
      _
    $region43: #{pos_tagger_forward.1} parent=1 // pred_check_branch
      %2059 = sbr.rel (0) target = $region45
    $region44: #{pos_tagger_forward.1} parent=1 // pred_region
      _
    $region45: #{pos_tagger_forward.1} parent=1 // pred_fallthru
      _
    // Predicated region
    $region46: #{pos_tagger_forward.1} parent=1 // pred_check
      _
    $region47: #{pos_tagger_forward.1} parent=1 // pred_check_branch
      %2061 = sbr.rel (0) target = $region49
    $region48: #{pos_tagger_forward.1} parent=1 // pred_region
      _
    $region49: #{pos_tagger_forward.1} parent=1 // pred_fallthru
      _
    %2062 = vsyncpa [#allocation4], 1

</llo_original>
